<compile_context>
chip_gen: v6e
topology: v6e:2x2x1
jax: 0.10.0
libtpu: 0.0.40
codegen_flags: <defaults>
</compile_context>

<pallas_src>
import functools

import jax
import jax.numpy as jnp
from jax.experimental import pallas as pl
from jax.experimental.pallas import tpu as pltpu

INPUT_LEN = 45      # 45 = 3 conv2 windows * 3 conv1 taps * 5 samples
OUTPUT_SIZE = 10
BATCH = 2
BPAD = 8            # batch padded to the 8-sublane tile
XPAD = 48           # conv1 contraction padded to 48 (3 x 16 packed bf16 rows)
NPAD = 128          # lane-dense padded logit width

# offsets inside the packed bias/scale row (f32, shape (1, _BIAS_LEN));
# every kernel-side slice start is a multiple of 128 lanes.
_B3_OFF, _B4_OFF, _B5_OFF = 0, 1024, 1536
_B6_OFF, _B2_OFF, _B1_OFF = 1792, 1920, 2176
_S4_OFF = 2432
_BIAS_LEN = 2944


def _mxu_has_int8_path():
    """True on chips whose MXU has an integer (int8) path (v4/v5/v6)."""
    try:
        kind = jax.devices()[0].device_kind.lower()
    except Exception:
        return False
    return any(tag in kind for tag in ("v4", "v5", "v6"))


def classifier_kernel(x_ref, bias_ref, convw_ref, w3_ref, w4_ref, w56_ref,
                      out_ref, *, out_size, w4_int8):
    """Whole forward pass on whole-array VMEM blocks.

    x_ref    : (8, 48)     f32 raw input rows (NCW input flattened, zero-padded)
    bias_ref : (1, 2944)   f32 packed [b3|b4|b5|b6 pad|b2 x3|pad|b1 x9|pad|s4]
    convw_ref: (192, 192)  bf16: rows 0:144        = block-diag conv2 (144,192)
                                 rows 144:189,0:144 = block-diag conv1 (45,144)
                                 rows 189:192       = zero padding
    w3_ref   : (192, 1024) bf16  Linear(192,1024), input dim pre-permuted to (t2,c)
    w4_ref   : (1024, 512) int8 (per-out-channel scales in bias row) or bf16
    w56_ref  : (768, 256)  bf16: rows 0:512 = Linear(512,256).T
                                 rows 512:768, cols 0:128 = Linear(256,out).T padded
    out_ref  : (8, 128)    f32 softmax probabilities (rows >= B, cols >= out_size pad)
    """
    leaky = lambda v: jnp.where(v >= 0.0, v, 0.2 * v)      # LeakyReLU(0.2)
    relu = lambda v: jnp.maximum(v, 0.0)
    bf16 = jnp.bfloat16

    b3 = bias_ref[:, _B3_OFF:_B3_OFF + 1024]
    b4 = bias_ref[:, _B4_OFF:_B4_OFF + 512]
    b5 = bias_ref[:, _B5_OFF:_B5_OFF + 256]
    b6 = bias_ref[:, _B6_OFF:_B6_OFF + NPAD]
    b2t = bias_ref[:, _B2_OFF:_B2_OFF + 192]
    b1t = bias_ref[:, _B1_OFF:_B1_OFF + 144]

    w2b = convw_ref[0:144, :]            # (144, 192) block-diag conv2
    w1b = convw_ref[144:192, 0:144]      # (48, 144)  block-diag conv1 (rows 45:48 zero)

    x = x_ref[...].astype(bf16)                                       # (8, 48)
    # conv1 (k=5, s=5) as ONE block-diagonal matmul; lanes = 16*(3*t2+k)+c
    h1 = leaky(jnp.dot(x, w1b, preferred_element_type=jnp.float32) + b1t)
    # conv2 (k=3, s=3) as ONE block-diagonal matmul; lanes = 64*t2 + c_out
    h2 = leaky(jnp.dot(h1.astype(bf16), w2b,
                       preferred_element_type=jnp.float32) + b2t)

    # MLP head (dropout layers are identity in eval mode).
    z = relu(jnp.dot(h2.astype(bf16), w3_ref[...],
                     preferred_element_type=jnp.float32) + b3)

    if w4_int8:
        # Dynamic per-row int8 activation quant + int8 x int8 MXU dot; the
        # activation and per-output-channel weight scales fold into the f32
        # bias-add (no VPU dequant of the weight matrix).
        s4 = bias_ref[:, _S4_OFF:_S4_OFF + 512]                       # (1, 512)
        amax = jnp.maximum(jnp.max(z, axis=-1, keepdims=True), 1e-6)  # (8, 1)
        q = jnp.round(z * (127.0 * pl.reciprocal(amax, approx=True)))
        q = jnp.clip(q, -127.0, 127.0).astype(jnp.int8)
        acc = jnp.dot(q, w4_ref[...], preferred_element_type=jnp.int32)
        z = relu(acc.astype(jnp.float32) * ((amax * (1.0 / 127.0)) * s4) + b4)
    else:
        z = relu(jnp.dot(z.astype(bf16), w4_ref[...],
                         preferred_element_type=jnp.float32) + b4)

    z = relu(jnp.dot(z.astype(bf16), w56_ref[0:512, :],
                     preferred_element_type=jnp.float32) + b5)
    z = jnp.dot(z.astype(bf16), w56_ref[512:768, 0:NPAD],
                preferred_element_type=jnp.float32) + b6
    z = jnp.tanh(z)

    # softmax over the real `out_size` lanes only.  z is in [-1, 1] after tanh,
    # so the usual max-subtraction is unnecessary; padded lanes -> prob 0.
    lane = jax.lax.broadcasted_iota(jnp.int32, z.shape, 1)
    e = jnp.where(lane < out_size, jnp.exp(z), 0.0)
    denom = jnp.sum(e, axis=-1, keepdims=True)
    out_ref[...] = e * pl.reciprocal(denom, approx=True)


def init_params(key, output_size=OUTPUT_SIZE):
    """Deterministic synthetic parameters with PyTorch-native layouts."""
    ks = jax.random.split(key, 12)
    u = lambda k, shape, bound: jax.random.uniform(k, shape, jnp.float32, -bound, bound)
    p = {}
    p["w1"] = u(ks[0], (16, 1, 5), 0.4)            # Conv1d(1,16,5)
    p["b1"] = u(ks[1], (16,), 0.4)
    p["w2"] = u(ks[2], (64, 16, 3), 0.14)          # Conv1d(16,64,3)
    p["b2"] = u(ks[3], (64,), 0.14)
    p["W3"] = u(ks[4], (1024, 192), 0.07)          # Linear(192,1024)
    p["b3"] = u(ks[5], (1024,), 0.07)
    p["W4"] = u(ks[6], (512, 1024), 0.03)          # Linear(1024,512)
    p["b4"] = u(ks[7], (512,), 0.03)
    p["W5"] = u(ks[8], (256, 512), 0.04)           # Linear(512,256)
    p["b5"] = u(ks[9], (256,), 0.04)
    p["W6"] = u(ks[10], (output_size, 256), 0.06)  # Linear(256,output_size)
    p["b6"] = u(ks[11], (output_size,), 0.06)
    return p


def prepare_params(p, output_size=OUTPUT_SIZE, int8_w4=False):
    """One-time weight re-layout / packing / quantization (OUTSIDE the call path)."""
    f32 = jnp.float32
    # conv kernels in matmul form
    w1k = p["w1"].reshape(16, 5).T.astype(f32)                  # (5, 16)
    w2k = jnp.transpose(p["w2"], (2, 1, 0)).reshape(48, 64)     # (48, 64), row = 16*k + c_in
    # fold the stride==kernel convolutions into block-diagonal matmuls
    w1_big = jnp.kron(jnp.eye(9, dtype=f32), w1k)               # (45, 144)
    w2_big = jnp.kron(jnp.eye(3, dtype=f32), w2k)               # (144, 192)
    convw = jnp.zeros((192, 192), f32)
    convw = convw.at[0:144, :].set(w2_big)
    convw = convw.at[144:189, 0:144].set(w1_big)                # rows 189:192 stay zero

    # Linear(192,1024): reorder input dim from PyTorch flatten (c*3 + t2) to (64*t2 + c)
    w3 = jnp.transpose(p["W3"].reshape(1024, 64, 3), (2, 1, 0)).reshape(192, 1024)
    w4t = p["W4"].T                                             # (1024, 512)
    w5 = p["W5"].T                                              # (512, 256)
    w6 = jnp.zeros((256, 256), f32).at[:, :output_size].set(p["W6"].T)
    w56 = jnp.concatenate([w5, w6], axis=0)                     # (768, 256)

    if int8_w4:
        # per-output-channel symmetric int8 quantization of W4
        s4 = jnp.maximum(jnp.max(jnp.abs(w4t), axis=0), 1e-12) / 127.0     # (512,)
        w4_packed = jnp.clip(jnp.round(w4t / s4[None, :]), -127.0, 127.0).astype(jnp.int8)
    else:
        s4 = jnp.zeros((512,), f32)             # unused slot in the bias row
        w4_packed = w4t.astype(jnp.bfloat16)

    # packed bias/scale row; all kernel-side slice starts are multiples of 128
    b6p = jnp.zeros((NPAD,), f32).at[:output_size].set(p["b6"])
    bias_row = jnp.concatenate([
        p["b3"], p["b4"], p["b5"], b6p,
        jnp.tile(p["b2"], 3), jnp.zeros((64,), f32),
        jnp.tile(p["b1"], 9), jnp.zeros((112,), f32),
        s4,
    ]).reshape(1, _BIAS_LEN)

    return {
        "bias": bias_row,                       # f32  (1, 2944)
        "convw": convw.astype(jnp.bfloat16),    # bf16 (192, 192)
        "w3": w3.astype(jnp.bfloat16),          # bf16 (192, 1024)
        "w4": w4_packed,                        # int8 or bf16 (1024, 512)
        "w56": w56.astype(jnp.bfloat16),        # bf16 (768, 256)
    }


def classifier_forward(x, prepped, output_size=OUTPUT_SIZE, int8_w4=False):
    """x: (B, 1, 45) float32 (PyTorch NCW layout)."""
    B = x.shape[0]
    assert B <= BPAD and x.shape[1] == 1 and x.shape[2] == INPUT_LEN
    # Pad batch to the 8-sublane tile and the conv1 contraction dim to 48 so
    # every in-kernel slice / store is tile-aligned (layout plumbing only).
    x_pad = jnp.zeros((BPAD, XPAD), jnp.float32)
    x_pad = x_pad.at[:B, :INPUT_LEN].set(x.reshape(B, INPUT_LEN))

    operands = (x_pad, prepped["bias"], prepped["convw"],
                prepped["w3"], prepped["w4"], prepped["w56"])
    flops = 2 * BPAD * (XPAD * 144 + 144 * 192 + 192 * 1024
                        + 1024 * 512 + 512 * 256 + 256 * NPAD)
    bytes_accessed = (sum(int(a.size) * a.dtype.itemsize for a in operands)
                      + BPAD * NPAD * 4)
    cost = pl.CostEstimate(flops=flops,
                           transcendentals=2 * BPAD * NPAD,
                           bytes_accessed=bytes_accessed)

    vmem = pl.BlockSpec(memory_space=pltpu.MemorySpace.VMEM)
    out_padded = pl.pallas_call(
        functools.partial(classifier_kernel, out_size=output_size,
                          w4_int8=int8_w4),
        out_shape=jax.ShapeDtypeStruct((BPAD, NPAD), jnp.float32),
        in_specs=[vmem] * 6,
        out_specs=vmem,
        cost_estimate=cost,
    )(*operands)
    return out_padded[:B, :output_size]


def reference_forward(x, p):
    """Pure-JAX re-implementation of the PyTorch forward (f32, for validation)."""
    B = x.shape[0]
    leaky = lambda v: jnp.where(v >= 0.0, v, 0.2 * v)
    relu = lambda v: jnp.maximum(v, 0.0)
    # conv1: stride 5, kernel 5
    xw = x.reshape(B, 1, 9, 5)                                   # [b, c, t1, j]
    h1 = jnp.einsum("bctj,ocj->bot", xw, p["w1"]) + p["b1"][None, :, None]
    h1 = leaky(h1)                                               # (B, 16, 9)
    # conv2: stride 3, kernel 3
    h1w = h1.reshape(B, 16, 3, 3)                                # [b, c, t2, k]
    h2 = jnp.einsum("bctk,ock->bot", h1w, p["w2"]) + p["b2"][None, :, None]
    h2 = leaky(h2)                                               # (B, 64, 3)
    flat = h2.reshape(B, 64 * 3)
    z = relu(flat @ p["W3"].T + p["b3"])
    z = relu(z @ p["W4"].T + p["b4"])
    z = relu(z @ p["W5"].T + p["b5"])
    z = z @ p["W6"].T + p["b6"]
    z = jnp.tanh(z)
    return jax.nn.softmax(z, axis=1)


if __name__ == "__main__":
    key = jax.random.PRNGKey(0)
    kx, kp = jax.random.split(key)
    x = jax.random.normal(kx, (BATCH, 1, INPUT_LEN), jnp.float32)
    params = init_params(kp, OUTPUT_SIZE)
    ref = reference_forward(x, params)

    def run(use_int8):
        prepped = prepare_params(params, OUTPUT_SIZE, int8_w4=use_int8)
        fwd = jax.jit(functools.partial(classifier_forward, prepped=prepped,
                                        output_size=OUTPUT_SIZE,
                                        int8_w4=use_int8))
        out = jax.block_until_ready(fwd(x))
        # bf16 (and optionally int8 W4) weights in the head => loosened
        # tolerance vs the f32 reference.
        if not jnp.allclose(out, ref, rtol=4e-2, atol=4e-2):
            raise AssertionError("kernel/reference mismatch")
        return out

    use_int8 = _mxu_has_int8_path()
    try:
        out = run(use_int8)
    except Exception:
        if not use_int8:
            raise
        # Robust fallback: keep W4 in bf16 if the int8 MXU path is unavailable
        # or out of tolerance on this chip.
        out = run(False)

    assert out.shape == (BATCH, OUTPUT_SIZE)
    # pl.reciprocal(approx=True) => rows sum to 1 only to ~1e-3 relative.
    assert jnp.allclose(jnp.sum(out, axis=1), 1.0, atol=1e-2)
    print("KERNEL_OK")
</pallas_src>

<mosaic_0001>
module attributes {stable_mosaic.version = 11 : i64} {
  func.func @classifier_kernel(%arg0: memref<8x48xf32, #tpu.memory_space<vmem>>, %arg1: memref<1x2944xf32, #tpu.memory_space<vmem>>, %arg2: memref<192x192xbf16, #tpu.memory_space<vmem>>, %arg3: memref<192x1024xbf16, #tpu.memory_space<vmem>>, %arg4: memref<1024x512xbf16, #tpu.memory_space<vmem>>, %arg5: memref<768x256xbf16, #tpu.memory_space<vmem>>, %arg6: memref<8x128xf32, #tpu.memory_space<vmem>>) attributes {dimension_semantics = [], scalar_prefetch = 0 : i64, scratch_operands = 0 : i64, tpu.core_type = #tpu.core_type<tc>} {
    %c0 = arith.constant 0 : index
    %c0_0 = arith.constant 0 : index
    %0 = vector.load %arg1[%c0, %c0_0] : memref<1x2944xf32, #tpu.memory_space<vmem>>, vector<1x1024xf32>
    %c0_1 = arith.constant 0 : index
    %c1024 = arith.constant 1024 : index
    %1 = vector.load %arg1[%c0_1, %c1024] : memref<1x2944xf32, #tpu.memory_space<vmem>>, vector<1x512xf32>
    %c0_2 = arith.constant 0 : index
    %c1536 = arith.constant 1536 : index
    %2 = vector.load %arg1[%c0_2, %c1536] : memref<1x2944xf32, #tpu.memory_space<vmem>>, vector<1x256xf32>
    %c0_3 = arith.constant 0 : index
    %c1792 = arith.constant 1792 : index
    %3 = vector.load %arg1[%c0_3, %c1792] : memref<1x2944xf32, #tpu.memory_space<vmem>>, vector<1x128xf32>
    %c0_4 = arith.constant 0 : index
    %c1920 = arith.constant 1920 : index
    %4 = vector.load %arg1[%c0_4, %c1920] : memref<1x2944xf32, #tpu.memory_space<vmem>>, vector<1x192xf32>
    %c0_5 = arith.constant 0 : index
    %c2176 = arith.constant 2176 : index
    %5 = vector.load %arg1[%c0_5, %c2176] : memref<1x2944xf32, #tpu.memory_space<vmem>>, vector<1x144xf32>
    %c0_6 = arith.constant 0 : index
    %c0_7 = arith.constant 0 : index
    %6 = vector.load %arg2[%c0_6, %c0_7] : memref<192x192xbf16, #tpu.memory_space<vmem>>, vector<144x192xbf16>
    %c144 = arith.constant 144 : index
    %c0_8 = arith.constant 0 : index
    %7 = vector.load %arg2[%c144, %c0_8] : memref<192x192xbf16, #tpu.memory_space<vmem>>, vector<48x144xbf16>
    %c0_9 = arith.constant 0 : index
    %c0_10 = arith.constant 0 : index
    %8 = vector.load %arg0[%c0_9, %c0_10] : memref<8x48xf32, #tpu.memory_space<vmem>>, vector<8x48xf32>
    %9 = arith.truncf %8 : vector<8x48xf32> to vector<8x48xbf16>
    %cst = arith.constant dense<0.000000e+00> : vector<8x144xf32>
    %10 = tpu.matmul %9, %7, %cst {dimension_numbers = #tpu.dot_dimension_numbers<[1], [0], [0], [1], [0, 0, 1, 1], [], []>} : vector<8x48xbf16>, vector<48x144xbf16>, vector<8x144xf32> -> vector<8x144xf32>
    %11 = vector.broadcast %5 : vector<1x144xf32> to vector<8x144xf32>
    %12 = arith.addf %10, %11 : vector<8x144xf32>
    %cst_11 = arith.constant 0.000000e+00 : f32
    %13 = vector.broadcast %cst_11 : f32 to vector<8x144xf32>
    %14 = arith.cmpf oge, %12, %13 : vector<8x144xf32>
    %cst_12 = arith.constant 2.000000e-01 : f32
    %15 = vector.broadcast %cst_12 : f32 to vector<8x144xf32>
    %16 = arith.mulf %15, %12 : vector<8x144xf32>
    %17 = arith.select %14, %12, %16 : vector<8x144xi1>, vector<8x144xf32>
    %18 = arith.truncf %17 : vector<8x144xf32> to vector<8x144xbf16>
    %cst_13 = arith.constant dense<0.000000e+00> : vector<8x192xf32>
    %19 = tpu.matmul %18, %6, %cst_13 {dimension_numbers = #tpu.dot_dimension_numbers<[1], [0], [0], [1], [0, 0, 1, 1], [], []>} : vector<8x144xbf16>, vector<144x192xbf16>, vector<8x192xf32> -> vector<8x192xf32>
    %20 = vector.broadcast %4 : vector<1x192xf32> to vector<8x192xf32>
    %21 = arith.addf %19, %20 : vector<8x192xf32>
    %cst_14 = arith.constant 0.000000e+00 : f32
    %22 = vector.broadcast %cst_14 : f32 to vector<8x192xf32>
    %23 = arith.cmpf oge, %21, %22 : vector<8x192xf32>
    %cst_15 = arith.constant 2.000000e-01 : f32
    %24 = vector.broadcast %cst_15 : f32 to vector<8x192xf32>
    %25 = arith.mulf %24, %21 : vector<8x192xf32>
    %26 = arith.select %23, %21, %25 : vector<8x192xi1>, vector<8x192xf32>
    %27 = arith.truncf %26 : vector<8x192xf32> to vector<8x192xbf16>
    %c0_16 = arith.constant 0 : index
    %c0_17 = arith.constant 0 : index
    %28 = vector.load %arg3[%c0_16, %c0_17] : memref<192x1024xbf16, #tpu.memory_space<vmem>>, vector<192x1024xbf16>
    %cst_18 = arith.constant dense<0.000000e+00> : vector<8x1024xf32>
    %29 = tpu.matmul %27, %28, %cst_18 {dimension_numbers = #tpu.dot_dimension_numbers<[1], [0], [0], [1], [0, 0, 1, 1], [], []>} : vector<8x192xbf16>, vector<192x1024xbf16>, vector<8x1024xf32> -> vector<8x1024xf32>
    %30 = vector.broadcast %0 : vector<1x1024xf32> to vector<8x1024xf32>
    %31 = arith.addf %29, %30 : vector<8x1024xf32>
    %cst_19 = arith.constant 0.000000e+00 : f32
    %32 = vector.broadcast %cst_19 : f32 to vector<8x1024xf32>
    %33 = arith.maximumf %31, %32 : vector<8x1024xf32>
    %34 = arith.truncf %33 : vector<8x1024xf32> to vector<8x1024xbf16>
    %c0_20 = arith.constant 0 : index
    %c0_21 = arith.constant 0 : index
    %35 = vector.load %arg4[%c0_20, %c0_21] : memref<1024x512xbf16, #tpu.memory_space<vmem>>, vector<1024x512xbf16>
    %cst_22 = arith.constant dense<0.000000e+00> : vector<8x512xf32>
    %36 = tpu.matmul %34, %35, %cst_22 {dimension_numbers = #tpu.dot_dimension_numbers<[1], [0], [0], [1], [0, 0, 1, 1], [], []>} : vector<8x1024xbf16>, vector<1024x512xbf16>, vector<8x512xf32> -> vector<8x512xf32>
    %37 = vector.broadcast %1 : vector<1x512xf32> to vector<8x512xf32>
    %38 = arith.addf %36, %37 : vector<8x512xf32>
    %cst_23 = arith.constant 0.000000e+00 : f32
    %39 = vector.broadcast %cst_23 : f32 to vector<8x512xf32>
    %40 = arith.maximumf %38, %39 : vector<8x512xf32>
    %41 = arith.truncf %40 : vector<8x512xf32> to vector<8x512xbf16>
    %c0_24 = arith.constant 0 : index
    %c0_25 = arith.constant 0 : index
    %42 = vector.load %arg5[%c0_24, %c0_25] : memref<768x256xbf16, #tpu.memory_space<vmem>>, vector<512x256xbf16>
    %cst_26 = arith.constant dense<0.000000e+00> : vector<8x256xf32>
    %43 = tpu.matmul %41, %42, %cst_26 {dimension_numbers = #tpu.dot_dimension_numbers<[1], [0], [0], [1], [0, 0, 1, 1], [], []>} : vector<8x512xbf16>, vector<512x256xbf16>, vector<8x256xf32> -> vector<8x256xf32>
    %44 = vector.broadcast %2 : vector<1x256xf32> to vector<8x256xf32>
    %45 = arith.addf %43, %44 : vector<8x256xf32>
    %cst_27 = arith.constant 0.000000e+00 : f32
    %46 = vector.broadcast %cst_27 : f32 to vector<8x256xf32>
    %47 = arith.maximumf %45, %46 : vector<8x256xf32>
    %48 = arith.truncf %47 : vector<8x256xf32> to vector<8x256xbf16>
    %c512 = arith.constant 512 : index
    %c0_28 = arith.constant 0 : index
    %49 = vector.load %arg5[%c512, %c0_28] : memref<768x256xbf16, #tpu.memory_space<vmem>>, vector<256x128xbf16>
    %cst_29 = arith.constant dense<0.000000e+00> : vector<8x128xf32>
    %50 = tpu.matmul %48, %49, %cst_29 {dimension_numbers = #tpu.dot_dimension_numbers<[1], [0], [0], [1], [0, 0, 1, 1], [], []>} : vector<8x256xbf16>, vector<256x128xbf16>, vector<8x128xf32> -> vector<8x128xf32>
    %51 = vector.broadcast %3 : vector<1x128xf32> to vector<8x128xf32>
    %52 = arith.addf %50, %51 : vector<8x128xf32>
    %53 = math.tanh %52 : vector<8x128xf32>
    %54 = tpu.iota {dimensions = array<i32: 1>} : vector<8x128xi32>
    %c10_i32 = arith.constant 10 : i32
    %55 = vector.broadcast %c10_i32 : i32 to vector<8x128xi32>
    %56 = arith.cmpi slt, %54, %55 : vector<8x128xi32>
    %57 = math.exp %53 : vector<8x128xf32>
    %cst_30 = arith.constant 0.000000e+00 : f32
    %58 = vector.broadcast %cst_30 : f32 to vector<8x128xf32>
    %59 = arith.select %56, %57, %58 : vector<8x128xi1>, vector<8x128xf32>
    %cst_31 = arith.constant dense<0.000000e+00> : vector<8xf32>
    %60 = vector.multi_reduction <add>, %59, %cst_31 [1] : vector<8x128xf32> to vector<8xf32>
    %61 = vector.shape_cast %60 : vector<8xf32> to vector<8x1xf32>
    %62 = tpu.reciprocal %61 {approx = true} : vector<8x1xf32> -> vector<8x1xf32>
    %63 = vector.broadcast %62 : vector<8x1xf32> to vector<8x128xf32>
    %64 = arith.mulf %59, %63 : vector<8x128xf32>
    %c0_32 = arith.constant 0 : index
    %c0_33 = arith.constant 0 : index
    %65 = vector.load %arg6[%c0_32, %c0_33] : memref<8x128xf32, #tpu.memory_space<vmem>>, vector<8x128xf32>
    tpu.vector_store %arg6[%c0_32, %c0_33], %64 {strides = array<i32>} : memref<8x128xf32, #tpu.memory_space<vmem>>, vector<8x128xf32>,
    return
  }
}

</mosaic_0001>

<llo_original>
// kernel: classifier_forward.1
$region0: #{classifier_forward.1}
  #allocation0 [shape = 'u32[]', space=smem, size = 0x4, offset = 0x4, fixed_abs, tag = 'smem constant byte address 0x4 - core index']
  #allocation1 [shape = 'u32[144,128]{1,0:T(1,128)}', space=vmem, size = 0x12000, scoped, tag = 'internal scratch']
  %s0 = inlined_call_operand.vmem [shape: f32[8,48], index: 0, kind: input, shape index: {}]
  %s1 = inlined_call_operand.hbm [shape: f32[1,2944], index: 1, kind: input, shape index: {}]
  %s2 = inlined_call_operand.hbm [shape: bf16[192,192], index: 2, kind: input, shape index: {}]
  %s3 = inlined_call_operand.hbm [shape: bf16[192,1024], index: 3, kind: input, shape index: {}]
  %s4 = inlined_call_operand.hbm [shape: bf16[1024,512], index: 4, kind: input, shape index: {}]
  %s5 = inlined_call_operand.hbm [shape: bf16[768,256], index: 5, kind: input, shape index: {}]
  %s6 = inlined_call_operand.vmem [shape: f32[8,128], index: 6, kind: output, shape index: {}]
  %s7 = sld [smem:[#allocation0]]
  $region54: #{classifier_forward.1} parent=0
    _
  %s9 = ssub.s32 1, %s7
  %s10 = scalar_select 0, %s9, %s7
  $region1: #{classifier_forward.1} parent=0
    #allocation2 [shape = 'u8[11776]{0}', space=vmem, size = 0x3000, scoped, tag = 'input window, operand 1, single buffered']
    #allocation3 [shape = 's32[1]{0}', space=sflag, size = 0x4, scoped, tag = 'scoped memory for classifier_forward.1']
    #allocation4 [shape = 'u8[98304]{0}', space=vmem, size = 0x18000, scoped, tag = 'input window, operand 2, single buffered']
    #allocation5 [shape = 's32[1]{0}', space=sflag, size = 0x4, scoped, tag = 'scoped memory for classifier_forward.1']
    #allocation6 [shape = 'u8[393216]{0}', space=vmem, size = 0x60000, scoped, tag = 'input window, operand 3, single buffered']
    #allocation7 [shape = 'u8[1048576]{0}', space=vmem, size = 0x100000, scoped, tag = 'input window, operand 4, single buffered']
    #allocation8 [shape = 's32[1]{0}', space=sflag, size = 0x4, scoped, tag = 'scoped memory for classifier_forward.1']
    #allocation9 [shape = 'u8[393216]{0}', space=vmem, size = 0x60000, scoped, tag = 'input window, operand 5, single buffered']
    %11 = vsyncpa [#allocation3], 0
    %12 = vsyncpa [#allocation5], 0
    %13 = vsyncpa [#allocation8], 0
    // Predicated region
    $region2: #{classifier_forward.1} parent=1 // pred_check
      _
    $region3: #{classifier_forward.1} parent=1 // pred_check_branch
      %15 = sbr.rel (0) target = $region5
    $region4: #{classifier_forward.1} parent=1 // pred_region
      _
    $region5: #{classifier_forward.1} parent=1 // pred_fallthru
      _
    // Predicated region
    $region6: #{classifier_forward.1} parent=1 // pred_check
      _
    $region7: #{classifier_forward.1} parent=1 // pred_check_branch
      %17 = sbr.rel (0) target = $region9
    $region8: #{classifier_forward.1} parent=1 // pred_region
      %s19 = ssub.s32 368, 368
      %20 = vsyncadd [#allocation3], %s19
      %s22 = sshll.u32 [#allocation2], 4
      %s23 = int_to_ptr.vmem [resolvable:$true] %s22
      %25 = dma.hbm_to_vmem [thread:$0]  %s1, 368, %s23, [#allocation3]
    $region9: #{classifier_forward.1} parent=1 // pred_fallthru
      _
    // Predicated region
    $region10: #{classifier_forward.1} parent=1 // pred_check
      _
    $region11: #{classifier_forward.1} parent=1 // pred_check_branch
      %27 = sbr.rel (0) target = $region13
    $region12: #{classifier_forward.1} parent=1 // pred_region
      %s29 = ssub.s32 3072, 3072
      %30 = vsyncadd [#allocation5], %s29
      %s31 = sshll.u32 [#allocation4], 4
      %s32 = int_to_ptr.vmem [resolvable:$true] %s31
      %37 = dma.hbm_to_vmem [thread:$0]  %s2, 3072, %s32, [#allocation5], 128, 128, 8
    $region13: #{classifier_forward.1} parent=1 // pred_fallthru
      _
    // Predicated region
    $region14: #{classifier_forward.1} parent=1 // pred_check
      _
    $region15: #{classifier_forward.1} parent=1 // pred_check_branch
      %39 = sbr.rel (0) target = $region17
    $region16: #{classifier_forward.1} parent=1 // pred_region
      %s41 = ssub.s32 12288, 12288
      %42 = vsyncadd [#allocation5], %s41
      %s43 = sshll.u32 [#allocation6], 4
      %s44 = int_to_ptr.vmem [resolvable:$true] %s43
      %49 = dma.hbm_to_vmem [thread:$0]  %s3, 12288, %s44, [#allocation5], 512, 512, 32
    $region17: #{classifier_forward.1} parent=1 // pred_fallthru
      _
    // Predicated region
    $region18: #{classifier_forward.1} parent=1 // pred_check
      _
    $region19: #{classifier_forward.1} parent=1 // pred_check_branch
      %51 = sbr.rel (0) target = $region21
    $region20: #{classifier_forward.1} parent=1 // pred_region
      %s53 = ssub.s32 32768, 32768
      %54 = vsyncadd [#allocation8], %s53
      %s55 = sshll.u32 [#allocation7], 4
      %s56 = int_to_ptr.vmem [resolvable:$true] %s55
      %61 = dma.hbm_to_vmem [thread:$0]  %s4, 32768, %s56, [#allocation8], 256, 256, 16
    $region21: #{classifier_forward.1} parent=1 // pred_fallthru
      _
    // Predicated region
    $region22: #{classifier_forward.1} parent=1 // pred_check
      _
    $region23: #{classifier_forward.1} parent=1 // pred_check_branch
      %63 = sbr.rel (0) target = $region25
    $region24: #{classifier_forward.1} parent=1 // pred_region
      %s65 = ssub.s32 12288, 12288
      %66 = vsyncadd [#allocation8], %s65
      %s67 = sshll.u32 [#allocation9], 4
      %s68 = int_to_ptr.vmem [resolvable:$true] %s67
      %73 = dma.hbm_to_vmem [thread:$0]  %s5, 12288, %s68, [#allocation8], 128, 128, 8
    $region25: #{classifier_forward.1} parent=1 // pred_fallthru
      _
    // Predicated region
    $region26: #{classifier_forward.1} parent=1 // pred_check
      _
    $region27: #{classifier_forward.1} parent=1 // pred_check_branch
      %75 = sbr.rel (0) target = $region29
    $region28: #{classifier_forward.1} parent=1 // pred_region
      %76 = dma.done [#allocation3], 368
    $region29: #{classifier_forward.1} parent=1 // pred_fallthru
      _
    // Predicated region
    $region30: #{classifier_forward.1} parent=1 // pred_check
      _
    $region31: #{classifier_forward.1} parent=1 // pred_check_branch
      %78 = sbr.rel (0) target = $region33
    $region32: #{classifier_forward.1} parent=1 // pred_region
      %79 = dma.done [#allocation5], 3072
    $region33: #{classifier_forward.1} parent=1 // pred_fallthru
      _
    // Predicated region
    $region34: #{classifier_forward.1} parent=1 // pred_check
      _
    $region35: #{classifier_forward.1} parent=1 // pred_check_branch
      %81 = sbr.rel (0) target = $region37
    $region36: #{classifier_forward.1} parent=1 // pred_region
      %82 = dma.done [#allocation5], 12288
    $region37: #{classifier_forward.1} parent=1 // pred_fallthru
      _
    // Predicated region
    $region38: #{classifier_forward.1} parent=1 // pred_check
      _
    $region39: #{classifier_forward.1} parent=1 // pred_check_branch
      %84 = sbr.rel (0) target = $region41
    $region40: #{classifier_forward.1} parent=1 // pred_region
      %85 = dma.done [#allocation8], 32768
    $region41: #{classifier_forward.1} parent=1 // pred_fallthru
      _
    // Predicated region
    $region42: #{classifier_forward.1} parent=1 // pred_check
      _
    $region43: #{classifier_forward.1} parent=1 // pred_check_branch
      %87 = sbr.rel (0) target = $region45
    $region44: #{classifier_forward.1} parent=1 // pred_region
      %88 = dma.done [#allocation8], 12288
    $region45: #{classifier_forward.1} parent=1 // pred_fallthru
      _
    %v90 = vld [vmem:[#allocation2] sm:$0xff]
    %v91 = vld [vmem:[#allocation2 + $0x8] sm:$0xf]
    %v92 = vld [vmem:[#allocation2 + $0xc] sm:$0x3]
    %v93 = vld [vmem:[#allocation2 + $0xe] sm:$0x1]
    %v94 = vld [vmem:[#allocation2 + $0xf] sm:$0x3]
    %v95 = vld [vmem:[#allocation2 + $0x11] sm:$0x3]
    %v96 = vld [vmem:[#allocation4] sm:$0xff]
    %v97 = vld [vmem:[#allocation4 + $0x8] sm:$0xff]
    %v98 = vld [vmem:[#allocation4 + $0x10] sm:$0xff]
    %v99 = vld [vmem:[#allocation4 + $0x18] sm:$0xff]
    %v100 = vld [vmem:[#allocation4 + $0x20] sm:$0xff]
    %v101 = vld [vmem:[#allocation4 + $0x28] sm:$0xff]
    %v102 = vld [vmem:[#allocation4 + $0x30] sm:$0xff]
    %v103 = vld [vmem:[#allocation4 + $0x38] sm:$0xff]
    %v104 = vld [vmem:[#allocation4 + $0x40] sm:$0xff]
    %v105 = vld [vmem:[#allocation4 + $0x48] sm:$0xff]
    %v106 = vld [vmem:[#allocation4 + $0x50] sm:$0xff]
    %v107 = vld [vmem:[#allocation4 + $0x58] sm:$0xff]
    %v108 = vld [vmem:[#allocation4 + $0x60] sm:$0xff]
    %v109 = vld [vmem:[#allocation4 + $0x68] sm:$0xff]
    %v110 = vld [vmem:[#allocation4 + $0x70] sm:$0xff]
    %v111 = vld [vmem:[#allocation4 + $0x78] sm:$0xff]
    %v112 = vld [vmem:[#allocation4 + $0x80] sm:$0xff]
    %v113 = vld [vmem:[#allocation4 + $0x88] sm:$0xff]
    %v114 = vld [vmem:[#allocation4 + $0x90] sm:$0xff]
    %v115 = vld [vmem:[#allocation4 + $0x98] sm:$0xff]
    %v116 = vld [vmem:[#allocation4 + $0xa0] sm:$0xff]
    %v117 = vld [vmem:[#allocation4 + $0xa8] sm:$0xff]
    %v118 = vld [vmem:[#allocation4 + $0xb0] sm:$0xff]
    %v119 = vld [vmem:[#allocation4 + $0xb8] sm:$0xff]
    %v120 = vld [vmem:[%s0] sm:$0xff]
    %v121 = vpack.c.bf16 %v120, %v120
    %v123 = vlaneseq
    %v124 = vshrl.u32 %v123, 7
    %v125 = vsub.s32 0, %v124
    %v126 = vrot.slane %v95, %v125
    %v127 = vlaneseq
    %v128 = vshrl.u32 %v127, 7
    %v129 = vsub.s32 1, %v128
    %v130 = vrot.slane %v95, %v129
    %v139 = vunpack.c.l.b16 %v114
    %v140 = vunpack.c.h.b16 %v114
    %v141 = vunpack.c.l.b16 %v115
    %v142 = vunpack.c.h.b16 %v115
    %v143 = vunpack.c.l.b16 %v116
    %v144 = vunpack.c.h.b16 %v116
    %v145 = vunpack.c.l.b16 %v117
    %v146 = vunpack.c.h.b16 %v117
    %v147 = vunpack.c.l.b16 %v118
    %v148 = vunpack.c.h.b16 %v118
    %v149 = vunpack.c.l.b16 %v119
    %v150 = vunpack.c.h.b16 %v119
    %v151 = vpack.c.b16 %v141, %v139
    %v152 = vpack.c.b16 %v142, %v140
    %v153 = vpack.c.b16 %v145, %v143
    %v154 = vpack.c.b16 %v146, %v144
    %v155 = vpack.c.b16 %v149, %v147
    %v156 = vpack.c.b16 %v150, %v148
    %vm163 = vcmask 392192
    %v165 = vsel %vm163, %v121, 0
    %167 = vmatprep.subr.bf16.mxu0 0
    %168 = vmatpush1.bf16.msra.mxu0 0
    %169 = vmatprep.subr.bf16.mxu0 0
    %170 = vmatpush1.bf16.msra.mxu0 0
    %171 = vmatprep.subr.bf16.mxu0 0
    %172 = vmatpush1.bf16.msra.mxu0 0
    %173 = vmatprep.subr.bf16.mxu0 0
    %174 = vmatpush1.bf16.msra.mxu0 0
    %175 = vmatprep.subr.bf16.mxu0 0
    %176 = vmatpush1.bf16.msra.mxu0 0
    %177 = vmatprep.subr.bf16.mxu0 %v156
    %178 = vmatpush1.bf16.msra.mxu0 %v155
    %179 = vmatprep.subr.bf16.mxu0 %v154
    %180 = vmatpush1.bf16.msra.mxu0 %v153
    %181 = vmatprep.subr.bf16.mxu0 %v152
    %182 = vmatpush1.bf16.msra.mxu0 %v151
    %183 = vmatprep.subr.bf16.mxu0 0
    %184 = vmatpush2.bf16.msra.mxu0 0
    %185 = vmatprep.subr.bf16.mxu0 0
    %186 = vmatpush2.bf16.msra.mxu0 0
    %187 = vmatprep.subr.bf16.mxu0 0
    %188 = vmatpush2.bf16.msra.mxu0 0
    %189 = vmatprep.subr.bf16.mxu0 0
    %190 = vmatpush2.bf16.msra.mxu0 0
    %191 = vmatprep.subr.bf16.mxu0 0
    %192 = vmatpush2.bf16.msra.mxu0 0
    %193 = vmatprep.subr.bf16.mxu0 0
    %194 = vmatpush2.bf16.msra.mxu0 0
    %195 = vmatprep.subr.bf16.mxu0 0
    %196 = vmatpush2.bf16.msra.mxu0 0
    %197 = vmatprep.subr.bf16.mxu0 0
    %198 = vmatpush2.bf16.msra.mxu0 0
    %199 = vmatprep.mubr.bf16.mxu0 0
    %200 = vmatmul.mubr.bf16.gmra.mxu0 %v165
    %v201 = vpop.f32.mrf.mxu0
    %v202 = vadd.f32 %v126, %v201
    %v203 = vpop.f32.mrf.mxu0
    %v204 = vadd.f32 %v130, %v203
    %v205 = vpop.f32.mrf.mxu0
    %v206 = vpop.f32.mrf.mxu0
    %207 = vdwg.mxu0
    %vm208 = vcmp.ge.f32.partialorder %v202, 0.0
    %vm209 = vcmp.ge.f32.partialorder %v204, 0.0
    %v210 = vmul.f32 %v202, 0.2
    %v211 = vmul.f32 %v204, 0.2
    %v212 = vsel %vm208, %v202, %v210
    %v213 = vsel %vm209, %v204, %v211
    %v214 = vpack.c.bf16 %v212, %v212
    %v215 = vpack.c.bf16 %v213, %v213
    %v217 = vlaneseq
    %v218 = vshrl.u32 %v217, 7
    %v219 = vsub.s32 0, %v218
    %v220 = vrot.slane %v94, %v219
    %v221 = vlaneseq
    %v222 = vshrl.u32 %v221, 7
    %v223 = vsub.s32 1, %v222
    %v224 = vrot.slane %v94, %v223
    %v245 = vunpack.c.l.b16 %v96
    %v246 = vunpack.c.h.b16 %v96
    %v247 = vunpack.c.l.b16 %v97
    %v248 = vunpack.c.h.b16 %v97
    %v249 = vunpack.c.l.b16 %v98
    %v250 = vunpack.c.h.b16 %v98
    %v251 = vunpack.c.l.b16 %v99
    %v252 = vunpack.c.h.b16 %v99
    %v253 = vunpack.c.l.b16 %v100
    %v254 = vunpack.c.h.b16 %v100
    %v255 = vunpack.c.l.b16 %v101
    %v256 = vunpack.c.h.b16 %v101
    %v257 = vunpack.c.l.b16 %v102
    %v258 = vunpack.c.h.b16 %v102
    %v259 = vunpack.c.l.b16 %v103
    %v260 = vunpack.c.h.b16 %v103
    %v261 = vunpack.c.l.b16 %v104
    %v262 = vunpack.c.h.b16 %v104
    %v263 = vunpack.c.l.b16 %v105
    %v264 = vunpack.c.h.b16 %v105
    %v265 = vunpack.c.l.b16 %v106
    %v266 = vunpack.c.h.b16 %v106
    %v267 = vunpack.c.l.b16 %v107
    %v268 = vunpack.c.h.b16 %v107
    %v269 = vunpack.c.l.b16 %v108
    %v270 = vunpack.c.h.b16 %v108
    %v271 = vunpack.c.l.b16 %v109
    %v272 = vunpack.c.h.b16 %v109
    %v273 = vunpack.c.l.b16 %v110
    %v274 = vunpack.c.h.b16 %v110
    %v275 = vunpack.c.l.b16 %v111
    %v276 = vunpack.c.h.b16 %v111
    %v277 = vunpack.c.l.b16 %v112
    %v278 = vunpack.c.h.b16 %v112
    %v279 = vunpack.c.l.b16 %v113
    %v280 = vunpack.c.h.b16 %v113
    %v281 = vpack.c.b16 %v247, %v245
    %v282 = vpack.c.b16 %v248, %v246
    %v283 = vpack.c.b16 %v251, %v249
    %v284 = vpack.c.b16 %v252, %v250
    %v285 = vpack.c.b16 %v255, %v253
    %v286 = vpack.c.b16 %v256, %v254
    %v287 = vpack.c.b16 %v259, %v257
    %v288 = vpack.c.b16 %v260, %v258
    %v289 = vpack.c.b16 %v263, %v261
    %v290 = vpack.c.b16 %v264, %v262
    %v291 = vpack.c.b16 %v267, %v265
    %v292 = vpack.c.b16 %v268, %v266
    %v293 = vpack.c.b16 %v271, %v269
    %v294 = vpack.c.b16 %v272, %v270
    %v295 = vpack.c.b16 %v275, %v273
    %v296 = vpack.c.b16 %v276, %v274
    %v297 = vpack.c.b16 %v279, %v277
    %v298 = vpack.c.b16 %v280, %v278
    %vm317 = vcmask 130048
    %v319 = vsel %vm317, %v215, 0
    %321 = vmatprep.subr.bf16.mxu0 %v296
    %322 = vmatpush1.bf16.msra.mxu0 %v295
    %323 = vmatprep.subr.bf16.mxu0 %v294
    %324 = vmatpush1.bf16.msra.mxu0 %v293
    %325 = vmatprep.subr.bf16.mxu0 %v292
    %326 = vmatpush1.bf16.msra.mxu0 %v291
    %327 = vmatprep.subr.bf16.mxu0 %v290
    %328 = vmatpush1.bf16.msra.mxu0 %v289
    %329 = vmatprep.subr.bf16.mxu0 %v288
    %330 = vmatpush1.bf16.msra.mxu0 %v287
    %331 = vmatprep.subr.bf16.mxu0 %v286
    %332 = vmatpush1.bf16.msra.mxu0 %v285
    %333 = vmatprep.subr.bf16.mxu0 %v284
    %334 = vmatpush1.bf16.msra.mxu0 %v283
    %335 = vmatprep.subr.bf16.mxu0 %v282
    %336 = vmatpush1.bf16.msra.mxu0 %v281
    %337 = vmatprep.subr.bf16.mxu0 0
    %338 = vmatpush2.bf16.msra.mxu0 0
    %339 = vmatprep.subr.bf16.mxu0 0
    %340 = vmatpush2.bf16.msra.mxu0 0
    %341 = vmatprep.subr.bf16.mxu0 0
    %342 = vmatpush2.bf16.msra.mxu0 0
    %343 = vmatprep.subr.bf16.mxu0 0
    %344 = vmatpush2.bf16.msra.mxu0 0
    %345 = vmatprep.subr.bf16.mxu0 0
    %346 = vmatpush2.bf16.msra.mxu0 0
    %347 = vmatprep.subr.bf16.mxu0 0
    %348 = vmatpush2.bf16.msra.mxu0 0
    %349 = vmatprep.subr.bf16.mxu0 0
    %350 = vmatpush2.bf16.msra.mxu0 0
    %351 = vmatprep.subr.bf16.mxu0 %v298
    %352 = vmatpush2.bf16.msra.mxu0 %v297
    %353 = vmatprep.mubr.bf16.mxu0 %v319
    %354 = vmatmul.mubr.bf16.gmra.mxu0 %v214
    %v355 = vpop.f32.mrf.mxu0
    %v356 = vadd.f32 %v220, %v355
    %v357 = vpop.f32.mrf.mxu0
    %v358 = vadd.f32 %v224, %v357
    %v359 = vpop.f32.mrf.mxu0
    %v360 = vpop.f32.mrf.mxu0
    %361 = vdwg.mxu0
    %vm362 = vcmp.ge.f32.partialorder %v356, 0.0
    %vm363 = vcmp.ge.f32.partialorder %v358, 0.0
    %v364 = vmul.f32 %v356, 0.2
    %v365 = vmul.f32 %v358, 0.2
    %v366 = vsel %vm362, %v356, %v364
    %v367 = vsel %vm363, %v358, %v365
    %v368 = vpack.c.bf16 %v366, %v366
    %v369 = vpack.c.bf16 %v367, %v367
    %v370 = vld [vmem:[#allocation6] sm:$0xff]
    %v371 = vld [vmem:[#allocation6 + $0x8] sm:$0xff]
    %v372 = vld [vmem:[#allocation6 + $0x10] sm:$0xff]
    %v373 = vld [vmem:[#allocation6 + $0x18] sm:$0xff]
    %v374 = vld [vmem:[#allocation6 + $0x20] sm:$0xff]
    %v375 = vld [vmem:[#allocation6 + $0x28] sm:$0xff]
    %v376 = vld [vmem:[#allocation6 + $0x30] sm:$0xff]
    %v377 = vld [vmem:[#allocation6 + $0x38] sm:$0xff]
    %v378 = vld [vmem:[#allocation6 + $0x40] sm:$0xff]
    %v379 = vld [vmem:[#allocation6 + $0x48] sm:$0xff]
    %v380 = vld [vmem:[#allocation6 + $0x50] sm:$0xff]
    %v381 = vld [vmem:[#allocation6 + $0x58] sm:$0xff]
    %v382 = vld [vmem:[#allocation6 + $0x60] sm:$0xff]
    %v383 = vld [vmem:[#allocation6 + $0x68] sm:$0xff]
    %v384 = vld [vmem:[#allocation6 + $0x70] sm:$0xff]
    %v385 = vld [vmem:[#allocation6 + $0x78] sm:$0xff]
    %v386 = vld [vmem:[#allocation6 + $0x80] sm:$0xff]
    %v387 = vld [vmem:[#allocation6 + $0x88] sm:$0xff]
    %v388 = vld [vmem:[#allocation6 + $0x90] sm:$0xff]
    %v389 = vld [vmem:[#allocation6 + $0x98] sm:$0xff]
    %v390 = vld [vmem:[#allocation6 + $0xa0] sm:$0xff]
    %v391 = vld [vmem:[#allocation6 + $0xa8] sm:$0xff]
    %v392 = vld [vmem:[#allocation6 + $0xb0] sm:$0xff]
    %v393 = vld [vmem:[#allocation6 + $0xb8] sm:$0xff]
    %v394 = vld [vmem:[#allocation6 + $0xc0] sm:$0xff]
    %v395 = vld [vmem:[#allocation6 + $0xc8] sm:$0xff]
    %v396 = vld [vmem:[#allocation6 + $0xd0] sm:$0xff]
    %v397 = vld [vmem:[#allocation6 + $0xd8] sm:$0xff]
    %v398 = vld [vmem:[#allocation6 + $0xe0] sm:$0xff]
    %v399 = vld [vmem:[#allocation6 + $0xe8] sm:$0xff]
    %v400 = vld [vmem:[#allocation6 + $0xf0] sm:$0xff]
    %v401 = vld [vmem:[#allocation6 + $0xf8] sm:$0xff]
    %v402 = vld [vmem:[#allocation6 + $0x100] sm:$0xff]
    %v403 = vld [vmem:[#allocation6 + $0x108] sm:$0xff]
    %v404 = vld [vmem:[#allocation6 + $0x110] sm:$0xff]
    %v405 = vld [vmem:[#allocation6 + $0x118] sm:$0xff]
    %v406 = vld [vmem:[#allocation6 + $0x120] sm:$0xff]
    %v407 = vld [vmem:[#allocation6 + $0x128] sm:$0xff]
    %v408 = vld [vmem:[#allocation6 + $0x130] sm:$0xff]
    %v409 = vld [vmem:[#allocation6 + $0x138] sm:$0xff]
    %v410 = vld [vmem:[#allocation6 + $0x140] sm:$0xff]
    %v411 = vld [vmem:[#allocation6 + $0x148] sm:$0xff]
    %v412 = vld [vmem:[#allocation6 + $0x150] sm:$0xff]
    %v413 = vld [vmem:[#allocation6 + $0x158] sm:$0xff]
    %v414 = vld [vmem:[#allocation6 + $0x160] sm:$0xff]
    %v415 = vld [vmem:[#allocation6 + $0x168] sm:$0xff]
    %v416 = vld [vmem:[#allocation6 + $0x170] sm:$0xff]
    %v417 = vld [vmem:[#allocation6 + $0x178] sm:$0xff]
    %v418 = vld [vmem:[#allocation6 + $0x180] sm:$0xff]
    %v419 = vld [vmem:[#allocation6 + $0x188] sm:$0xff]
    %v420 = vld [vmem:[#allocation6 + $0x190] sm:$0xff]
    %v421 = vld [vmem:[#allocation6 + $0x198] sm:$0xff]
    %v422 = vld [vmem:[#allocation6 + $0x1a0] sm:$0xff]
    %v423 = vld [vmem:[#allocation6 + $0x1a8] sm:$0xff]
    %v424 = vld [vmem:[#allocation6 + $0x1b0] sm:$0xff]
    %v425 = vld [vmem:[#allocation6 + $0x1b8] sm:$0xff]
    %v426 = vld [vmem:[#allocation6 + $0x1c0] sm:$0xff]
    %v427 = vld [vmem:[#allocation6 + $0x1c8] sm:$0xff]
    %v428 = vld [vmem:[#allocation6 + $0x1d0] sm:$0xff]
    %v429 = vld [vmem:[#allocation6 + $0x1d8] sm:$0xff]
    %v430 = vld [vmem:[#allocation6 + $0x1e0] sm:$0xff]
    %v431 = vld [vmem:[#allocation6 + $0x1e8] sm:$0xff]
    %v432 = vld [vmem:[#allocation6 + $0x1f0] sm:$0xff]
    %v433 = vld [vmem:[#allocation6 + $0x1f8] sm:$0xff]
    %v434 = vld [vmem:[#allocation6 + $0x200] sm:$0xff]
    %v435 = vld [vmem:[#allocation6 + $0x208] sm:$0xff]
    %v436 = vld [vmem:[#allocation6 + $0x210] sm:$0xff]
    %v437 = vld [vmem:[#allocation6 + $0x218] sm:$0xff]
    %v438 = vld [vmem:[#allocation6 + $0x220] sm:$0xff]
    %v439 = vld [vmem:[#allocation6 + $0x228] sm:$0xff]
    %v440 = vld [vmem:[#allocation6 + $0x230] sm:$0xff]
    %v441 = vld [vmem:[#allocation6 + $0x238] sm:$0xff]
    %v442 = vld [vmem:[#allocation6 + $0x240] sm:$0xff]
    %v443 = vld [vmem:[#allocation6 + $0x248] sm:$0xff]
    %v444 = vld [vmem:[#allocation6 + $0x250] sm:$0xff]
    %v445 = vld [vmem:[#allocation6 + $0x258] sm:$0xff]
    %v446 = vld [vmem:[#allocation6 + $0x260] sm:$0xff]
    %v447 = vld [vmem:[#allocation6 + $0x268] sm:$0xff]
    %v448 = vld [vmem:[#allocation6 + $0x270] sm:$0xff]
    %v449 = vld [vmem:[#allocation6 + $0x278] sm:$0xff]
    %v450 = vld [vmem:[#allocation6 + $0x280] sm:$0xff]
    %v451 = vld [vmem:[#allocation6 + $0x288] sm:$0xff]
    %v452 = vld [vmem:[#allocation6 + $0x290] sm:$0xff]
    %v453 = vld [vmem:[#allocation6 + $0x298] sm:$0xff]
    %v454 = vld [vmem:[#allocation6 + $0x2a0] sm:$0xff]
    %v455 = vld [vmem:[#allocation6 + $0x2a8] sm:$0xff]
    %v456 = vld [vmem:[#allocation6 + $0x2b0] sm:$0xff]
    %v457 = vld [vmem:[#allocation6 + $0x2b8] sm:$0xff]
    %v458 = vld [vmem:[#allocation6 + $0x2c0] sm:$0xff]
    %v459 = vld [vmem:[#allocation6 + $0x2c8] sm:$0xff]
    %v460 = vld [vmem:[#allocation6 + $0x2d0] sm:$0xff]
    %v461 = vld [vmem:[#allocation6 + $0x2d8] sm:$0xff]
    %v462 = vld [vmem:[#allocation6 + $0x2e0] sm:$0xff]
    %v463 = vld [vmem:[#allocation6 + $0x2e8] sm:$0xff]
    %v464 = vld [vmem:[#allocation6 + $0x2f0] sm:$0xff]
    %v465 = vld [vmem:[#allocation6 + $0x2f8] sm:$0xff]
    %v467 = vlaneseq
    %v468 = vshrl.u32 %v467, 7
    %v469 = vsub.s32 0, %v468
    %v470 = vrot.slane %v90, %v469
    %v471 = vlaneseq
    %v472 = vshrl.u32 %v471, 7
    %v473 = vsub.s32 1, %v472
    %v474 = vrot.slane %v90, %v473
    %v475 = vlaneseq
    %v476 = vshrl.u32 %v475, 7
    %v477 = vsub.s32 2, %v476
    %v478 = vrot.slane %v90, %v477
    %v479 = vlaneseq
    %v480 = vshrl.u32 %v479, 7
    %v481 = vsub.s32 3, %v480
    %v482 = vrot.slane %v90, %v481
    %v483 = vlaneseq
    %v484 = vshrl.u32 %v483, 7
    %v485 = vsub.s32 4, %v484
    %v486 = vrot.slane %v90, %v485
    %v487 = vlaneseq
    %v488 = vshrl.u32 %v487, 7
    %v489 = vsub.s32 5, %v488
    %v490 = vrot.slane %v90, %v489
    %v491 = vlaneseq
    %v492 = vshrl.u32 %v491, 7
    %v493 = vsub.s32 6, %v492
    %v494 = vrot.slane %v90, %v493
    %v495 = vlaneseq
    %v496 = vshrl.u32 %v495, 7
    %v497 = vsub.s32 7, %v496
    %v498 = vrot.slane %v90, %v497
    %v603 = vunpack.c.l.b16 %v370
    %v604 = vunpack.c.h.b16 %v370
    %v605 = vunpack.c.l.b16 %v371
    %v606 = vunpack.c.h.b16 %v371
    %v607 = vunpack.c.l.b16 %v372
    %v608 = vunpack.c.h.b16 %v372
    %v609 = vunpack.c.l.b16 %v373
    %v610 = vunpack.c.h.b16 %v373
    %v611 = vunpack.c.l.b16 %v374
    %v612 = vunpack.c.h.b16 %v374
    %v613 = vunpack.c.l.b16 %v375
    %v614 = vunpack.c.h.b16 %v375
    %v615 = vunpack.c.l.b16 %v376
    %v616 = vunpack.c.h.b16 %v376
    %v617 = vunpack.c.l.b16 %v377
    %v618 = vunpack.c.h.b16 %v377
    %v619 = vunpack.c.l.b16 %v378
    %v620 = vunpack.c.h.b16 %v378
    %v621 = vunpack.c.l.b16 %v379
    %v622 = vunpack.c.h.b16 %v379
    %v623 = vunpack.c.l.b16 %v380
    %v624 = vunpack.c.h.b16 %v380
    %v625 = vunpack.c.l.b16 %v381
    %v626 = vunpack.c.h.b16 %v381
    %v627 = vunpack.c.l.b16 %v382
    %v628 = vunpack.c.h.b16 %v382
    %v629 = vunpack.c.l.b16 %v383
    %v630 = vunpack.c.h.b16 %v383
    %v631 = vunpack.c.l.b16 %v384
    %v632 = vunpack.c.h.b16 %v384
    %v633 = vunpack.c.l.b16 %v385
    %v634 = vunpack.c.h.b16 %v385
    %v635 = vunpack.c.l.b16 %v386
    %v636 = vunpack.c.h.b16 %v386
    %v637 = vunpack.c.l.b16 %v387
    %v638 = vunpack.c.h.b16 %v387
    %v639 = vunpack.c.l.b16 %v388
    %v640 = vunpack.c.h.b16 %v388
    %v641 = vunpack.c.l.b16 %v389
    %v642 = vunpack.c.h.b16 %v389
    %v643 = vunpack.c.l.b16 %v390
    %v644 = vunpack.c.h.b16 %v390
    %v645 = vunpack.c.l.b16 %v391
    %v646 = vunpack.c.h.b16 %v391
    %v647 = vunpack.c.l.b16 %v392
    %v648 = vunpack.c.h.b16 %v392
    %v649 = vunpack.c.l.b16 %v393
    %v650 = vunpack.c.h.b16 %v393
    %v651 = vunpack.c.l.b16 %v394
    %v652 = vunpack.c.h.b16 %v394
    %v653 = vunpack.c.l.b16 %v395
    %v654 = vunpack.c.h.b16 %v395
    %v655 = vunpack.c.l.b16 %v396
    %v656 = vunpack.c.h.b16 %v396
    %v657 = vunpack.c.l.b16 %v397
    %v658 = vunpack.c.h.b16 %v397
    %v659 = vunpack.c.l.b16 %v398
    %v660 = vunpack.c.h.b16 %v398
    %v661 = vunpack.c.l.b16 %v399
    %v662 = vunpack.c.h.b16 %v399
    %v663 = vunpack.c.l.b16 %v400
    %v664 = vunpack.c.h.b16 %v400
    %v665 = vunpack.c.l.b16 %v401
    %v666 = vunpack.c.h.b16 %v401
    %v667 = vunpack.c.l.b16 %v402
    %v668 = vunpack.c.h.b16 %v402
    %v669 = vunpack.c.l.b16 %v403
    %v670 = vunpack.c.h.b16 %v403
    %v671 = vunpack.c.l.b16 %v404
    %v672 = vunpack.c.h.b16 %v404
    %v673 = vunpack.c.l.b16 %v405
    %v674 = vunpack.c.h.b16 %v405
    %v675 = vunpack.c.l.b16 %v406
    %v676 = vunpack.c.h.b16 %v406
    %v677 = vunpack.c.l.b16 %v407
    %v678 = vunpack.c.h.b16 %v407
    %v679 = vunpack.c.l.b16 %v408
    %v680 = vunpack.c.h.b16 %v408
    %v681 = vunpack.c.l.b16 %v409
    %v682 = vunpack.c.h.b16 %v409
    %v683 = vunpack.c.l.b16 %v410
    %v684 = vunpack.c.h.b16 %v410
    %v685 = vunpack.c.l.b16 %v411
    %v686 = vunpack.c.h.b16 %v411
    %v687 = vunpack.c.l.b16 %v412
    %v688 = vunpack.c.h.b16 %v412
    %v689 = vunpack.c.l.b16 %v413
    %v690 = vunpack.c.h.b16 %v413
    %v691 = vunpack.c.l.b16 %v414
    %v692 = vunpack.c.h.b16 %v414
    %v693 = vunpack.c.l.b16 %v415
    %v694 = vunpack.c.h.b16 %v415
    %v695 = vunpack.c.l.b16 %v416
    %v696 = vunpack.c.h.b16 %v416
    %v697 = vunpack.c.l.b16 %v417
    %v698 = vunpack.c.h.b16 %v417
    %v699 = vunpack.c.l.b16 %v418
    %v700 = vunpack.c.h.b16 %v418
    %v701 = vunpack.c.l.b16 %v419
    %v702 = vunpack.c.h.b16 %v419
    %v703 = vunpack.c.l.b16 %v420
    %v704 = vunpack.c.h.b16 %v420
    %v705 = vunpack.c.l.b16 %v421
    %v706 = vunpack.c.h.b16 %v421
    %v707 = vunpack.c.l.b16 %v422
    %v708 = vunpack.c.h.b16 %v422
    %v709 = vunpack.c.l.b16 %v423
    %v710 = vunpack.c.h.b16 %v423
    %v711 = vunpack.c.l.b16 %v424
    %v712 = vunpack.c.h.b16 %v424
    %v713 = vunpack.c.l.b16 %v425
    %v714 = vunpack.c.h.b16 %v425
    %v715 = vunpack.c.l.b16 %v426
    %v716 = vunpack.c.h.b16 %v426
    %v717 = vunpack.c.l.b16 %v427
    %v718 = vunpack.c.h.b16 %v427
    %v719 = vunpack.c.l.b16 %v428
    %v720 = vunpack.c.h.b16 %v428
    %v721 = vunpack.c.l.b16 %v429
    %v722 = vunpack.c.h.b16 %v429
    %v723 = vunpack.c.l.b16 %v430
    %v724 = vunpack.c.h.b16 %v430
    %v725 = vunpack.c.l.b16 %v431
    %v726 = vunpack.c.h.b16 %v431
    %v727 = vunpack.c.l.b16 %v432
    %v728 = vunpack.c.h.b16 %v432
    %v729 = vunpack.c.l.b16 %v433
    %v730 = vunpack.c.h.b16 %v433
    %v731 = vunpack.c.l.b16 %v434
    %v732 = vunpack.c.h.b16 %v434
    %v733 = vunpack.c.l.b16 %v435
    %v734 = vunpack.c.h.b16 %v435
    %v735 = vunpack.c.l.b16 %v436
    %v736 = vunpack.c.h.b16 %v436
    %v737 = vunpack.c.l.b16 %v437
    %v738 = vunpack.c.h.b16 %v437
    %v739 = vunpack.c.l.b16 %v438
    %v740 = vunpack.c.h.b16 %v438
    %v741 = vunpack.c.l.b16 %v439
    %v742 = vunpack.c.h.b16 %v439
    %v743 = vunpack.c.l.b16 %v440
    %v744 = vunpack.c.h.b16 %v440
    %v745 = vunpack.c.l.b16 %v441
    %v746 = vunpack.c.h.b16 %v441
    %v747 = vunpack.c.l.b16 %v442
    %v748 = vunpack.c.h.b16 %v442
    %v749 = vunpack.c.l.b16 %v443
    %v750 = vunpack.c.h.b16 %v443
    %v751 = vunpack.c.l.b16 %v444
    %v752 = vunpack.c.h.b16 %v444
    %v753 = vunpack.c.l.b16 %v445
    %v754 = vunpack.c.h.b16 %v445
    %v755 = vunpack.c.l.b16 %v446
    %v756 = vunpack.c.h.b16 %v446
    %v757 = vunpack.c.l.b16 %v447
    %v758 = vunpack.c.h.b16 %v447
    %v759 = vunpack.c.l.b16 %v448
    %v760 = vunpack.c.h.b16 %v448
    %v761 = vunpack.c.l.b16 %v449
    %v762 = vunpack.c.h.b16 %v449
    %v763 = vunpack.c.l.b16 %v450
    %v764 = vunpack.c.h.b16 %v450
    %v765 = vunpack.c.l.b16 %v451
    %v766 = vunpack.c.h.b16 %v451
    %v767 = vunpack.c.l.b16 %v452
    %v768 = vunpack.c.h.b16 %v452
    %v769 = vunpack.c.l.b16 %v453
    %v770 = vunpack.c.h.b16 %v453
    %v771 = vunpack.c.l.b16 %v454
    %v772 = vunpack.c.h.b16 %v454
    %v773 = vunpack.c.l.b16 %v455
    %v774 = vunpack.c.h.b16 %v455
    %v775 = vunpack.c.l.b16 %v456
    %v776 = vunpack.c.h.b16 %v456
    %v777 = vunpack.c.l.b16 %v457
    %v778 = vunpack.c.h.b16 %v457
    %v779 = vunpack.c.l.b16 %v458
    %v780 = vunpack.c.h.b16 %v458
    %v781 = vunpack.c.l.b16 %v459
    %v782 = vunpack.c.h.b16 %v459
    %v783 = vunpack.c.l.b16 %v460
    %v784 = vunpack.c.h.b16 %v460
    %v785 = vunpack.c.l.b16 %v461
    %v786 = vunpack.c.h.b16 %v461
    %v787 = vunpack.c.l.b16 %v462
    %v788 = vunpack.c.h.b16 %v462
    %v789 = vunpack.c.l.b16 %v463
    %v790 = vunpack.c.h.b16 %v463
    %v791 = vunpack.c.l.b16 %v464
    %v792 = vunpack.c.h.b16 %v464
    %v793 = vunpack.c.l.b16 %v465
    %v794 = vunpack.c.h.b16 %v465
    %v795 = vpack.c.b16 %v611, %v603
    %v796 = vpack.c.b16 %v612, %v604
    %v797 = vpack.c.b16 %v613, %v605
    %v798 = vpack.c.b16 %v614, %v606
    %v799 = vpack.c.b16 %v615, %v607
    %v800 = vpack.c.b16 %v616, %v608
    %v801 = vpack.c.b16 %v617, %v609
    %v802 = vpack.c.b16 %v618, %v610
    %v803 = vpack.c.b16 %v627, %v619
    %v804 = vpack.c.b16 %v628, %v620
    %v805 = vpack.c.b16 %v629, %v621
    %v806 = vpack.c.b16 %v630, %v622
    %v807 = vpack.c.b16 %v631, %v623
    %v808 = vpack.c.b16 %v632, %v624
    %v809 = vpack.c.b16 %v633, %v625
    %v810 = vpack.c.b16 %v634, %v626
    %v811 = vpack.c.b16 %v643, %v635
    %v812 = vpack.c.b16 %v644, %v636
    %v813 = vpack.c.b16 %v645, %v637
    %v814 = vpack.c.b16 %v646, %v638
    %v815 = vpack.c.b16 %v647, %v639
    %v816 = vpack.c.b16 %v648, %v640
    %v817 = vpack.c.b16 %v649, %v641
    %v818 = vpack.c.b16 %v650, %v642
    %v819 = vpack.c.b16 %v659, %v651
    %v820 = vpack.c.b16 %v660, %v652
    %v821 = vpack.c.b16 %v661, %v653
    %v822 = vpack.c.b16 %v662, %v654
    %v823 = vpack.c.b16 %v663, %v655
    %v824 = vpack.c.b16 %v664, %v656
    %v825 = vpack.c.b16 %v665, %v657
    %v826 = vpack.c.b16 %v666, %v658
    %v827 = vpack.c.b16 %v675, %v667
    %v828 = vpack.c.b16 %v676, %v668
    %v829 = vpack.c.b16 %v677, %v669
    %v830 = vpack.c.b16 %v678, %v670
    %v831 = vpack.c.b16 %v679, %v671
    %v832 = vpack.c.b16 %v680, %v672
    %v833 = vpack.c.b16 %v681, %v673
    %v834 = vpack.c.b16 %v682, %v674
    %v835 = vpack.c.b16 %v691, %v683
    %v836 = vpack.c.b16 %v692, %v684
    %v837 = vpack.c.b16 %v693, %v685
    %v838 = vpack.c.b16 %v694, %v686
    %v839 = vpack.c.b16 %v695, %v687
    %v840 = vpack.c.b16 %v696, %v688
    %v841 = vpack.c.b16 %v697, %v689
    %v842 = vpack.c.b16 %v698, %v690
    %v843 = vpack.c.b16 %v707, %v699
    %v844 = vpack.c.b16 %v708, %v700
    %v845 = vpack.c.b16 %v709, %v701
    %v846 = vpack.c.b16 %v710, %v702
    %v847 = vpack.c.b16 %v711, %v703
    %v848 = vpack.c.b16 %v712, %v704
    %v849 = vpack.c.b16 %v713, %v705
    %v850 = vpack.c.b16 %v714, %v706
    %v851 = vpack.c.b16 %v723, %v715
    %v852 = vpack.c.b16 %v724, %v716
    %v853 = vpack.c.b16 %v725, %v717
    %v854 = vpack.c.b16 %v726, %v718
    %v855 = vpack.c.b16 %v727, %v719
    %v856 = vpack.c.b16 %v728, %v720
    %v857 = vpack.c.b16 %v729, %v721
    %v858 = vpack.c.b16 %v730, %v722
    %v859 = vpack.c.b16 %v739, %v731
    %v860 = vpack.c.b16 %v740, %v732
    %v861 = vpack.c.b16 %v741, %v733
    %v862 = vpack.c.b16 %v742, %v734
    %v863 = vpack.c.b16 %v743, %v735
    %v864 = vpack.c.b16 %v744, %v736
    %v865 = vpack.c.b16 %v745, %v737
    %v866 = vpack.c.b16 %v746, %v738
    %v867 = vpack.c.b16 %v755, %v747
    %v868 = vpack.c.b16 %v756, %v748
    %v869 = vpack.c.b16 %v757, %v749
    %v870 = vpack.c.b16 %v758, %v750
    %v871 = vpack.c.b16 %v759, %v751
    %v872 = vpack.c.b16 %v760, %v752
    %v873 = vpack.c.b16 %v761, %v753
    %v874 = vpack.c.b16 %v762, %v754
    %v875 = vpack.c.b16 %v771, %v763
    %v876 = vpack.c.b16 %v772, %v764
    %v877 = vpack.c.b16 %v773, %v765
    %v878 = vpack.c.b16 %v774, %v766
    %v879 = vpack.c.b16 %v775, %v767
    %v880 = vpack.c.b16 %v776, %v768
    %v881 = vpack.c.b16 %v777, %v769
    %v882 = vpack.c.b16 %v778, %v770
    %v883 = vpack.c.b16 %v787, %v779
    %v884 = vpack.c.b16 %v788, %v780
    %v885 = vpack.c.b16 %v789, %v781
    %v886 = vpack.c.b16 %v790, %v782
    %v887 = vpack.c.b16 %v791, %v783
    %v888 = vpack.c.b16 %v792, %v784
    %v889 = vpack.c.b16 %v793, %v785
    %v890 = vpack.c.b16 %v794, %v786
    %vm987 = vcmask 523264
    %v989 = vsel %vm987, %v369, 0
    %991 = vmatprep.subr.bf16.mxu0 %v852
    %992 = vmatpush1.bf16.msra.mxu0 %v851
    %993 = vmatprep.subr.bf16.mxu0 %v844
    %994 = vmatpush1.bf16.msra.mxu0 %v843
    %995 = vmatprep.subr.bf16.mxu0 %v836
    %996 = vmatpush1.bf16.msra.mxu0 %v835
    %997 = vmatprep.subr.bf16.mxu0 %v828
    %998 = vmatpush1.bf16.msra.mxu0 %v827
    %999 = vmatprep.subr.bf16.mxu0 %v820
    %1000 = vmatpush1.bf16.msra.mxu0 %v819
    %1001 = vmatprep.subr.bf16.mxu0 %v812
    %1002 = vmatpush1.bf16.msra.mxu0 %v811
    %1003 = vmatprep.subr.bf16.mxu0 %v804
    %1004 = vmatpush1.bf16.msra.mxu0 %v803
    %1005 = vmatprep.subr.bf16.mxu0 %v796
    %1006 = vmatpush1.bf16.msra.mxu0 %v795
    %1007 = vmatprep.subr.bf16.mxu0 0
    %1008 = vmatpush2.bf16.msra.mxu0 0
    %1009 = vmatprep.subr.bf16.mxu0 0
    %1010 = vmatpush2.bf16.msra.mxu0 0
    %1011 = vmatprep.subr.bf16.mxu0 0
    %1012 = vmatpush2.bf16.msra.mxu0 0
    %1013 = vmatprep.subr.bf16.mxu0 0
    %1014 = vmatpush2.bf16.msra.mxu0 0
    %1015 = vmatprep.subr.bf16.mxu0 %v884
    %1016 = vmatpush2.bf16.msra.mxu0 %v883
    %1017 = vmatprep.subr.bf16.mxu0 %v876
    %1018 = vmatpush2.bf16.msra.mxu0 %v875
    %1019 = vmatprep.subr.bf16.mxu0 %v868
    %1020 = vmatpush2.bf16.msra.mxu0 %v867
    %1021 = vmatprep.subr.bf16.mxu0 %v860
    %1022 = vmatpush2.bf16.msra.mxu0 %v859
    %1023 = vmatprep.mubr.bf16.mxu0 %v989
    %1024 = vmatmul.mubr.bf16.gmra.mxu0 %v368
    %v1025 = vpop.f32.mrf.mxu0
    %v1026 = vadd.f32 %v470, %v1025
    %v1027 = vpop.f32.mrf.mxu0
    %v1028 = vadd.f32 %v474, %v1027
    %v1029 = vpop.f32.mrf.mxu0
    %v1030 = vpop.f32.mrf.mxu0
    %1031 = vdwg.mxu0
    %1032 = vmatprep.subr.bf16.mxu0 %v854
    %1033 = vmatpush1.bf16.msra.mxu0 %v853
    %1034 = vmatprep.subr.bf16.mxu0 %v846
    %1035 = vmatpush1.bf16.msra.mxu0 %v845
    %1036 = vmatprep.subr.bf16.mxu0 %v838
    %1037 = vmatpush1.bf16.msra.mxu0 %v837
    %1038 = vmatprep.subr.bf16.mxu0 %v830
    %1039 = vmatpush1.bf16.msra.mxu0 %v829
    %1040 = vmatprep.subr.bf16.mxu0 %v822
    %1041 = vmatpush1.bf16.msra.mxu0 %v821
    %1042 = vmatprep.subr.bf16.mxu0 %v814
    %1043 = vmatpush1.bf16.msra.mxu0 %v813
    %1044 = vmatprep.subr.bf16.mxu0 %v806
    %1045 = vmatpush1.bf16.msra.mxu0 %v805
    %1046 = vmatprep.subr.bf16.mxu0 %v798
    %1047 = vmatpush1.bf16.msra.mxu0 %v797
    %1048 = vmatprep.subr.bf16.mxu0 0
    %1049 = vmatpush2.bf16.msra.mxu0 0
    %1050 = vmatprep.subr.bf16.mxu0 0
    %1051 = vmatpush2.bf16.msra.mxu0 0
    %1052 = vmatprep.subr.bf16.mxu0 0
    %1053 = vmatpush2.bf16.msra.mxu0 0
    %1054 = vmatprep.subr.bf16.mxu0 0
    %1055 = vmatpush2.bf16.msra.mxu0 0
    %1056 = vmatprep.subr.bf16.mxu0 %v886
    %1057 = vmatpush2.bf16.msra.mxu0 %v885
    %1058 = vmatprep.subr.bf16.mxu0 %v878
    %1059 = vmatpush2.bf16.msra.mxu0 %v877
    %1060 = vmatprep.subr.bf16.mxu0 %v870
    %1061 = vmatpush2.bf16.msra.mxu0 %v869
    %1062 = vmatprep.subr.bf16.mxu0 %v862
    %1063 = vmatpush2.bf16.msra.mxu0 %v861
    %1064 = vmatprep.mubr.bf16.mxu0 %v989
    %1065 = vmatmul.mubr.bf16.gmra.mxu0 %v368
    %v1066 = vpop.f32.mrf.mxu0
    %v1067 = vadd.f32 %v478, %v1066
    %v1068 = vpop.f32.mrf.mxu0
    %v1069 = vadd.f32 %v482, %v1068
    %v1070 = vpop.f32.mrf.mxu0
    %v1071 = vpop.f32.mrf.mxu0
    %1072 = vdwg.mxu0
    %1073 = vmatprep.subr.bf16.mxu0 %v856
    %1074 = vmatpush1.bf16.msra.mxu0 %v855
    %1075 = vmatprep.subr.bf16.mxu0 %v848
    %1076 = vmatpush1.bf16.msra.mxu0 %v847
    %1077 = vmatprep.subr.bf16.mxu0 %v840
    %1078 = vmatpush1.bf16.msra.mxu0 %v839
    %1079 = vmatprep.subr.bf16.mxu0 %v832
    %1080 = vmatpush1.bf16.msra.mxu0 %v831
    %1081 = vmatprep.subr.bf16.mxu0 %v824
    %1082 = vmatpush1.bf16.msra.mxu0 %v823
    %1083 = vmatprep.subr.bf16.mxu0 %v816
    %1084 = vmatpush1.bf16.msra.mxu0 %v815
    %1085 = vmatprep.subr.bf16.mxu0 %v808
    %1086 = vmatpush1.bf16.msra.mxu0 %v807
    %1087 = vmatprep.subr.bf16.mxu0 %v800
    %1088 = vmatpush1.bf16.msra.mxu0 %v799
    %1089 = vmatprep.subr.bf16.mxu0 0
    %1090 = vmatpush2.bf16.msra.mxu0 0
    %1091 = vmatprep.subr.bf16.mxu0 0
    %1092 = vmatpush2.bf16.msra.mxu0 0
    %1093 = vmatprep.subr.bf16.mxu0 0
    %1094 = vmatpush2.bf16.msra.mxu0 0
    %1095 = vmatprep.subr.bf16.mxu0 0
    %1096 = vmatpush2.bf16.msra.mxu0 0
    %1097 = vmatprep.subr.bf16.mxu0 %v888
    %1098 = vmatpush2.bf16.msra.mxu0 %v887
    %1099 = vmatprep.subr.bf16.mxu0 %v880
    %1100 = vmatpush2.bf16.msra.mxu0 %v879
    %1101 = vmatprep.subr.bf16.mxu0 %v872
    %1102 = vmatpush2.bf16.msra.mxu0 %v871
    %1103 = vmatprep.subr.bf16.mxu0 %v864
    %1104 = vmatpush2.bf16.msra.mxu0 %v863
    %1105 = vmatprep.mubr.bf16.mxu0 %v989
    %1106 = vmatmul.mubr.bf16.gmra.mxu0 %v368
    %v1107 = vpop.f32.mrf.mxu0
    %v1108 = vadd.f32 %v486, %v1107
    %v1109 = vpop.f32.mrf.mxu0
    %v1110 = vadd.f32 %v490, %v1109
    %v1111 = vpop.f32.mrf.mxu0
    %v1112 = vpop.f32.mrf.mxu0
    %1113 = vdwg.mxu0
    %1114 = vmatprep.subr.bf16.mxu0 %v858
    %1115 = vmatpush1.bf16.msra.mxu0 %v857
    %1116 = vmatprep.subr.bf16.mxu0 %v850
    %1117 = vmatpush1.bf16.msra.mxu0 %v849
    %1118 = vmatprep.subr.bf16.mxu0 %v842
    %1119 = vmatpush1.bf16.msra.mxu0 %v841
    %1120 = vmatprep.subr.bf16.mxu0 %v834
    %1121 = vmatpush1.bf16.msra.mxu0 %v833
    %1122 = vmatprep.subr.bf16.mxu0 %v826
    %1123 = vmatpush1.bf16.msra.mxu0 %v825
    %1124 = vmatprep.subr.bf16.mxu0 %v818
    %1125 = vmatpush1.bf16.msra.mxu0 %v817
    %1126 = vmatprep.subr.bf16.mxu0 %v810
    %1127 = vmatpush1.bf16.msra.mxu0 %v809
    %1128 = vmatprep.subr.bf16.mxu0 %v802
    %1129 = vmatpush1.bf16.msra.mxu0 %v801
    %1130 = vmatprep.subr.bf16.mxu0 0
    %1131 = vmatpush2.bf16.msra.mxu0 0
    %1132 = vmatprep.subr.bf16.mxu0 0
    %1133 = vmatpush2.bf16.msra.mxu0 0
    %1134 = vmatprep.subr.bf16.mxu0 0
    %1135 = vmatpush2.bf16.msra.mxu0 0
    %1136 = vmatprep.subr.bf16.mxu0 0
    %1137 = vmatpush2.bf16.msra.mxu0 0
    %1138 = vmatprep.subr.bf16.mxu0 %v890
    %1139 = vmatpush2.bf16.msra.mxu0 %v889
    %1140 = vmatprep.subr.bf16.mxu0 %v882
    %1141 = vmatpush2.bf16.msra.mxu0 %v881
    %1142 = vmatprep.subr.bf16.mxu0 %v874
    %1143 = vmatpush2.bf16.msra.mxu0 %v873
    %1144 = vmatprep.subr.bf16.mxu0 %v866
    %1145 = vmatpush2.bf16.msra.mxu0 %v865
    %1146 = vmatprep.mubr.bf16.mxu0 %v989
    %1147 = vmatmul.mubr.bf16.gmra.mxu0 %v368
    %v1148 = vpop.f32.mrf.mxu0
    %v1149 = vadd.f32 %v494, %v1148
    %v1150 = vpop.f32.mrf.mxu0
    %v1151 = vadd.f32 %v498, %v1150
    %v1152 = vpop.f32.mrf.mxu0
    %v1153 = vpop.f32.mrf.mxu0
    %1154 = vdwg.mxu0
    %v1155 = vmax.f32 %v1026, 0.0
    %v1156 = vmax.f32 %v1028, 0.0
    %v1157 = vmax.f32 %v1067, 0.0
    %v1158 = vmax.f32 %v1069, 0.0
    %v1159 = vmax.f32 %v1108, 0.0
    %v1160 = vmax.f32 %v1110, 0.0
    %v1161 = vmax.f32 %v1149, 0.0
    %v1162 = vmax.f32 %v1151, 0.0
    %v1163 = vpack.c.bf16 %v1155, %v1155
    %v1164 = vpack.c.bf16 %v1156, %v1156
    %v1165 = vpack.c.bf16 %v1157, %v1157
    %v1166 = vpack.c.bf16 %v1158, %v1158
    %v1167 = vpack.c.bf16 %v1159, %v1159
    %v1168 = vpack.c.bf16 %v1160, %v1160
    %v1169 = vpack.c.bf16 %v1161, %v1161
    %v1170 = vpack.c.bf16 %v1162, %v1162
    %v1171 = vld [vmem:[#allocation7] sm:$0xff]
    %v1172 = vld [vmem:[#allocation7 + $0x8] sm:$0xff]
    %v1173 = vld [vmem:[#allocation7 + $0x10] sm:$0xff]
    %v1174 = vld [vmem:[#allocation7 + $0x18] sm:$0xff]
    %v1175 = vld [vmem:[#allocation7 + $0x20] sm:$0xff]
    %v1176 = vld [vmem:[#allocation7 + $0x28] sm:$0xff]
    %v1177 = vld [vmem:[#allocation7 + $0x30] sm:$0xff]
    %v1178 = vld [vmem:[#allocation7 + $0x38] sm:$0xff]
    %v1179 = vld [vmem:[#allocation7 + $0x40] sm:$0xff]
    %v1180 = vld [vmem:[#allocation7 + $0x48] sm:$0xff]
    %v1181 = vld [vmem:[#allocation7 + $0x50] sm:$0xff]
    %v1182 = vld [vmem:[#allocation7 + $0x58] sm:$0xff]
    %v1183 = vld [vmem:[#allocation7 + $0x60] sm:$0xff]
    %v1184 = vld [vmem:[#allocation7 + $0x68] sm:$0xff]
    %v1185 = vld [vmem:[#allocation7 + $0x70] sm:$0xff]
    %v1186 = vld [vmem:[#allocation7 + $0x78] sm:$0xff]
    %v1187 = vld [vmem:[#allocation7 + $0x80] sm:$0xff]
    %v1188 = vld [vmem:[#allocation7 + $0x88] sm:$0xff]
    %v1189 = vld [vmem:[#allocation7 + $0x90] sm:$0xff]
    %v1190 = vld [vmem:[#allocation7 + $0x98] sm:$0xff]
    %v1191 = vld [vmem:[#allocation7 + $0xa0] sm:$0xff]
    %v1192 = vld [vmem:[#allocation7 + $0xa8] sm:$0xff]
    %v1193 = vld [vmem:[#allocation7 + $0xb0] sm:$0xff]
    %v1194 = vld [vmem:[#allocation7 + $0xb8] sm:$0xff]
    %v1195 = vld [vmem:[#allocation7 + $0xc0] sm:$0xff]
    %v1196 = vld [vmem:[#allocation7 + $0xc8] sm:$0xff]
    %v1197 = vld [vmem:[#allocation7 + $0xd0] sm:$0xff]
    %v1198 = vld [vmem:[#allocation7 + $0xd8] sm:$0xff]
    %v1199 = vld [vmem:[#allocation7 + $0xe0] sm:$0xff]
    %v1200 = vld [vmem:[#allocation7 + $0xe8] sm:$0xff]
    %v1201 = vld [vmem:[#allocation7 + $0xf0] sm:$0xff]
    %v1202 = vld [vmem:[#allocation7 + $0xf8] sm:$0xff]
    %v1203 = vld [vmem:[#allocation7 + $0x100] sm:$0xff]
    %v1204 = vld [vmem:[#allocation7 + $0x108] sm:$0xff]
    %v1205 = vld [vmem:[#allocation7 + $0x110] sm:$0xff]
    %v1206 = vld [vmem:[#allocation7 + $0x118] sm:$0xff]
    %v1207 = vld [vmem:[#allocation7 + $0x120] sm:$0xff]
    %v1208 = vld [vmem:[#allocation7 + $0x128] sm:$0xff]
    %v1209 = vld [vmem:[#allocation7 + $0x130] sm:$0xff]
    %v1210 = vld [vmem:[#allocation7 + $0x138] sm:$0xff]
    %v1211 = vld [vmem:[#allocation7 + $0x140] sm:$0xff]
    %v1212 = vld [vmem:[#allocation7 + $0x148] sm:$0xff]
    %v1213 = vld [vmem:[#allocation7 + $0x150] sm:$0xff]
    %v1214 = vld [vmem:[#allocation7 + $0x158] sm:$0xff]
    %v1215 = vld [vmem:[#allocation7 + $0x160] sm:$0xff]
    %v1216 = vld [vmem:[#allocation7 + $0x168] sm:$0xff]
    %v1217 = vld [vmem:[#allocation7 + $0x170] sm:$0xff]
    %v1218 = vld [vmem:[#allocation7 + $0x178] sm:$0xff]
    %v1219 = vld [vmem:[#allocation7 + $0x180] sm:$0xff]
    %v1220 = vld [vmem:[#allocation7 + $0x188] sm:$0xff]
    %v1221 = vld [vmem:[#allocation7 + $0x190] sm:$0xff]
    %v1222 = vld [vmem:[#allocation7 + $0x198] sm:$0xff]
    %v1223 = vld [vmem:[#allocation7 + $0x1a0] sm:$0xff]
    %v1224 = vld [vmem:[#allocation7 + $0x1a8] sm:$0xff]
    %v1225 = vld [vmem:[#allocation7 + $0x1b0] sm:$0xff]
    %v1226 = vld [vmem:[#allocation7 + $0x1b8] sm:$0xff]
    %v1227 = vld [vmem:[#allocation7 + $0x1c0] sm:$0xff]
    %v1228 = vld [vmem:[#allocation7 + $0x1c8] sm:$0xff]
    %v1229 = vld [vmem:[#allocation7 + $0x1d0] sm:$0xff]
    %v1230 = vld [vmem:[#allocation7 + $0x1d8] sm:$0xff]
    %v1231 = vld [vmem:[#allocation7 + $0x1e0] sm:$0xff]
    %v1232 = vld [vmem:[#allocation7 + $0x1e8] sm:$0xff]
    %v1233 = vld [vmem:[#allocation7 + $0x1f0] sm:$0xff]
    %v1234 = vld [vmem:[#allocation7 + $0x1f8] sm:$0xff]
    %v1235 = vld [vmem:[#allocation7 + $0x200] sm:$0xff]
    %v1236 = vld [vmem:[#allocation7 + $0x208] sm:$0xff]
    %v1237 = vld [vmem:[#allocation7 + $0x210] sm:$0xff]
    %v1238 = vld [vmem:[#allocation7 + $0x218] sm:$0xff]
    %v1239 = vld [vmem:[#allocation7 + $0x220] sm:$0xff]
    %v1240 = vld [vmem:[#allocation7 + $0x228] sm:$0xff]
    %v1241 = vld [vmem:[#allocation7 + $0x230] sm:$0xff]
    %v1242 = vld [vmem:[#allocation7 + $0x238] sm:$0xff]
    %v1243 = vld [vmem:[#allocation7 + $0x240] sm:$0xff]
    %v1244 = vld [vmem:[#allocation7 + $0x248] sm:$0xff]
    %v1245 = vld [vmem:[#allocation7 + $0x250] sm:$0xff]
    %v1246 = vld [vmem:[#allocation7 + $0x258] sm:$0xff]
    %v1247 = vld [vmem:[#allocation7 + $0x260] sm:$0xff]
    %v1248 = vld [vmem:[#allocation7 + $0x268] sm:$0xff]
    %v1249 = vld [vmem:[#allocation7 + $0x270] sm:$0xff]
    %v1250 = vld [vmem:[#allocation7 + $0x278] sm:$0xff]
    %v1251 = vld [vmem:[#allocation7 + $0x280] sm:$0xff]
    %v1252 = vld [vmem:[#allocation7 + $0x288] sm:$0xff]
    %v1253 = vld [vmem:[#allocation7 + $0x290] sm:$0xff]
    %v1254 = vld [vmem:[#allocation7 + $0x298] sm:$0xff]
    %v1255 = vld [vmem:[#allocation7 + $0x2a0] sm:$0xff]
    %v1256 = vld [vmem:[#allocation7 + $0x2a8] sm:$0xff]
    %v1257 = vld [vmem:[#allocation7 + $0x2b0] sm:$0xff]
    %v1258 = vld [vmem:[#allocation7 + $0x2b8] sm:$0xff]
    %v1259 = vld [vmem:[#allocation7 + $0x2c0] sm:$0xff]
    %v1260 = vld [vmem:[#allocation7 + $0x2c8] sm:$0xff]
    %v1261 = vld [vmem:[#allocation7 + $0x2d0] sm:$0xff]
    %v1262 = vld [vmem:[#allocation7 + $0x2d8] sm:$0xff]
    %v1263 = vld [vmem:[#allocation7 + $0x2e0] sm:$0xff]
    %v1264 = vld [vmem:[#allocation7 + $0x2e8] sm:$0xff]
    %v1265 = vld [vmem:[#allocation7 + $0x2f0] sm:$0xff]
    %v1266 = vld [vmem:[#allocation7 + $0x2f8] sm:$0xff]
    %v1267 = vld [vmem:[#allocation7 + $0x300] sm:$0xff]
    %v1268 = vld [vmem:[#allocation7 + $0x308] sm:$0xff]
    %v1269 = vld [vmem:[#allocation7 + $0x310] sm:$0xff]
    %v1270 = vld [vmem:[#allocation7 + $0x318] sm:$0xff]
    %v1271 = vld [vmem:[#allocation7 + $0x320] sm:$0xff]
    %v1272 = vld [vmem:[#allocation7 + $0x328] sm:$0xff]
    %v1273 = vld [vmem:[#allocation7 + $0x330] sm:$0xff]
    %v1274 = vld [vmem:[#allocation7 + $0x338] sm:$0xff]
    %v1275 = vld [vmem:[#allocation7 + $0x340] sm:$0xff]
    %v1276 = vld [vmem:[#allocation7 + $0x348] sm:$0xff]
    %v1277 = vld [vmem:[#allocation7 + $0x350] sm:$0xff]
    %v1278 = vld [vmem:[#allocation7 + $0x358] sm:$0xff]
    %v1279 = vld [vmem:[#allocation7 + $0x360] sm:$0xff]
    %v1280 = vld [vmem:[#allocation7 + $0x368] sm:$0xff]
    %v1281 = vld [vmem:[#allocation7 + $0x370] sm:$0xff]
    %v1282 = vld [vmem:[#allocation7 + $0x378] sm:$0xff]
    %v1283 = vld [vmem:[#allocation7 + $0x380] sm:$0xff]
    %v1284 = vld [vmem:[#allocation7 + $0x388] sm:$0xff]
    %v1285 = vld [vmem:[#allocation7 + $0x390] sm:$0xff]
    %v1286 = vld [vmem:[#allocation7 + $0x398] sm:$0xff]
    %v1287 = vld [vmem:[#allocation7 + $0x3a0] sm:$0xff]
    %v1288 = vld [vmem:[#allocation7 + $0x3a8] sm:$0xff]
    %v1289 = vld [vmem:[#allocation7 + $0x3b0] sm:$0xff]
    %v1290 = vld [vmem:[#allocation7 + $0x3b8] sm:$0xff]
    %v1291 = vld [vmem:[#allocation7 + $0x3c0] sm:$0xff]
    %v1292 = vld [vmem:[#allocation7 + $0x3c8] sm:$0xff]
    %v1293 = vld [vmem:[#allocation7 + $0x3d0] sm:$0xff]
    %v1294 = vld [vmem:[#allocation7 + $0x3d8] sm:$0xff]
    %v1295 = vld [vmem:[#allocation7 + $0x3e0] sm:$0xff]
    %v1296 = vld [vmem:[#allocation7 + $0x3e8] sm:$0xff]
    %v1297 = vld [vmem:[#allocation7 + $0x3f0] sm:$0xff]
    %v1298 = vld [vmem:[#allocation7 + $0x3f8] sm:$0xff]
    %v1299 = vld [vmem:[#allocation7 + $0x400] sm:$0xff]
    %v1300 = vld [vmem:[#allocation7 + $0x408] sm:$0xff]
    %v1301 = vld [vmem:[#allocation7 + $0x410] sm:$0xff]
    %v1302 = vld [vmem:[#allocation7 + $0x418] sm:$0xff]
    %v1303 = vld [vmem:[#allocation7 + $0x420] sm:$0xff]
    %v1304 = vld [vmem:[#allocation7 + $0x428] sm:$0xff]
    %v1305 = vld [vmem:[#allocation7 + $0x430] sm:$0xff]
    %v1306 = vld [vmem:[#allocation7 + $0x438] sm:$0xff]
    %v1307 = vld [vmem:[#allocation7 + $0x440] sm:$0xff]
    %v1308 = vld [vmem:[#allocation7 + $0x448] sm:$0xff]
    %v1309 = vld [vmem:[#allocation7 + $0x450] sm:$0xff]
    %v1310 = vld [vmem:[#allocation7 + $0x458] sm:$0xff]
    %v1311 = vld [vmem:[#allocation7 + $0x460] sm:$0xff]
    %v1312 = vld [vmem:[#allocation7 + $0x468] sm:$0xff]
    %v1313 = vld [vmem:[#allocation7 + $0x470] sm:$0xff]
    %v1314 = vld [vmem:[#allocation7 + $0x478] sm:$0xff]
    %v1315 = vld [vmem:[#allocation7 + $0x480] sm:$0xff]
    %v1316 = vld [vmem:[#allocation7 + $0x488] sm:$0xff]
    %v1317 = vld [vmem:[#allocation7 + $0x490] sm:$0xff]
    %v1318 = vld [vmem:[#allocation7 + $0x498] sm:$0xff]
    %v1319 = vld [vmem:[#allocation7 + $0x4a0] sm:$0xff]
    %v1320 = vld [vmem:[#allocation7 + $0x4a8] sm:$0xff]
    %v1321 = vld [vmem:[#allocation7 + $0x4b0] sm:$0xff]
    %v1322 = vld [vmem:[#allocation7 + $0x4b8] sm:$0xff]
    %v1323 = vld [vmem:[#allocation7 + $0x4c0] sm:$0xff]
    %v1324 = vld [vmem:[#allocation7 + $0x4c8] sm:$0xff]
    %v1325 = vld [vmem:[#allocation7 + $0x4d0] sm:$0xff]
    %v1326 = vld [vmem:[#allocation7 + $0x4d8] sm:$0xff]
    %v1327 = vld [vmem:[#allocation7 + $0x4e0] sm:$0xff]
    %v1328 = vld [vmem:[#allocation7 + $0x4e8] sm:$0xff]
    %v1329 = vld [vmem:[#allocation7 + $0x4f0] sm:$0xff]
    %v1330 = vld [vmem:[#allocation7 + $0x4f8] sm:$0xff]
    %v1331 = vld [vmem:[#allocation7 + $0x500] sm:$0xff]
    %v1332 = vld [vmem:[#allocation7 + $0x508] sm:$0xff]
    %v1333 = vld [vmem:[#allocation7 + $0x510] sm:$0xff]
    %v1334 = vld [vmem:[#allocation7 + $0x518] sm:$0xff]
    %v1335 = vld [vmem:[#allocation7 + $0x520] sm:$0xff]
    %v1336 = vld [vmem:[#allocation7 + $0x528] sm:$0xff]
    %v1337 = vld [vmem:[#allocation7 + $0x530] sm:$0xff]
    %v1338 = vld [vmem:[#allocation7 + $0x538] sm:$0xff]
    %v1339 = vld [vmem:[#allocation7 + $0x540] sm:$0xff]
    %v1340 = vld [vmem:[#allocation7 + $0x548] sm:$0xff]
    %v1341 = vld [vmem:[#allocation7 + $0x550] sm:$0xff]
    %v1342 = vld [vmem:[#allocation7 + $0x558] sm:$0xff]
    %v1343 = vld [vmem:[#allocation7 + $0x560] sm:$0xff]
    %v1344 = vld [vmem:[#allocation7 + $0x568] sm:$0xff]
    %v1345 = vld [vmem:[#allocation7 + $0x570] sm:$0xff]
    %v1346 = vld [vmem:[#allocation7 + $0x578] sm:$0xff]
    %v1347 = vld [vmem:[#allocation7 + $0x580] sm:$0xff]
    %v1348 = vld [vmem:[#allocation7 + $0x588] sm:$0xff]
    %v1349 = vld [vmem:[#allocation7 + $0x590] sm:$0xff]
    %v1350 = vld [vmem:[#allocation7 + $0x598] sm:$0xff]
    %v1351 = vld [vmem:[#allocation7 + $0x5a0] sm:$0xff]
    %v1352 = vld [vmem:[#allocation7 + $0x5a8] sm:$0xff]
    %v1353 = vld [vmem:[#allocation7 + $0x5b0] sm:$0xff]
    %v1354 = vld [vmem:[#allocation7 + $0x5b8] sm:$0xff]
    %v1355 = vld [vmem:[#allocation7 + $0x5c0] sm:$0xff]
    %v1356 = vld [vmem:[#allocation7 + $0x5c8] sm:$0xff]
    %v1357 = vld [vmem:[#allocation7 + $0x5d0] sm:$0xff]
    %v1358 = vld [vmem:[#allocation7 + $0x5d8] sm:$0xff]
    %v1359 = vld [vmem:[#allocation7 + $0x5e0] sm:$0xff]
    %v1360 = vld [vmem:[#allocation7 + $0x5e8] sm:$0xff]
    %v1361 = vld [vmem:[#allocation7 + $0x5f0] sm:$0xff]
    %v1362 = vld [vmem:[#allocation7 + $0x5f8] sm:$0xff]
    %v1363 = vld [vmem:[#allocation7 + $0x600] sm:$0xff]
    %v1364 = vld [vmem:[#allocation7 + $0x608] sm:$0xff]
    %v1365 = vld [vmem:[#allocation7 + $0x610] sm:$0xff]
    %v1366 = vld [vmem:[#allocation7 + $0x618] sm:$0xff]
    %v1367 = vld [vmem:[#allocation7 + $0x620] sm:$0xff]
    %v1368 = vld [vmem:[#allocation7 + $0x628] sm:$0xff]
    %v1369 = vld [vmem:[#allocation7 + $0x630] sm:$0xff]
    %v1370 = vld [vmem:[#allocation7 + $0x638] sm:$0xff]
    %v1371 = vld [vmem:[#allocation7 + $0x640] sm:$0xff]
    %v1372 = vld [vmem:[#allocation7 + $0x648] sm:$0xff]
    %v1373 = vld [vmem:[#allocation7 + $0x650] sm:$0xff]
    %v1374 = vld [vmem:[#allocation7 + $0x658] sm:$0xff]
    %v1375 = vld [vmem:[#allocation7 + $0x660] sm:$0xff]
    %v1376 = vld [vmem:[#allocation7 + $0x668] sm:$0xff]
    %v1377 = vld [vmem:[#allocation7 + $0x670] sm:$0xff]
    %v1378 = vld [vmem:[#allocation7 + $0x678] sm:$0xff]
    %v1379 = vld [vmem:[#allocation7 + $0x680] sm:$0xff]
    %v1380 = vld [vmem:[#allocation7 + $0x688] sm:$0xff]
    %v1381 = vld [vmem:[#allocation7 + $0x690] sm:$0xff]
    %v1382 = vld [vmem:[#allocation7 + $0x698] sm:$0xff]
    %v1383 = vld [vmem:[#allocation7 + $0x6a0] sm:$0xff]
    %v1384 = vld [vmem:[#allocation7 + $0x6a8] sm:$0xff]
    %v1385 = vld [vmem:[#allocation7 + $0x6b0] sm:$0xff]
    %v1386 = vld [vmem:[#allocation7 + $0x6b8] sm:$0xff]
    %v1387 = vld [vmem:[#allocation7 + $0x6c0] sm:$0xff]
    %v1388 = vld [vmem:[#allocation7 + $0x6c8] sm:$0xff]
    %v1389 = vld [vmem:[#allocation7 + $0x6d0] sm:$0xff]
    %v1390 = vld [vmem:[#allocation7 + $0x6d8] sm:$0xff]
    %v1391 = vld [vmem:[#allocation7 + $0x6e0] sm:$0xff]
    %v1392 = vld [vmem:[#allocation7 + $0x6e8] sm:$0xff]
    %v1393 = vld [vmem:[#allocation7 + $0x6f0] sm:$0xff]
    %v1394 = vld [vmem:[#allocation7 + $0x6f8] sm:$0xff]
    %v1395 = vld [vmem:[#allocation7 + $0x700] sm:$0xff]
    %v1396 = vld [vmem:[#allocation7 + $0x708] sm:$0xff]
    %v1397 = vld [vmem:[#allocation7 + $0x710] sm:$0xff]
    %v1398 = vld [vmem:[#allocation7 + $0x718] sm:$0xff]
    %v1399 = vld [vmem:[#allocation7 + $0x720] sm:$0xff]
    %v1400 = vld [vmem:[#allocation7 + $0x728] sm:$0xff]
    %v1401 = vld [vmem:[#allocation7 + $0x730] sm:$0xff]
    %v1402 = vld [vmem:[#allocation7 + $0x738] sm:$0xff]
    %v1403 = vld [vmem:[#allocation7 + $0x740] sm:$0xff]
    %v1404 = vld [vmem:[#allocation7 + $0x748] sm:$0xff]
    %v1405 = vld [vmem:[#allocation7 + $0x750] sm:$0xff]
    %v1406 = vld [vmem:[#allocation7 + $0x758] sm:$0xff]
    %v1407 = vld [vmem:[#allocation7 + $0x760] sm:$0xff]
    %v1408 = vld [vmem:[#allocation7 + $0x768] sm:$0xff]
    %v1409 = vld [vmem:[#allocation7 + $0x770] sm:$0xff]
    %v1410 = vld [vmem:[#allocation7 + $0x778] sm:$0xff]
    %v1411 = vld [vmem:[#allocation7 + $0x780] sm:$0xff]
    %v1412 = vld [vmem:[#allocation7 + $0x788] sm:$0xff]
    %v1413 = vld [vmem:[#allocation7 + $0x790] sm:$0xff]
    %v1414 = vld [vmem:[#allocation7 + $0x798] sm:$0xff]
    %v1415 = vld [vmem:[#allocation7 + $0x7a0] sm:$0xff]
    %v1416 = vld [vmem:[#allocation7 + $0x7a8] sm:$0xff]
    %v1417 = vld [vmem:[#allocation7 + $0x7b0] sm:$0xff]
    %v1418 = vld [vmem:[#allocation7 + $0x7b8] sm:$0xff]
    %v1419 = vld [vmem:[#allocation7 + $0x7c0] sm:$0xff]
    %v1420 = vld [vmem:[#allocation7 + $0x7c8] sm:$0xff]
    %v1421 = vld [vmem:[#allocation7 + $0x7d0] sm:$0xff]
    %v1422 = vld [vmem:[#allocation7 + $0x7d8] sm:$0xff]
    %v1423 = vld [vmem:[#allocation7 + $0x7e0] sm:$0xff]
    %v1424 = vld [vmem:[#allocation7 + $0x7e8] sm:$0xff]
    %v1425 = vld [vmem:[#allocation7 + $0x7f0] sm:$0xff]
    %v1426 = vld [vmem:[#allocation7 + $0x7f8] sm:$0xff]
    %v1428 = vlaneseq
    %v1429 = vshrl.u32 %v1428, 7
    %v1430 = vsub.s32 0, %v1429
    %v1431 = vrot.slane %v91, %v1430
    %v1432 = vlaneseq
    %v1433 = vshrl.u32 %v1432, 7
    %v1434 = vsub.s32 1, %v1433
    %v1435 = vrot.slane %v91, %v1434
    %v1436 = vlaneseq
    %v1437 = vshrl.u32 %v1436, 7
    %v1438 = vsub.s32 2, %v1437
    %v1439 = vrot.slane %v91, %v1438
    %v1440 = vlaneseq
    %v1441 = vshrl.u32 %v1440, 7
    %v1442 = vsub.s32 3, %v1441
    %v1443 = vrot.slane %v91, %v1442
    %v1704 = vunpack.c.l.b16 %v1171
    %v1705 = vunpack.c.h.b16 %v1171
    %v1706 = vunpack.c.l.b16 %v1172
    %v1707 = vunpack.c.h.b16 %v1172
    %v1708 = vunpack.c.l.b16 %v1173
    %v1709 = vunpack.c.h.b16 %v1173
    %v1710 = vunpack.c.l.b16 %v1174
    %v1711 = vunpack.c.h.b16 %v1174
    %v1712 = vunpack.c.l.b16 %v1175
    %v1713 = vunpack.c.h.b16 %v1175
    %v1714 = vunpack.c.l.b16 %v1176
    %v1715 = vunpack.c.h.b16 %v1176
    %v1716 = vunpack.c.l.b16 %v1177
    %v1717 = vunpack.c.h.b16 %v1177
    %v1718 = vunpack.c.l.b16 %v1178
    %v1719 = vunpack.c.h.b16 %v1178
    %v1720 = vunpack.c.l.b16 %v1179
    %v1721 = vunpack.c.h.b16 %v1179
    %v1722 = vunpack.c.l.b16 %v1180
    %v1723 = vunpack.c.h.b16 %v1180
    %v1724 = vunpack.c.l.b16 %v1181
    %v1725 = vunpack.c.h.b16 %v1181
    %v1726 = vunpack.c.l.b16 %v1182
    %v1727 = vunpack.c.h.b16 %v1182
    %v1728 = vunpack.c.l.b16 %v1183
    %v1729 = vunpack.c.h.b16 %v1183
    %v1730 = vunpack.c.l.b16 %v1184
    %v1731 = vunpack.c.h.b16 %v1184
    %v1732 = vunpack.c.l.b16 %v1185
    %v1733 = vunpack.c.h.b16 %v1185
    %v1734 = vunpack.c.l.b16 %v1186
    %v1735 = vunpack.c.h.b16 %v1186
    %v1736 = vunpack.c.l.b16 %v1187
    %v1737 = vunpack.c.h.b16 %v1187
    %v1738 = vunpack.c.l.b16 %v1188
    %v1739 = vunpack.c.h.b16 %v1188
    %v1740 = vunpack.c.l.b16 %v1189
    %v1741 = vunpack.c.h.b16 %v1189
    %v1742 = vunpack.c.l.b16 %v1190
    %v1743 = vunpack.c.h.b16 %v1190
    %v1744 = vunpack.c.l.b16 %v1191
    %v1745 = vunpack.c.h.b16 %v1191
    %v1746 = vunpack.c.l.b16 %v1192
    %v1747 = vunpack.c.h.b16 %v1192
    %v1748 = vunpack.c.l.b16 %v1193
    %v1749 = vunpack.c.h.b16 %v1193
    %v1750 = vunpack.c.l.b16 %v1194
    %v1751 = vunpack.c.h.b16 %v1194
    %v1752 = vunpack.c.l.b16 %v1195
    %v1753 = vunpack.c.h.b16 %v1195
    %v1754 = vunpack.c.l.b16 %v1196
    %v1755 = vunpack.c.h.b16 %v1196
    %v1756 = vunpack.c.l.b16 %v1197
    %v1757 = vunpack.c.h.b16 %v1197
    %v1758 = vunpack.c.l.b16 %v1198
    %v1759 = vunpack.c.h.b16 %v1198
    %v1760 = vunpack.c.l.b16 %v1199
    %v1761 = vunpack.c.h.b16 %v1199
    %v1762 = vunpack.c.l.b16 %v1200
    %v1763 = vunpack.c.h.b16 %v1200
    %v1764 = vunpack.c.l.b16 %v1201
    %v1765 = vunpack.c.h.b16 %v1201
    %v1766 = vunpack.c.l.b16 %v1202
    %v1767 = vunpack.c.h.b16 %v1202
    %v1768 = vunpack.c.l.b16 %v1203
    %v1769 = vunpack.c.h.b16 %v1203
    %v1770 = vunpack.c.l.b16 %v1204
    %v1771 = vunpack.c.h.b16 %v1204
    %v1772 = vunpack.c.l.b16 %v1205
    %v1773 = vunpack.c.h.b16 %v1205
    %v1774 = vunpack.c.l.b16 %v1206
    %v1775 = vunpack.c.h.b16 %v1206
    %v1776 = vunpack.c.l.b16 %v1207
    %v1777 = vunpack.c.h.b16 %v1207
    %v1778 = vunpack.c.l.b16 %v1208
    %v1779 = vunpack.c.h.b16 %v1208
    %v1780 = vunpack.c.l.b16 %v1209
    %v1781 = vunpack.c.h.b16 %v1209
    %v1782 = vunpack.c.l.b16 %v1210
    %v1783 = vunpack.c.h.b16 %v1210
    %v1784 = vunpack.c.l.b16 %v1211
    %v1785 = vunpack.c.h.b16 %v1211
    %v1786 = vunpack.c.l.b16 %v1212
    %v1787 = vunpack.c.h.b16 %v1212
    %v1788 = vunpack.c.l.b16 %v1213
    %v1789 = vunpack.c.h.b16 %v1213
    %v1790 = vunpack.c.l.b16 %v1214
    %v1791 = vunpack.c.h.b16 %v1214
    %v1792 = vunpack.c.l.b16 %v1215
    %v1793 = vunpack.c.h.b16 %v1215
    %v1794 = vunpack.c.l.b16 %v1216
    %v1795 = vunpack.c.h.b16 %v1216
    %v1796 = vunpack.c.l.b16 %v1217
    %v1797 = vunpack.c.h.b16 %v1217
    %v1798 = vunpack.c.l.b16 %v1218
    %v1799 = vunpack.c.h.b16 %v1218
    %v1800 = vunpack.c.l.b16 %v1219
    %v1801 = vunpack.c.h.b16 %v1219
    %v1802 = vunpack.c.l.b16 %v1220
    %v1803 = vunpack.c.h.b16 %v1220
    %v1804 = vunpack.c.l.b16 %v1221
    %v1805 = vunpack.c.h.b16 %v1221
    %v1806 = vunpack.c.l.b16 %v1222
    %v1807 = vunpack.c.h.b16 %v1222
    %v1808 = vunpack.c.l.b16 %v1223
    %v1809 = vunpack.c.h.b16 %v1223
    %v1810 = vunpack.c.l.b16 %v1224
    %v1811 = vunpack.c.h.b16 %v1224
    %v1812 = vunpack.c.l.b16 %v1225
    %v1813 = vunpack.c.h.b16 %v1225
    %v1814 = vunpack.c.l.b16 %v1226
    %v1815 = vunpack.c.h.b16 %v1226
    %v1816 = vunpack.c.l.b16 %v1227
    %v1817 = vunpack.c.h.b16 %v1227
    %v1818 = vunpack.c.l.b16 %v1228
    %v1819 = vunpack.c.h.b16 %v1228
    %v1820 = vunpack.c.l.b16 %v1229
    %v1821 = vunpack.c.h.b16 %v1229
    %v1822 = vunpack.c.l.b16 %v1230
    %v1823 = vunpack.c.h.b16 %v1230
    %v1824 = vunpack.c.l.b16 %v1231
    %v1825 = vunpack.c.h.b16 %v1231
    %v1826 = vunpack.c.l.b16 %v1232
    %v1827 = vunpack.c.h.b16 %v1232
    %v1828 = vunpack.c.l.b16 %v1233
    %v1829 = vunpack.c.h.b16 %v1233
    %v1830 = vunpack.c.l.b16 %v1234
    %v1831 = vunpack.c.h.b16 %v1234
    %v1832 = vunpack.c.l.b16 %v1235
    %v1833 = vunpack.c.h.b16 %v1235
    %v1834 = vunpack.c.l.b16 %v1236
    %v1835 = vunpack.c.h.b16 %v1236
    %v1836 = vunpack.c.l.b16 %v1237
    %v1837 = vunpack.c.h.b16 %v1237
    %v1838 = vunpack.c.l.b16 %v1238
    %v1839 = vunpack.c.h.b16 %v1238
    %v1840 = vunpack.c.l.b16 %v1239
    %v1841 = vunpack.c.h.b16 %v1239
    %v1842 = vunpack.c.l.b16 %v1240
    %v1843 = vunpack.c.h.b16 %v1240
    %v1844 = vunpack.c.l.b16 %v1241
    %v1845 = vunpack.c.h.b16 %v1241
    %v1846 = vunpack.c.l.b16 %v1242
    %v1847 = vunpack.c.h.b16 %v1242
    %v1848 = vunpack.c.l.b16 %v1243
    %v1849 = vunpack.c.h.b16 %v1243
    %v1850 = vunpack.c.l.b16 %v1244
    %v1851 = vunpack.c.h.b16 %v1244
    %v1852 = vunpack.c.l.b16 %v1245
    %v1853 = vunpack.c.h.b16 %v1245
    %v1854 = vunpack.c.l.b16 %v1246
    %v1855 = vunpack.c.h.b16 %v1246
    %v1856 = vunpack.c.l.b16 %v1247
    %v1857 = vunpack.c.h.b16 %v1247
    %v1858 = vunpack.c.l.b16 %v1248
    %v1859 = vunpack.c.h.b16 %v1248
    %v1860 = vunpack.c.l.b16 %v1249
    %v1861 = vunpack.c.h.b16 %v1249
    %v1862 = vunpack.c.l.b16 %v1250
    %v1863 = vunpack.c.h.b16 %v1250
    %v1864 = vunpack.c.l.b16 %v1251
    %v1865 = vunpack.c.h.b16 %v1251
    %v1866 = vunpack.c.l.b16 %v1252
    %v1867 = vunpack.c.h.b16 %v1252
    %v1868 = vunpack.c.l.b16 %v1253
    %v1869 = vunpack.c.h.b16 %v1253
    %v1870 = vunpack.c.l.b16 %v1254
    %v1871 = vunpack.c.h.b16 %v1254
    %v1872 = vunpack.c.l.b16 %v1255
    %v1873 = vunpack.c.h.b16 %v1255
    %v1874 = vunpack.c.l.b16 %v1256
    %v1875 = vunpack.c.h.b16 %v1256
    %v1876 = vunpack.c.l.b16 %v1257
    %v1877 = vunpack.c.h.b16 %v1257
    %v1878 = vunpack.c.l.b16 %v1258
    %v1879 = vunpack.c.h.b16 %v1258
    %v1880 = vunpack.c.l.b16 %v1259
    %v1881 = vunpack.c.h.b16 %v1259
    %v1882 = vunpack.c.l.b16 %v1260
    %v1883 = vunpack.c.h.b16 %v1260
    %v1884 = vunpack.c.l.b16 %v1261
    %v1885 = vunpack.c.h.b16 %v1261
    %v1886 = vunpack.c.l.b16 %v1262
    %v1887 = vunpack.c.h.b16 %v1262
    %v1888 = vunpack.c.l.b16 %v1263
    %v1889 = vunpack.c.h.b16 %v1263
    %v1890 = vunpack.c.l.b16 %v1264
    %v1891 = vunpack.c.h.b16 %v1264
    %v1892 = vunpack.c.l.b16 %v1265
    %v1893 = vunpack.c.h.b16 %v1265
    %v1894 = vunpack.c.l.b16 %v1266
    %v1895 = vunpack.c.h.b16 %v1266
    %v1896 = vunpack.c.l.b16 %v1267
    %v1897 = vunpack.c.h.b16 %v1267
    %v1898 = vunpack.c.l.b16 %v1268
    %v1899 = vunpack.c.h.b16 %v1268
    %v1900 = vunpack.c.l.b16 %v1269
    %v1901 = vunpack.c.h.b16 %v1269
    %v1902 = vunpack.c.l.b16 %v1270
    %v1903 = vunpack.c.h.b16 %v1270
    %v1904 = vunpack.c.l.b16 %v1271
    %v1905 = vunpack.c.h.b16 %v1271
    %v1906 = vunpack.c.l.b16 %v1272
    %v1907 = vunpack.c.h.b16 %v1272
    %v1908 = vunpack.c.l.b16 %v1273
    %v1909 = vunpack.c.h.b16 %v1273
    %v1910 = vunpack.c.l.b16 %v1274
    %v1911 = vunpack.c.h.b16 %v1274
    %v1912 = vunpack.c.l.b16 %v1275
    %v1913 = vunpack.c.h.b16 %v1275
    %v1914 = vunpack.c.l.b16 %v1276
    %v1915 = vunpack.c.h.b16 %v1276
    %v1916 = vunpack.c.l.b16 %v1277
    %v1917 = vunpack.c.h.b16 %v1277
    %v1918 = vunpack.c.l.b16 %v1278
    %v1919 = vunpack.c.h.b16 %v1278
    %v1920 = vunpack.c.l.b16 %v1279
    %v1921 = vunpack.c.h.b16 %v1279
    %v1922 = vunpack.c.l.b16 %v1280
    %v1923 = vunpack.c.h.b16 %v1280
    %v1924 = vunpack.c.l.b16 %v1281
    %v1925 = vunpack.c.h.b16 %v1281
    %v1926 = vunpack.c.l.b16 %v1282
    %v1927 = vunpack.c.h.b16 %v1282
    %v1928 = vunpack.c.l.b16 %v1283
    %v1929 = vunpack.c.h.b16 %v1283
    %v1930 = vunpack.c.l.b16 %v1284
    %v1931 = vunpack.c.h.b16 %v1284
    %v1932 = vunpack.c.l.b16 %v1285
    %v1933 = vunpack.c.h.b16 %v1285
    %v1934 = vunpack.c.l.b16 %v1286
    %v1935 = vunpack.c.h.b16 %v1286
    %v1936 = vunpack.c.l.b16 %v1287
    %v1937 = vunpack.c.h.b16 %v1287
    %v1938 = vunpack.c.l.b16 %v1288
    %v1939 = vunpack.c.h.b16 %v1288
    %v1940 = vunpack.c.l.b16 %v1289
    %v1941 = vunpack.c.h.b16 %v1289
    %v1942 = vunpack.c.l.b16 %v1290
    %v1943 = vunpack.c.h.b16 %v1290
    %v1944 = vunpack.c.l.b16 %v1291
    %v1945 = vunpack.c.h.b16 %v1291
    %v1946 = vunpack.c.l.b16 %v1292
    %v1947 = vunpack.c.h.b16 %v1292
    %v1948 = vunpack.c.l.b16 %v1293
    %v1949 = vunpack.c.h.b16 %v1293
    %v1950 = vunpack.c.l.b16 %v1294
    %v1951 = vunpack.c.h.b16 %v1294
    %v1952 = vunpack.c.l.b16 %v1295
    %v1953 = vunpack.c.h.b16 %v1295
    %v1954 = vunpack.c.l.b16 %v1296
    %v1955 = vunpack.c.h.b16 %v1296
    %v1956 = vunpack.c.l.b16 %v1297
    %v1957 = vunpack.c.h.b16 %v1297
    %v1958 = vunpack.c.l.b16 %v1298
    %v1959 = vunpack.c.h.b16 %v1298
    %v1960 = vunpack.c.l.b16 %v1299
    %v1961 = vunpack.c.h.b16 %v1299
    %v1962 = vunpack.c.l.b16 %v1300
    %v1963 = vunpack.c.h.b16 %v1300
    %v1964 = vunpack.c.l.b16 %v1301
    %v1965 = vunpack.c.h.b16 %v1301
    %v1966 = vunpack.c.l.b16 %v1302
    %v1967 = vunpack.c.h.b16 %v1302
    %v1968 = vunpack.c.l.b16 %v1303
    %v1969 = vunpack.c.h.b16 %v1303
    %v1970 = vunpack.c.l.b16 %v1304
    %v1971 = vunpack.c.h.b16 %v1304
    %v1972 = vunpack.c.l.b16 %v1305
    %v1973 = vunpack.c.h.b16 %v1305
    %v1974 = vunpack.c.l.b16 %v1306
    %v1975 = vunpack.c.h.b16 %v1306
    %v1976 = vunpack.c.l.b16 %v1307
    %v1977 = vunpack.c.h.b16 %v1307
    %v1978 = vunpack.c.l.b16 %v1308
    %v1979 = vunpack.c.h.b16 %v1308
    %v1980 = vunpack.c.l.b16 %v1309
    %v1981 = vunpack.c.h.b16 %v1309
    %v1982 = vunpack.c.l.b16 %v1310
    %v1983 = vunpack.c.h.b16 %v1310
    %v1984 = vunpack.c.l.b16 %v1311
    %v1985 = vunpack.c.h.b16 %v1311
    %v1986 = vunpack.c.l.b16 %v1312
    %v1987 = vunpack.c.h.b16 %v1312
    %v1988 = vunpack.c.l.b16 %v1313
    %v1989 = vunpack.c.h.b16 %v1313
    %v1990 = vunpack.c.l.b16 %v1314
    %v1991 = vunpack.c.h.b16 %v1314
    %v1992 = vunpack.c.l.b16 %v1315
    %v1993 = vunpack.c.h.b16 %v1315
    %v1994 = vunpack.c.l.b16 %v1316
    %v1995 = vunpack.c.h.b16 %v1316
    %v1996 = vunpack.c.l.b16 %v1317
    %v1997 = vunpack.c.h.b16 %v1317
    %v1998 = vunpack.c.l.b16 %v1318
    %v1999 = vunpack.c.h.b16 %v1318
    %v2000 = vunpack.c.l.b16 %v1319
    %v2001 = vunpack.c.h.b16 %v1319
    %v2002 = vunpack.c.l.b16 %v1320
    %v2003 = vunpack.c.h.b16 %v1320
    %v2004 = vunpack.c.l.b16 %v1321
    %v2005 = vunpack.c.h.b16 %v1321
    %v2006 = vunpack.c.l.b16 %v1322
    %v2007 = vunpack.c.h.b16 %v1322
    %v2008 = vunpack.c.l.b16 %v1323
    %v2009 = vunpack.c.h.b16 %v1323
    %v2010 = vunpack.c.l.b16 %v1324
    %v2011 = vunpack.c.h.b16 %v1324
    %v2012 = vunpack.c.l.b16 %v1325
    %v2013 = vunpack.c.h.b16 %v1325
    %v2014 = vunpack.c.l.b16 %v1326
    %v2015 = vunpack.c.h.b16 %v1326
    %v2016 = vunpack.c.l.b16 %v1327
    %v2017 = vunpack.c.h.b16 %v1327
    %v2018 = vunpack.c.l.b16 %v1328
    %v2019 = vunpack.c.h.b16 %v1328
    %v2020 = vunpack.c.l.b16 %v1329
    %v2021 = vunpack.c.h.b16 %v1329
    %v2022 = vunpack.c.l.b16 %v1330
    %v2023 = vunpack.c.h.b16 %v1330
    %v2024 = vunpack.c.l.b16 %v1331
    %v2025 = vunpack.c.h.b16 %v1331
    %v2026 = vunpack.c.l.b16 %v1332
    %v2027 = vunpack.c.h.b16 %v1332
    %v2028 = vunpack.c.l.b16 %v1333
    %v2029 = vunpack.c.h.b16 %v1333
    %v2030 = vunpack.c.l.b16 %v1334
    %v2031 = vunpack.c.h.b16 %v1334
    %v2032 = vunpack.c.l.b16 %v1335
    %v2033 = vunpack.c.h.b16 %v1335
    %v2034 = vunpack.c.l.b16 %v1336
    %v2035 = vunpack.c.h.b16 %v1336
    %v2036 = vunpack.c.l.b16 %v1337
    %v2037 = vunpack.c.h.b16 %v1337
    %v2038 = vunpack.c.l.b16 %v1338
    %v2039 = vunpack.c.h.b16 %v1338
    %v2040 = vunpack.c.l.b16 %v1339
    %v2041 = vunpack.c.h.b16 %v1339
    %v2042 = vunpack.c.l.b16 %v1340
    %v2043 = vunpack.c.h.b16 %v1340
    %v2044 = vunpack.c.l.b16 %v1341
    %v2045 = vunpack.c.h.b16 %v1341
    %v2046 = vunpack.c.l.b16 %v1342
    %v2047 = vunpack.c.h.b16 %v1342
    %v2048 = vunpack.c.l.b16 %v1343
    %v2049 = vunpack.c.h.b16 %v1343
    %v2050 = vunpack.c.l.b16 %v1344
    %v2051 = vunpack.c.h.b16 %v1344
    %v2052 = vunpack.c.l.b16 %v1345
    %v2053 = vunpack.c.h.b16 %v1345
    %v2054 = vunpack.c.l.b16 %v1346
    %v2055 = vunpack.c.h.b16 %v1346
    %v2056 = vunpack.c.l.b16 %v1347
    %v2057 = vunpack.c.h.b16 %v1347
    %v2058 = vunpack.c.l.b16 %v1348
    %v2059 = vunpack.c.h.b16 %v1348
    %v2060 = vunpack.c.l.b16 %v1349
    %v2061 = vunpack.c.h.b16 %v1349
    %v2062 = vunpack.c.l.b16 %v1350
    %v2063 = vunpack.c.h.b16 %v1350
    %v2064 = vunpack.c.l.b16 %v1351
    %v2065 = vunpack.c.h.b16 %v1351
    %v2066 = vunpack.c.l.b16 %v1352
    %v2067 = vunpack.c.h.b16 %v1352
    %v2068 = vunpack.c.l.b16 %v1353
    %v2069 = vunpack.c.h.b16 %v1353
    %v2070 = vunpack.c.l.b16 %v1354
    %v2071 = vunpack.c.h.b16 %v1354
    %v2072 = vunpack.c.l.b16 %v1355
    %v2073 = vunpack.c.h.b16 %v1355
    %v2074 = vunpack.c.l.b16 %v1356
    %v2075 = vunpack.c.h.b16 %v1356
    %v2076 = vunpack.c.l.b16 %v1357
    %v2077 = vunpack.c.h.b16 %v1357
    %v2078 = vunpack.c.l.b16 %v1358
    %v2079 = vunpack.c.h.b16 %v1358
    %v2080 = vunpack.c.l.b16 %v1359
    %v2081 = vunpack.c.h.b16 %v1359
    %v2082 = vunpack.c.l.b16 %v1360
    %v2083 = vunpack.c.h.b16 %v1360
    %v2084 = vunpack.c.l.b16 %v1361
    %v2085 = vunpack.c.h.b16 %v1361
    %v2086 = vunpack.c.l.b16 %v1362
    %v2087 = vunpack.c.h.b16 %v1362
    %v2088 = vunpack.c.l.b16 %v1363
    %v2089 = vunpack.c.h.b16 %v1363
    %v2090 = vunpack.c.l.b16 %v1364
    %v2091 = vunpack.c.h.b16 %v1364
    %v2092 = vunpack.c.l.b16 %v1365
    %v2093 = vunpack.c.h.b16 %v1365
    %v2094 = vunpack.c.l.b16 %v1366
    %v2095 = vunpack.c.h.b16 %v1366
    %v2096 = vunpack.c.l.b16 %v1367
    %v2097 = vunpack.c.h.b16 %v1367
    %v2098 = vunpack.c.l.b16 %v1368
    %v2099 = vunpack.c.h.b16 %v1368
    %v2100 = vunpack.c.l.b16 %v1369
    %v2101 = vunpack.c.h.b16 %v1369
    %v2102 = vunpack.c.l.b16 %v1370
    %v2103 = vunpack.c.h.b16 %v1370
    %v2104 = vunpack.c.l.b16 %v1371
    %v2105 = vunpack.c.h.b16 %v1371
    %v2106 = vunpack.c.l.b16 %v1372
    %v2107 = vunpack.c.h.b16 %v1372
    %v2108 = vunpack.c.l.b16 %v1373
    %v2109 = vunpack.c.h.b16 %v1373
    %v2110 = vunpack.c.l.b16 %v1374
    %v2111 = vunpack.c.h.b16 %v1374
    %v2112 = vunpack.c.l.b16 %v1375
    %v2113 = vunpack.c.h.b16 %v1375
    %v2114 = vunpack.c.l.b16 %v1376
    %v2115 = vunpack.c.h.b16 %v1376
    %v2116 = vunpack.c.l.b16 %v1377
    %v2117 = vunpack.c.h.b16 %v1377
    %v2118 = vunpack.c.l.b16 %v1378
    %v2119 = vunpack.c.h.b16 %v1378
    %v2120 = vunpack.c.l.b16 %v1379
    %v2121 = vunpack.c.h.b16 %v1379
    %v2122 = vunpack.c.l.b16 %v1380
    %v2123 = vunpack.c.h.b16 %v1380
    %v2124 = vunpack.c.l.b16 %v1381
    %v2125 = vunpack.c.h.b16 %v1381
    %v2126 = vunpack.c.l.b16 %v1382
    %v2127 = vunpack.c.h.b16 %v1382
    %v2128 = vunpack.c.l.b16 %v1383
    %v2129 = vunpack.c.h.b16 %v1383
    %v2130 = vunpack.c.l.b16 %v1384
    %v2131 = vunpack.c.h.b16 %v1384
    %v2132 = vunpack.c.l.b16 %v1385
    %v2133 = vunpack.c.h.b16 %v1385
    %v2134 = vunpack.c.l.b16 %v1386
    %v2135 = vunpack.c.h.b16 %v1386
    %v2136 = vunpack.c.l.b16 %v1387
    %v2137 = vunpack.c.h.b16 %v1387
    %v2138 = vunpack.c.l.b16 %v1388
    %v2139 = vunpack.c.h.b16 %v1388
    %v2140 = vunpack.c.l.b16 %v1389
    %v2141 = vunpack.c.h.b16 %v1389
    %v2142 = vunpack.c.l.b16 %v1390
    %v2143 = vunpack.c.h.b16 %v1390
    %v2144 = vunpack.c.l.b16 %v1391
    %v2145 = vunpack.c.h.b16 %v1391
    %v2146 = vunpack.c.l.b16 %v1392
    %v2147 = vunpack.c.h.b16 %v1392
    %v2148 = vunpack.c.l.b16 %v1393
    %v2149 = vunpack.c.h.b16 %v1393
    %v2150 = vunpack.c.l.b16 %v1394
    %v2151 = vunpack.c.h.b16 %v1394
    %v2152 = vunpack.c.l.b16 %v1395
    %v2153 = vunpack.c.h.b16 %v1395
    %v2154 = vunpack.c.l.b16 %v1396
    %v2155 = vunpack.c.h.b16 %v1396
    %v2156 = vunpack.c.l.b16 %v1397
    %v2157 = vunpack.c.h.b16 %v1397
    %v2158 = vunpack.c.l.b16 %v1398
    %v2159 = vunpack.c.h.b16 %v1398
    %v2160 = vunpack.c.l.b16 %v1399
    %v2161 = vunpack.c.h.b16 %v1399
    %v2162 = vunpack.c.l.b16 %v1400
    %v2163 = vunpack.c.h.b16 %v1400
    %v2164 = vunpack.c.l.b16 %v1401
    %v2165 = vunpack.c.h.b16 %v1401
    %v2166 = vunpack.c.l.b16 %v1402
    %v2167 = vunpack.c.h.b16 %v1402
    %v2168 = vunpack.c.l.b16 %v1403
    %v2169 = vunpack.c.h.b16 %v1403
    %v2170 = vunpack.c.l.b16 %v1404
    %v2171 = vunpack.c.h.b16 %v1404
    %v2172 = vunpack.c.l.b16 %v1405
    %v2173 = vunpack.c.h.b16 %v1405
    %v2174 = vunpack.c.l.b16 %v1406
    %v2175 = vunpack.c.h.b16 %v1406
    %v2176 = vunpack.c.l.b16 %v1407
    %v2177 = vunpack.c.h.b16 %v1407
    %v2178 = vunpack.c.l.b16 %v1408
    %v2179 = vunpack.c.h.b16 %v1408
    %v2180 = vunpack.c.l.b16 %v1409
    %v2181 = vunpack.c.h.b16 %v1409
    %v2182 = vunpack.c.l.b16 %v1410
    %v2183 = vunpack.c.h.b16 %v1410
    %v2184 = vunpack.c.l.b16 %v1411
    %v2185 = vunpack.c.h.b16 %v1411
    %v2186 = vunpack.c.l.b16 %v1412
    %v2187 = vunpack.c.h.b16 %v1412
    %v2188 = vunpack.c.l.b16 %v1413
    %v2189 = vunpack.c.h.b16 %v1413
    %v2190 = vunpack.c.l.b16 %v1414
    %v2191 = vunpack.c.h.b16 %v1414
    %v2192 = vunpack.c.l.b16 %v1415
    %v2193 = vunpack.c.h.b16 %v1415
    %v2194 = vunpack.c.l.b16 %v1416
    %v2195 = vunpack.c.h.b16 %v1416
    %v2196 = vunpack.c.l.b16 %v1417
    %v2197 = vunpack.c.h.b16 %v1417
    %v2198 = vunpack.c.l.b16 %v1418
    %v2199 = vunpack.c.h.b16 %v1418
    %v2200 = vunpack.c.l.b16 %v1419
    %v2201 = vunpack.c.h.b16 %v1419
    %v2202 = vunpack.c.l.b16 %v1420
    %v2203 = vunpack.c.h.b16 %v1420
    %v2204 = vunpack.c.l.b16 %v1421
    %v2205 = vunpack.c.h.b16 %v1421
    %v2206 = vunpack.c.l.b16 %v1422
    %v2207 = vunpack.c.h.b16 %v1422
    %v2208 = vunpack.c.l.b16 %v1423
    %v2209 = vunpack.c.h.b16 %v1423
    %v2210 = vunpack.c.l.b16 %v1424
    %v2211 = vunpack.c.h.b16 %v1424
    %v2212 = vunpack.c.l.b16 %v1425
    %v2213 = vunpack.c.h.b16 %v1425
    %v2214 = vunpack.c.l.b16 %v1426
    %v2215 = vunpack.c.h.b16 %v1426
    %v2216 = vpack.c.b16 %v1708, %v1704
    %v2217 = vpack.c.b16 %v1709, %v1705
    %v2218 = vpack.c.b16 %v1710, %v1706
    %v2219 = vpack.c.b16 %v1711, %v1707
    %v2220 = vpack.c.b16 %v1716, %v1712
    %v2221 = vpack.c.b16 %v1717, %v1713
    %v2222 = vpack.c.b16 %v1718, %v1714
    %v2223 = vpack.c.b16 %v1719, %v1715
    %v2224 = vpack.c.b16 %v1724, %v1720
    %v2225 = vpack.c.b16 %v1725, %v1721
    %v2226 = vpack.c.b16 %v1726, %v1722
    %v2227 = vpack.c.b16 %v1727, %v1723
    %v2228 = vpack.c.b16 %v1732, %v1728
    %v2229 = vpack.c.b16 %v1733, %v1729
    %v2230 = vpack.c.b16 %v1734, %v1730
    %v2231 = vpack.c.b16 %v1735, %v1731
    %v2232 = vpack.c.b16 %v1740, %v1736
    %v2233 = vpack.c.b16 %v1741, %v1737
    %v2234 = vpack.c.b16 %v1742, %v1738
    %v2235 = vpack.c.b16 %v1743, %v1739
    %v2236 = vpack.c.b16 %v1748, %v1744
    %v2237 = vpack.c.b16 %v1749, %v1745
    %v2238 = vpack.c.b16 %v1750, %v1746
    %v2239 = vpack.c.b16 %v1751, %v1747
    %v2240 = vpack.c.b16 %v1756, %v1752
    %v2241 = vpack.c.b16 %v1757, %v1753
    %v2242 = vpack.c.b16 %v1758, %v1754
    %v2243 = vpack.c.b16 %v1759, %v1755
    %v2244 = vpack.c.b16 %v1764, %v1760
    %v2245 = vpack.c.b16 %v1765, %v1761
    %v2246 = vpack.c.b16 %v1766, %v1762
    %v2247 = vpack.c.b16 %v1767, %v1763
    %v2248 = vpack.c.b16 %v1772, %v1768
    %v2249 = vpack.c.b16 %v1773, %v1769
    %v2250 = vpack.c.b16 %v1774, %v1770
    %v2251 = vpack.c.b16 %v1775, %v1771
    %v2252 = vpack.c.b16 %v1780, %v1776
    %v2253 = vpack.c.b16 %v1781, %v1777
    %v2254 = vpack.c.b16 %v1782, %v1778
    %v2255 = vpack.c.b16 %v1783, %v1779
    %v2256 = vpack.c.b16 %v1788, %v1784
    %v2257 = vpack.c.b16 %v1789, %v1785
    %v2258 = vpack.c.b16 %v1790, %v1786
    %v2259 = vpack.c.b16 %v1791, %v1787
    %v2260 = vpack.c.b16 %v1796, %v1792
    %v2261 = vpack.c.b16 %v1797, %v1793
    %v2262 = vpack.c.b16 %v1798, %v1794
    %v2263 = vpack.c.b16 %v1799, %v1795
    %v2264 = vpack.c.b16 %v1804, %v1800
    %v2265 = vpack.c.b16 %v1805, %v1801
    %v2266 = vpack.c.b16 %v1806, %v1802
    %v2267 = vpack.c.b16 %v1807, %v1803
    %v2268 = vpack.c.b16 %v1812, %v1808
    %v2269 = vpack.c.b16 %v1813, %v1809
    %v2270 = vpack.c.b16 %v1814, %v1810
    %v2271 = vpack.c.b16 %v1815, %v1811
    %v2272 = vpack.c.b16 %v1820, %v1816
    %v2273 = vpack.c.b16 %v1821, %v1817
    %v2274 = vpack.c.b16 %v1822, %v1818
    %v2275 = vpack.c.b16 %v1823, %v1819
    %v2276 = vpack.c.b16 %v1828, %v1824
    %v2277 = vpack.c.b16 %v1829, %v1825
    %v2278 = vpack.c.b16 %v1830, %v1826
    %v2279 = vpack.c.b16 %v1831, %v1827
    %v2280 = vpack.c.b16 %v1836, %v1832
    %v2281 = vpack.c.b16 %v1837, %v1833
    %v2282 = vpack.c.b16 %v1838, %v1834
    %v2283 = vpack.c.b16 %v1839, %v1835
    %v2284 = vpack.c.b16 %v1844, %v1840
    %v2285 = vpack.c.b16 %v1845, %v1841
    %v2286 = vpack.c.b16 %v1846, %v1842
    %v2287 = vpack.c.b16 %v1847, %v1843
    %v2288 = vpack.c.b16 %v1852, %v1848
    %v2289 = vpack.c.b16 %v1853, %v1849
    %v2290 = vpack.c.b16 %v1854, %v1850
    %v2291 = vpack.c.b16 %v1855, %v1851
    %v2292 = vpack.c.b16 %v1860, %v1856
    %v2293 = vpack.c.b16 %v1861, %v1857
    %v2294 = vpack.c.b16 %v1862, %v1858
    %v2295 = vpack.c.b16 %v1863, %v1859
    %v2296 = vpack.c.b16 %v1868, %v1864
    %v2297 = vpack.c.b16 %v1869, %v1865
    %v2298 = vpack.c.b16 %v1870, %v1866
    %v2299 = vpack.c.b16 %v1871, %v1867
    %v2300 = vpack.c.b16 %v1876, %v1872
    %v2301 = vpack.c.b16 %v1877, %v1873
    %v2302 = vpack.c.b16 %v1878, %v1874
    %v2303 = vpack.c.b16 %v1879, %v1875
    %v2304 = vpack.c.b16 %v1884, %v1880
    %v2305 = vpack.c.b16 %v1885, %v1881
    %v2306 = vpack.c.b16 %v1886, %v1882
    %v2307 = vpack.c.b16 %v1887, %v1883
    %v2308 = vpack.c.b16 %v1892, %v1888
    %v2309 = vpack.c.b16 %v1893, %v1889
    %v2310 = vpack.c.b16 %v1894, %v1890
    %v2311 = vpack.c.b16 %v1895, %v1891
    %v2312 = vpack.c.b16 %v1900, %v1896
    %v2313 = vpack.c.b16 %v1901, %v1897
    %v2314 = vpack.c.b16 %v1902, %v1898
    %v2315 = vpack.c.b16 %v1903, %v1899
    %v2316 = vpack.c.b16 %v1908, %v1904
    %v2317 = vpack.c.b16 %v1909, %v1905
    %v2318 = vpack.c.b16 %v1910, %v1906
    %v2319 = vpack.c.b16 %v1911, %v1907
    %v2320 = vpack.c.b16 %v1916, %v1912
    %v2321 = vpack.c.b16 %v1917, %v1913
    %v2322 = vpack.c.b16 %v1918, %v1914
    %v2323 = vpack.c.b16 %v1919, %v1915
    %v2324 = vpack.c.b16 %v1924, %v1920
    %v2325 = vpack.c.b16 %v1925, %v1921
    %v2326 = vpack.c.b16 %v1926, %v1922
    %v2327 = vpack.c.b16 %v1927, %v1923
    %v2328 = vpack.c.b16 %v1932, %v1928
    %v2329 = vpack.c.b16 %v1933, %v1929
    %v2330 = vpack.c.b16 %v1934, %v1930
    %v2331 = vpack.c.b16 %v1935, %v1931
    %v2332 = vpack.c.b16 %v1940, %v1936
    %v2333 = vpack.c.b16 %v1941, %v1937
    %v2334 = vpack.c.b16 %v1942, %v1938
    %v2335 = vpack.c.b16 %v1943, %v1939
    %v2336 = vpack.c.b16 %v1948, %v1944
    %v2337 = vpack.c.b16 %v1949, %v1945
    %v2338 = vpack.c.b16 %v1950, %v1946
    %v2339 = vpack.c.b16 %v1951, %v1947
    %v2340 = vpack.c.b16 %v1956, %v1952
    %v2341 = vpack.c.b16 %v1957, %v1953
    %v2342 = vpack.c.b16 %v1958, %v1954
    %v2343 = vpack.c.b16 %v1959, %v1955
    %v2344 = vpack.c.b16 %v1964, %v1960
    %v2345 = vpack.c.b16 %v1965, %v1961
    %v2346 = vpack.c.b16 %v1966, %v1962
    %v2347 = vpack.c.b16 %v1967, %v1963
    %v2348 = vpack.c.b16 %v1972, %v1968
    %v2349 = vpack.c.b16 %v1973, %v1969
    %v2350 = vpack.c.b16 %v1974, %v1970
    %v2351 = vpack.c.b16 %v1975, %v1971
    %v2352 = vpack.c.b16 %v1980, %v1976
    %v2353 = vpack.c.b16 %v1981, %v1977
    %v2354 = vpack.c.b16 %v1982, %v1978
    %v2355 = vpack.c.b16 %v1983, %v1979
    %v2356 = vpack.c.b16 %v1988, %v1984
    %v2357 = vpack.c.b16 %v1989, %v1985
    %v2358 = vpack.c.b16 %v1990, %v1986
    %v2359 = vpack.c.b16 %v1991, %v1987
    %v2360 = vpack.c.b16 %v1996, %v1992
    %v2361 = vpack.c.b16 %v1997, %v1993
    %v2362 = vpack.c.b16 %v1998, %v1994
    %v2363 = vpack.c.b16 %v1999, %v1995
    %v2364 = vpack.c.b16 %v2004, %v2000
    %v2365 = vpack.c.b16 %v2005, %v2001
    %v2366 = vpack.c.b16 %v2006, %v2002
    %v2367 = vpack.c.b16 %v2007, %v2003
    %v2368 = vpack.c.b16 %v2012, %v2008
    %v2369 = vpack.c.b16 %v2013, %v2009
    %v2370 = vpack.c.b16 %v2014, %v2010
    %v2371 = vpack.c.b16 %v2015, %v2011
    %v2372 = vpack.c.b16 %v2020, %v2016
    %v2373 = vpack.c.b16 %v2021, %v2017
    %v2374 = vpack.c.b16 %v2022, %v2018
    %v2375 = vpack.c.b16 %v2023, %v2019
    %v2376 = vpack.c.b16 %v2028, %v2024
    %v2377 = vpack.c.b16 %v2029, %v2025
    %v2378 = vpack.c.b16 %v2030, %v2026
    %v2379 = vpack.c.b16 %v2031, %v2027
    %v2380 = vpack.c.b16 %v2036, %v2032
    %v2381 = vpack.c.b16 %v2037, %v2033
    %v2382 = vpack.c.b16 %v2038, %v2034
    %v2383 = vpack.c.b16 %v2039, %v2035
    %v2384 = vpack.c.b16 %v2044, %v2040
    %v2385 = vpack.c.b16 %v2045, %v2041
    %v2386 = vpack.c.b16 %v2046, %v2042
    %v2387 = vpack.c.b16 %v2047, %v2043
    %v2388 = vpack.c.b16 %v2052, %v2048
    %v2389 = vpack.c.b16 %v2053, %v2049
    %v2390 = vpack.c.b16 %v2054, %v2050
    %v2391 = vpack.c.b16 %v2055, %v2051
    %v2392 = vpack.c.b16 %v2060, %v2056
    %v2393 = vpack.c.b16 %v2061, %v2057
    %v2394 = vpack.c.b16 %v2062, %v2058
    %v2395 = vpack.c.b16 %v2063, %v2059
    %v2396 = vpack.c.b16 %v2068, %v2064
    %v2397 = vpack.c.b16 %v2069, %v2065
    %v2398 = vpack.c.b16 %v2070, %v2066
    %v2399 = vpack.c.b16 %v2071, %v2067
    %v2400 = vpack.c.b16 %v2076, %v2072
    %v2401 = vpack.c.b16 %v2077, %v2073
    %v2402 = vpack.c.b16 %v2078, %v2074
    %v2403 = vpack.c.b16 %v2079, %v2075
    %v2404 = vpack.c.b16 %v2084, %v2080
    %v2405 = vpack.c.b16 %v2085, %v2081
    %v2406 = vpack.c.b16 %v2086, %v2082
    %v2407 = vpack.c.b16 %v2087, %v2083
    %v2408 = vpack.c.b16 %v2092, %v2088
    %v2409 = vpack.c.b16 %v2093, %v2089
    %v2410 = vpack.c.b16 %v2094, %v2090
    %v2411 = vpack.c.b16 %v2095, %v2091
    %v2412 = vpack.c.b16 %v2100, %v2096
    %v2413 = vpack.c.b16 %v2101, %v2097
    %v2414 = vpack.c.b16 %v2102, %v2098
    %v2415 = vpack.c.b16 %v2103, %v2099
    %v2416 = vpack.c.b16 %v2108, %v2104
    %v2417 = vpack.c.b16 %v2109, %v2105
    %v2418 = vpack.c.b16 %v2110, %v2106
    %v2419 = vpack.c.b16 %v2111, %v2107
    %v2420 = vpack.c.b16 %v2116, %v2112
    %v2421 = vpack.c.b16 %v2117, %v2113
    %v2422 = vpack.c.b16 %v2118, %v2114
    %v2423 = vpack.c.b16 %v2119, %v2115
    %v2424 = vpack.c.b16 %v2124, %v2120
    %v2425 = vpack.c.b16 %v2125, %v2121
    %v2426 = vpack.c.b16 %v2126, %v2122
    %v2427 = vpack.c.b16 %v2127, %v2123
    %v2428 = vpack.c.b16 %v2132, %v2128
    %v2429 = vpack.c.b16 %v2133, %v2129
    %v2430 = vpack.c.b16 %v2134, %v2130
    %v2431 = vpack.c.b16 %v2135, %v2131
    %v2432 = vpack.c.b16 %v2140, %v2136
    %v2433 = vpack.c.b16 %v2141, %v2137
    %v2434 = vpack.c.b16 %v2142, %v2138
    %v2435 = vpack.c.b16 %v2143, %v2139
    %v2436 = vpack.c.b16 %v2148, %v2144
    %v2437 = vpack.c.b16 %v2149, %v2145
    %v2438 = vpack.c.b16 %v2150, %v2146
    %v2439 = vpack.c.b16 %v2151, %v2147
    %v2440 = vpack.c.b16 %v2156, %v2152
    %v2441 = vpack.c.b16 %v2157, %v2153
    %v2442 = vpack.c.b16 %v2158, %v2154
    %v2443 = vpack.c.b16 %v2159, %v2155
    %v2444 = vpack.c.b16 %v2164, %v2160
    %v2445 = vpack.c.b16 %v2165, %v2161
    %v2446 = vpack.c.b16 %v2166, %v2162
    %v2447 = vpack.c.b16 %v2167, %v2163
    %v2448 = vpack.c.b16 %v2172, %v2168
    %v2449 = vpack.c.b16 %v2173, %v2169
    %v2450 = vpack.c.b16 %v2174, %v2170
    %v2451 = vpack.c.b16 %v2175, %v2171
    %v2452 = vpack.c.b16 %v2180, %v2176
    %v2453 = vpack.c.b16 %v2181, %v2177
    %v2454 = vpack.c.b16 %v2182, %v2178
    %v2455 = vpack.c.b16 %v2183, %v2179
    %v2456 = vpack.c.b16 %v2188, %v2184
    %v2457 = vpack.c.b16 %v2189, %v2185
    %v2458 = vpack.c.b16 %v2190, %v2186
    %v2459 = vpack.c.b16 %v2191, %v2187
    %v2460 = vpack.c.b16 %v2196, %v2192
    %v2461 = vpack.c.b16 %v2197, %v2193
    %v2462 = vpack.c.b16 %v2198, %v2194
    %v2463 = vpack.c.b16 %v2199, %v2195
    %v2464 = vpack.c.b16 %v2204, %v2200
    %v2465 = vpack.c.b16 %v2205, %v2201
    %v2466 = vpack.c.b16 %v2206, %v2202
    %v2467 = vpack.c.b16 %v2207, %v2203
    %v2468 = vpack.c.b16 %v2212, %v2208
    %v2469 = vpack.c.b16 %v2213, %v2209
    %v2470 = vpack.c.b16 %v2214, %v2210
    %v2471 = vpack.c.b16 %v2215, %v2211
    %2728 = vmatprep.subr.bf16.mxu0 %v2245
    %2729 = vmatpush1.bf16.msra.mxu0 %v2244
    %2730 = vmatprep.subr.bf16.mxu0 %v2241
    %2731 = vmatpush1.bf16.msra.mxu0 %v2240
    %2732 = vmatprep.subr.bf16.mxu0 %v2237
    %2733 = vmatpush1.bf16.msra.mxu0 %v2236
    %2734 = vmatprep.subr.bf16.mxu0 %v2233
    %2735 = vmatpush1.bf16.msra.mxu0 %v2232
    %2736 = vmatprep.subr.bf16.mxu0 %v2229
    %2737 = vmatpush1.bf16.msra.mxu0 %v2228
    %2738 = vmatprep.subr.bf16.mxu0 %v2225
    %2739 = vmatpush1.bf16.msra.mxu0 %v2224
    %2740 = vmatprep.subr.bf16.mxu0 %v2221
    %2741 = vmatpush1.bf16.msra.mxu0 %v2220
    %2742 = vmatprep.subr.bf16.mxu0 %v2217
    %2743 = vmatpush1.bf16.msra.mxu0 %v2216
    %2744 = vmatprep.subr.bf16.mxu0 %v2277
    %2745 = vmatpush2.bf16.msra.mxu0 %v2276
    %2746 = vmatprep.subr.bf16.mxu0 %v2273
    %2747 = vmatpush2.bf16.msra.mxu0 %v2272
    %2748 = vmatprep.subr.bf16.mxu0 %v2269
    %2749 = vmatpush2.bf16.msra.mxu0 %v2268
    %2750 = vmatprep.subr.bf16.mxu0 %v2265
    %2751 = vmatpush2.bf16.msra.mxu0 %v2264
    %2752 = vmatprep.subr.bf16.mxu0 %v2261
    %2753 = vmatpush2.bf16.msra.mxu0 %v2260
    %2754 = vmatprep.subr.bf16.mxu0 %v2257
    %2755 = vmatpush2.bf16.msra.mxu0 %v2256
    %2756 = vmatprep.subr.bf16.mxu0 %v2253
    %2757 = vmatpush2.bf16.msra.mxu0 %v2252
    %2758 = vmatprep.subr.bf16.mxu0 %v2249
    %2759 = vmatpush2.bf16.msra.mxu0 %v2248
    %2760 = vmatprep.mubr.bf16.mxu0 %v1164
    %2761 = vmatmul.mubr.bf16.gmra.mxu0 %v1163
    %v2762 = vpop.f32.mrf.mxu0
    %v2763 = vadd.f32 %v1431, %v2762
    %v2764 = vpop.f32.mrf.mxu0
    %v2765 = vadd.f32 %v1435, %v2764
    %v2766 = vpop.f32.mrf.mxu0
    %v2767 = vpop.f32.mrf.mxu0
    %2768 = vdwg.mxu0
    %2769 = vmatprep.subr.bf16.mxu0 %v2309
    %2770 = vmatpush1.bf16.msra.mxu0 %v2308
    %2771 = vmatprep.subr.bf16.mxu0 %v2305
    %2772 = vmatpush1.bf16.msra.mxu0 %v2304
    %2773 = vmatprep.subr.bf16.mxu0 %v2301
    %2774 = vmatpush1.bf16.msra.mxu0 %v2300
    %2775 = vmatprep.subr.bf16.mxu0 %v2297
    %2776 = vmatpush1.bf16.msra.mxu0 %v2296
    %2777 = vmatprep.subr.bf16.mxu0 %v2293
    %2778 = vmatpush1.bf16.msra.mxu0 %v2292
    %2779 = vmatprep.subr.bf16.mxu0 %v2289
    %2780 = vmatpush1.bf16.msra.mxu0 %v2288
    %2781 = vmatprep.subr.bf16.mxu0 %v2285
    %2782 = vmatpush1.bf16.msra.mxu0 %v2284
    %2783 = vmatprep.subr.bf16.mxu0 %v2281
    %2784 = vmatpush1.bf16.msra.mxu0 %v2280
    %2785 = vmatprep.subr.bf16.mxu0 %v2341
    %2786 = vmatpush2.bf16.msra.mxu0 %v2340
    %2787 = vmatprep.subr.bf16.mxu0 %v2337
    %2788 = vmatpush2.bf16.msra.mxu0 %v2336
    %2789 = vmatprep.subr.bf16.mxu0 %v2333
    %2790 = vmatpush2.bf16.msra.mxu0 %v2332
    %2791 = vmatprep.subr.bf16.mxu0 %v2329
    %2792 = vmatpush2.bf16.msra.mxu0 %v2328
    %2793 = vmatprep.subr.bf16.mxu0 %v2325
    %2794 = vmatpush2.bf16.msra.mxu0 %v2324
    %2795 = vmatprep.subr.bf16.mxu0 %v2321
    %2796 = vmatpush2.bf16.msra.mxu0 %v2320
    %2797 = vmatprep.subr.bf16.mxu0 %v2317
    %2798 = vmatpush2.bf16.msra.mxu0 %v2316
    %2799 = vmatprep.subr.bf16.mxu0 %v2313
    %2800 = vmatpush2.bf16.msra.mxu0 %v2312
    %2801 = vmatprep.mubr.bf16.mxu0 %v1166
    %2802 = vmatmul.mubr.bf16.gmra.mxu0 %v1165
    %v2803 = vpop.f32.mrf.mxu0
    %v2804 = vadd.f32 %v2763, %v2803
    %v2805 = vpop.f32.mrf.mxu0
    %v2806 = vadd.f32 %v2765, %v2805
    %v2807 = vpop.f32.mrf.mxu0
    %v2808 = vpop.f32.mrf.mxu0
    %2809 = vdwg.mxu0
    %2810 = vmatprep.subr.bf16.mxu0 %v2373
    %2811 = vmatpush1.bf16.msra.mxu0 %v2372
    %2812 = vmatprep.subr.bf16.mxu0 %v2369
    %2813 = vmatpush1.bf16.msra.mxu0 %v2368
    %2814 = vmatprep.subr.bf16.mxu0 %v2365
    %2815 = vmatpush1.bf16.msra.mxu0 %v2364
    %2816 = vmatprep.subr.bf16.mxu0 %v2361
    %2817 = vmatpush1.bf16.msra.mxu0 %v2360
    %2818 = vmatprep.subr.bf16.mxu0 %v2357
    %2819 = vmatpush1.bf16.msra.mxu0 %v2356
    %2820 = vmatprep.subr.bf16.mxu0 %v2353
    %2821 = vmatpush1.bf16.msra.mxu0 %v2352
    %2822 = vmatprep.subr.bf16.mxu0 %v2349
    %2823 = vmatpush1.bf16.msra.mxu0 %v2348
    %2824 = vmatprep.subr.bf16.mxu0 %v2345
    %2825 = vmatpush1.bf16.msra.mxu0 %v2344
    %2826 = vmatprep.subr.bf16.mxu0 %v2405
    %2827 = vmatpush2.bf16.msra.mxu0 %v2404
    %2828 = vmatprep.subr.bf16.mxu0 %v2401
    %2829 = vmatpush2.bf16.msra.mxu0 %v2400
    %2830 = vmatprep.subr.bf16.mxu0 %v2397
    %2831 = vmatpush2.bf16.msra.mxu0 %v2396
    %2832 = vmatprep.subr.bf16.mxu0 %v2393
    %2833 = vmatpush2.bf16.msra.mxu0 %v2392
    %2834 = vmatprep.subr.bf16.mxu0 %v2389
    %2835 = vmatpush2.bf16.msra.mxu0 %v2388
    %2836 = vmatprep.subr.bf16.mxu0 %v2385
    %2837 = vmatpush2.bf16.msra.mxu0 %v2384
    %2838 = vmatprep.subr.bf16.mxu0 %v2381
    %2839 = vmatpush2.bf16.msra.mxu0 %v2380
    %2840 = vmatprep.subr.bf16.mxu0 %v2377
    %2841 = vmatpush2.bf16.msra.mxu0 %v2376
    %2842 = vmatprep.mubr.bf16.mxu0 %v1168
    %2843 = vmatmul.mubr.bf16.gmra.mxu0 %v1167
    %v2844 = vpop.f32.mrf.mxu0
    %v2845 = vadd.f32 %v2804, %v2844
    %v2846 = vpop.f32.mrf.mxu0
    %v2847 = vadd.f32 %v2806, %v2846
    %v2848 = vpop.f32.mrf.mxu0
    %v2849 = vpop.f32.mrf.mxu0
    %2850 = vdwg.mxu0
    %2851 = vmatprep.subr.bf16.mxu0 %v2437
    %2852 = vmatpush1.bf16.msra.mxu0 %v2436
    %2853 = vmatprep.subr.bf16.mxu0 %v2433
    %2854 = vmatpush1.bf16.msra.mxu0 %v2432
    %2855 = vmatprep.subr.bf16.mxu0 %v2429
    %2856 = vmatpush1.bf16.msra.mxu0 %v2428
    %2857 = vmatprep.subr.bf16.mxu0 %v2425
    %2858 = vmatpush1.bf16.msra.mxu0 %v2424
    %2859 = vmatprep.subr.bf16.mxu0 %v2421
    %2860 = vmatpush1.bf16.msra.mxu0 %v2420
    %2861 = vmatprep.subr.bf16.mxu0 %v2417
    %2862 = vmatpush1.bf16.msra.mxu0 %v2416
    %2863 = vmatprep.subr.bf16.mxu0 %v2413
    %2864 = vmatpush1.bf16.msra.mxu0 %v2412
    %2865 = vmatprep.subr.bf16.mxu0 %v2409
    %2866 = vmatpush1.bf16.msra.mxu0 %v2408
    %2867 = vmatprep.subr.bf16.mxu0 %v2469
    %2868 = vmatpush2.bf16.msra.mxu0 %v2468
    %2869 = vmatprep.subr.bf16.mxu0 %v2465
    %2870 = vmatpush2.bf16.msra.mxu0 %v2464
    %2871 = vmatprep.subr.bf16.mxu0 %v2461
    %2872 = vmatpush2.bf16.msra.mxu0 %v2460
    %2873 = vmatprep.subr.bf16.mxu0 %v2457
    %2874 = vmatpush2.bf16.msra.mxu0 %v2456
    %2875 = vmatprep.subr.bf16.mxu0 %v2453
    %2876 = vmatpush2.bf16.msra.mxu0 %v2452
    %2877 = vmatprep.subr.bf16.mxu0 %v2449
    %2878 = vmatpush2.bf16.msra.mxu0 %v2448
    %2879 = vmatprep.subr.bf16.mxu0 %v2445
    %2880 = vmatpush2.bf16.msra.mxu0 %v2444
    %2881 = vmatprep.subr.bf16.mxu0 %v2441
    %2882 = vmatpush2.bf16.msra.mxu0 %v2440
    %2883 = vmatprep.mubr.bf16.mxu0 %v1170
    %2884 = vmatmul.mubr.bf16.gmra.mxu0 %v1169
    %v2885 = vpop.f32.mrf.mxu0
    %v2886 = vadd.f32 %v2845, %v2885
    %v2887 = vpop.f32.mrf.mxu0
    %v2888 = vadd.f32 %v2847, %v2887
    %v2889 = vpop.f32.mrf.mxu0
    %v2890 = vpop.f32.mrf.mxu0
    %2891 = vdwg.mxu0
    %2892 = vmatprep.subr.bf16.mxu0 %v2247
    %2893 = vmatpush1.bf16.msra.mxu0 %v2246
    %2894 = vmatprep.subr.bf16.mxu0 %v2243
    %2895 = vmatpush1.bf16.msra.mxu0 %v2242
    %2896 = vmatprep.subr.bf16.mxu0 %v2239
    %2897 = vmatpush1.bf16.msra.mxu0 %v2238
    %2898 = vmatprep.subr.bf16.mxu0 %v2235
    %2899 = vmatpush1.bf16.msra.mxu0 %v2234
    %2900 = vmatprep.subr.bf16.mxu0 %v2231
    %2901 = vmatpush1.bf16.msra.mxu0 %v2230
    %2902 = vmatprep.subr.bf16.mxu0 %v2227
    %2903 = vmatpush1.bf16.msra.mxu0 %v2226
    %2904 = vmatprep.subr.bf16.mxu0 %v2223
    %2905 = vmatpush1.bf16.msra.mxu0 %v2222
    %2906 = vmatprep.subr.bf16.mxu0 %v2219
    %2907 = vmatpush1.bf16.msra.mxu0 %v2218
    %2908 = vmatprep.subr.bf16.mxu0 %v2279
    %2909 = vmatpush2.bf16.msra.mxu0 %v2278
    %2910 = vmatprep.subr.bf16.mxu0 %v2275
    %2911 = vmatpush2.bf16.msra.mxu0 %v2274
    %2912 = vmatprep.subr.bf16.mxu0 %v2271
    %2913 = vmatpush2.bf16.msra.mxu0 %v2270
    %2914 = vmatprep.subr.bf16.mxu0 %v2267
    %2915 = vmatpush2.bf16.msra.mxu0 %v2266
    %2916 = vmatprep.subr.bf16.mxu0 %v2263
    %2917 = vmatpush2.bf16.msra.mxu0 %v2262
    %2918 = vmatprep.subr.bf16.mxu0 %v2259
    %2919 = vmatpush2.bf16.msra.mxu0 %v2258
    %2920 = vmatprep.subr.bf16.mxu0 %v2255
    %2921 = vmatpush2.bf16.msra.mxu0 %v2254
    %2922 = vmatprep.subr.bf16.mxu0 %v2251
    %2923 = vmatpush2.bf16.msra.mxu0 %v2250
    %2924 = vmatprep.mubr.bf16.mxu0 %v1164
    %2925 = vmatmul.mubr.bf16.gmra.mxu0 %v1163
    %v2926 = vpop.f32.mrf.mxu0
    %v2927 = vadd.f32 %v1439, %v2926
    %v2928 = vpop.f32.mrf.mxu0
    %v2929 = vadd.f32 %v1443, %v2928
    %v2930 = vpop.f32.mrf.mxu0
    %v2931 = vpop.f32.mrf.mxu0
    %2932 = vdwg.mxu0
    %2933 = vmatprep.subr.bf16.mxu0 %v2311
    %2934 = vmatpush1.bf16.msra.mxu0 %v2310
    %2935 = vmatprep.subr.bf16.mxu0 %v2307
    %2936 = vmatpush1.bf16.msra.mxu0 %v2306
    %2937 = vmatprep.subr.bf16.mxu0 %v2303
    %2938 = vmatpush1.bf16.msra.mxu0 %v2302
    %2939 = vmatprep.subr.bf16.mxu0 %v2299
    %2940 = vmatpush1.bf16.msra.mxu0 %v2298
    %2941 = vmatprep.subr.bf16.mxu0 %v2295
    %2942 = vmatpush1.bf16.msra.mxu0 %v2294
    %2943 = vmatprep.subr.bf16.mxu0 %v2291
    %2944 = vmatpush1.bf16.msra.mxu0 %v2290
    %2945 = vmatprep.subr.bf16.mxu0 %v2287
    %2946 = vmatpush1.bf16.msra.mxu0 %v2286
    %2947 = vmatprep.subr.bf16.mxu0 %v2283
    %2948 = vmatpush1.bf16.msra.mxu0 %v2282
    %2949 = vmatprep.subr.bf16.mxu0 %v2343
    %2950 = vmatpush2.bf16.msra.mxu0 %v2342
    %2951 = vmatprep.subr.bf16.mxu0 %v2339
    %2952 = vmatpush2.bf16.msra.mxu0 %v2338
    %2953 = vmatprep.subr.bf16.mxu0 %v2335
    %2954 = vmatpush2.bf16.msra.mxu0 %v2334
    %2955 = vmatprep.subr.bf16.mxu0 %v2331
    %2956 = vmatpush2.bf16.msra.mxu0 %v2330
    %2957 = vmatprep.subr.bf16.mxu0 %v2327
    %2958 = vmatpush2.bf16.msra.mxu0 %v2326
    %2959 = vmatprep.subr.bf16.mxu0 %v2323
    %2960 = vmatpush2.bf16.msra.mxu0 %v2322
    %2961 = vmatprep.subr.bf16.mxu0 %v2319
    %2962 = vmatpush2.bf16.msra.mxu0 %v2318
    %2963 = vmatprep.subr.bf16.mxu0 %v2315
    %2964 = vmatpush2.bf16.msra.mxu0 %v2314
    %2965 = vmatprep.mubr.bf16.mxu0 %v1166
    %2966 = vmatmul.mubr.bf16.gmra.mxu0 %v1165
    %v2967 = vpop.f32.mrf.mxu0
    %v2968 = vadd.f32 %v2927, %v2967
    %v2969 = vpop.f32.mrf.mxu0
    %v2970 = vadd.f32 %v2929, %v2969
    %v2971 = vpop.f32.mrf.mxu0
    %v2972 = vpop.f32.mrf.mxu0
    %2973 = vdwg.mxu0
    %2974 = vmatprep.subr.bf16.mxu0 %v2375
    %2975 = vmatpush1.bf16.msra.mxu0 %v2374
    %2976 = vmatprep.subr.bf16.mxu0 %v2371
    %2977 = vmatpush1.bf16.msra.mxu0 %v2370
    %2978 = vmatprep.subr.bf16.mxu0 %v2367
    %2979 = vmatpush1.bf16.msra.mxu0 %v2366
    %2980 = vmatprep.subr.bf16.mxu0 %v2363
    %2981 = vmatpush1.bf16.msra.mxu0 %v2362
    %2982 = vmatprep.subr.bf16.mxu0 %v2359
    %2983 = vmatpush1.bf16.msra.mxu0 %v2358
    %2984 = vmatprep.subr.bf16.mxu0 %v2355
    %2985 = vmatpush1.bf16.msra.mxu0 %v2354
    %2986 = vmatprep.subr.bf16.mxu0 %v2351
    %2987 = vmatpush1.bf16.msra.mxu0 %v2350
    %2988 = vmatprep.subr.bf16.mxu0 %v2347
    %2989 = vmatpush1.bf16.msra.mxu0 %v2346
    %2990 = vmatprep.subr.bf16.mxu0 %v2407
    %2991 = vmatpush2.bf16.msra.mxu0 %v2406
    %2992 = vmatprep.subr.bf16.mxu0 %v2403
    %2993 = vmatpush2.bf16.msra.mxu0 %v2402
    %2994 = vmatprep.subr.bf16.mxu0 %v2399
    %2995 = vmatpush2.bf16.msra.mxu0 %v2398
    %2996 = vmatprep.subr.bf16.mxu0 %v2395
    %2997 = vmatpush2.bf16.msra.mxu0 %v2394
    %2998 = vmatprep.subr.bf16.mxu0 %v2391
    %2999 = vmatpush2.bf16.msra.mxu0 %v2390
    %3000 = vmatprep.subr.bf16.mxu0 %v2387
    %3001 = vmatpush2.bf16.msra.mxu0 %v2386
    %3002 = vmatprep.subr.bf16.mxu0 %v2383
    %3003 = vmatpush2.bf16.msra.mxu0 %v2382
    %3004 = vmatprep.subr.bf16.mxu0 %v2379
    %3005 = vmatpush2.bf16.msra.mxu0 %v2378
    %3006 = vmatprep.mubr.bf16.mxu0 %v1168
    %3007 = vmatmul.mubr.bf16.gmra.mxu0 %v1167
    %v3008 = vpop.f32.mrf.mxu0
    %v3009 = vadd.f32 %v2968, %v3008
    %v3010 = vpop.f32.mrf.mxu0
    %v3011 = vadd.f32 %v2970, %v3010
    %v3012 = vpop.f32.mrf.mxu0
    %v3013 = vpop.f32.mrf.mxu0
    %3014 = vdwg.mxu0
    %3015 = vmatprep.subr.bf16.mxu0 %v2439
    %3016 = vmatpush1.bf16.msra.mxu0 %v2438
    %3017 = vmatprep.subr.bf16.mxu0 %v2435
    %3018 = vmatpush1.bf16.msra.mxu0 %v2434
    %3019 = vmatprep.subr.bf16.mxu0 %v2431
    %3020 = vmatpush1.bf16.msra.mxu0 %v2430
    %3021 = vmatprep.subr.bf16.mxu0 %v2427
    %3022 = vmatpush1.bf16.msra.mxu0 %v2426
    %3023 = vmatprep.subr.bf16.mxu0 %v2423
    %3024 = vmatpush1.bf16.msra.mxu0 %v2422
    %3025 = vmatprep.subr.bf16.mxu0 %v2419
    %3026 = vmatpush1.bf16.msra.mxu0 %v2418
    %3027 = vmatprep.subr.bf16.mxu0 %v2415
    %3028 = vmatpush1.bf16.msra.mxu0 %v2414
    %3029 = vmatprep.subr.bf16.mxu0 %v2411
    %3030 = vmatpush1.bf16.msra.mxu0 %v2410
    %3031 = vmatprep.subr.bf16.mxu0 %v2471
    %3032 = vmatpush2.bf16.msra.mxu0 %v2470
    %3033 = vmatprep.subr.bf16.mxu0 %v2467
    %3034 = vmatpush2.bf16.msra.mxu0 %v2466
    %3035 = vmatprep.subr.bf16.mxu0 %v2463
    %3036 = vmatpush2.bf16.msra.mxu0 %v2462
    %3037 = vmatprep.subr.bf16.mxu0 %v2459
    %3038 = vmatpush2.bf16.msra.mxu0 %v2458
    %3039 = vmatprep.subr.bf16.mxu0 %v2455
    %3040 = vmatpush2.bf16.msra.mxu0 %v2454
    %3041 = vmatprep.subr.bf16.mxu0 %v2451
    %3042 = vmatpush2.bf16.msra.mxu0 %v2450
    %3043 = vmatprep.subr.bf16.mxu0 %v2447
    %3044 = vmatpush2.bf16.msra.mxu0 %v2446
    %3045 = vmatprep.subr.bf16.mxu0 %v2443
    %3046 = vmatpush2.bf16.msra.mxu0 %v2442
    %3047 = vmatprep.mubr.bf16.mxu0 %v1170
    %3048 = vmatmul.mubr.bf16.gmra.mxu0 %v1169
    %v3049 = vpop.f32.mrf.mxu0
    %v3050 = vadd.f32 %v3009, %v3049
    %v3051 = vpop.f32.mrf.mxu0
    %v3052 = vadd.f32 %v3011, %v3051
    %v3053 = vpop.f32.mrf.mxu0
    %v3054 = vpop.f32.mrf.mxu0
    %3055 = vdwg.mxu0
    %v3056 = vmax.f32 %v2886, 0.0
    %v3057 = vmax.f32 %v2888, 0.0
    %v3058 = vmax.f32 %v3050, 0.0
    %v3059 = vmax.f32 %v3052, 0.0
    %v3060 = vpack.c.bf16 %v3056, %v3056
    %v3061 = vpack.c.bf16 %v3057, %v3057
    %v3062 = vpack.c.bf16 %v3058, %v3058
    %v3063 = vpack.c.bf16 %v3059, %v3059
    %v3064 = vld [vmem:[#allocation9] sm:$0xff]
    %v3065 = vld [vmem:[#allocation9 + $0x8] sm:$0xff]
    %v3066 = vld [vmem:[#allocation9 + $0x10] sm:$0xff]
    %v3067 = vld [vmem:[#allocation9 + $0x18] sm:$0xff]
    %v3068 = vld [vmem:[#allocation9 + $0x20] sm:$0xff]
    %v3069 = vld [vmem:[#allocation9 + $0x28] sm:$0xff]
    %v3070 = vld [vmem:[#allocation9 + $0x30] sm:$0xff]
    %v3071 = vld [vmem:[#allocation9 + $0x38] sm:$0xff]
    %v3072 = vld [vmem:[#allocation9 + $0x40] sm:$0xff]
    %v3073 = vld [vmem:[#allocation9 + $0x48] sm:$0xff]
    %v3074 = vld [vmem:[#allocation9 + $0x50] sm:$0xff]
    %v3075 = vld [vmem:[#allocation9 + $0x58] sm:$0xff]
    %v3076 = vld [vmem:[#allocation9 + $0x60] sm:$0xff]
    %v3077 = vld [vmem:[#allocation9 + $0x68] sm:$0xff]
    %v3078 = vld [vmem:[#allocation9 + $0x70] sm:$0xff]
    %v3079 = vld [vmem:[#allocation9 + $0x78] sm:$0xff]
    %v3080 = vld [vmem:[#allocation9 + $0x80] sm:$0xff]
    %v3081 = vld [vmem:[#allocation9 + $0x88] sm:$0xff]
    %v3082 = vld [vmem:[#allocation9 + $0x90] sm:$0xff]
    %v3083 = vld [vmem:[#allocation9 + $0x98] sm:$0xff]
    %v3084 = vld [vmem:[#allocation9 + $0xa0] sm:$0xff]
    %v3085 = vld [vmem:[#allocation9 + $0xa8] sm:$0xff]
    %v3086 = vld [vmem:[#allocation9 + $0xb0] sm:$0xff]
    %v3087 = vld [vmem:[#allocation9 + $0xb8] sm:$0xff]
    %v3088 = vld [vmem:[#allocation9 + $0xc0] sm:$0xff]
    %v3089 = vld [vmem:[#allocation9 + $0xc8] sm:$0xff]
    %v3090 = vld [vmem:[#allocation9 + $0xd0] sm:$0xff]
    %v3091 = vld [vmem:[#allocation9 + $0xd8] sm:$0xff]
    %v3092 = vld [vmem:[#allocation9 + $0xe0] sm:$0xff]
    %v3093 = vld [vmem:[#allocation9 + $0xe8] sm:$0xff]
    %v3094 = vld [vmem:[#allocation9 + $0xf0] sm:$0xff]
    %v3095 = vld [vmem:[#allocation9 + $0xf8] sm:$0xff]
    %v3096 = vld [vmem:[#allocation9 + $0x100] sm:$0xff]
    %v3097 = vld [vmem:[#allocation9 + $0x108] sm:$0xff]
    %v3098 = vld [vmem:[#allocation9 + $0x110] sm:$0xff]
    %v3099 = vld [vmem:[#allocation9 + $0x118] sm:$0xff]
    %v3100 = vld [vmem:[#allocation9 + $0x120] sm:$0xff]
    %v3101 = vld [vmem:[#allocation9 + $0x128] sm:$0xff]
    %v3102 = vld [vmem:[#allocation9 + $0x130] sm:$0xff]
    %v3103 = vld [vmem:[#allocation9 + $0x138] sm:$0xff]
    %v3104 = vld [vmem:[#allocation9 + $0x140] sm:$0xff]
    %v3105 = vld [vmem:[#allocation9 + $0x148] sm:$0xff]
    %v3106 = vld [vmem:[#allocation9 + $0x150] sm:$0xff]
    %v3107 = vld [vmem:[#allocation9 + $0x158] sm:$0xff]
    %v3108 = vld [vmem:[#allocation9 + $0x160] sm:$0xff]
    %v3109 = vld [vmem:[#allocation9 + $0x168] sm:$0xff]
    %v3110 = vld [vmem:[#allocation9 + $0x170] sm:$0xff]
    %v3111 = vld [vmem:[#allocation9 + $0x178] sm:$0xff]
    %v3112 = vld [vmem:[#allocation9 + $0x180] sm:$0xff]
    %v3113 = vld [vmem:[#allocation9 + $0x188] sm:$0xff]
    %v3114 = vld [vmem:[#allocation9 + $0x190] sm:$0xff]
    %v3115 = vld [vmem:[#allocation9 + $0x198] sm:$0xff]
    %v3116 = vld [vmem:[#allocation9 + $0x1a0] sm:$0xff]
    %v3117 = vld [vmem:[#allocation9 + $0x1a8] sm:$0xff]
    %v3118 = vld [vmem:[#allocation9 + $0x1b0] sm:$0xff]
    %v3119 = vld [vmem:[#allocation9 + $0x1b8] sm:$0xff]
    %v3120 = vld [vmem:[#allocation9 + $0x1c0] sm:$0xff]
    %v3121 = vld [vmem:[#allocation9 + $0x1c8] sm:$0xff]
    %v3122 = vld [vmem:[#allocation9 + $0x1d0] sm:$0xff]
    %v3123 = vld [vmem:[#allocation9 + $0x1d8] sm:$0xff]
    %v3124 = vld [vmem:[#allocation9 + $0x1e0] sm:$0xff]
    %v3125 = vld [vmem:[#allocation9 + $0x1e8] sm:$0xff]
    %v3126 = vld [vmem:[#allocation9 + $0x1f0] sm:$0xff]
    %v3127 = vld [vmem:[#allocation9 + $0x1f8] sm:$0xff]
    %v3129 = vlaneseq
    %v3130 = vshrl.u32 %v3129, 7
    %v3131 = vsub.s32 0, %v3130
    %v3132 = vrot.slane %v92, %v3131
    %v3133 = vlaneseq
    %v3134 = vshrl.u32 %v3133, 7
    %v3135 = vsub.s32 1, %v3134
    %v3136 = vrot.slane %v92, %v3135
    %v3203 = vunpack.c.l.b16 %v3064
    %v3204 = vunpack.c.h.b16 %v3064
    %v3205 = vunpack.c.l.b16 %v3065
    %v3206 = vunpack.c.h.b16 %v3065
    %v3207 = vunpack.c.l.b16 %v3066
    %v3208 = vunpack.c.h.b16 %v3066
    %v3209 = vunpack.c.l.b16 %v3067
    %v3210 = vunpack.c.h.b16 %v3067
    %v3211 = vunpack.c.l.b16 %v3068
    %v3212 = vunpack.c.h.b16 %v3068
    %v3213 = vunpack.c.l.b16 %v3069
    %v3214 = vunpack.c.h.b16 %v3069
    %v3215 = vunpack.c.l.b16 %v3070
    %v3216 = vunpack.c.h.b16 %v3070
    %v3217 = vunpack.c.l.b16 %v3071
    %v3218 = vunpack.c.h.b16 %v3071
    %v3219 = vunpack.c.l.b16 %v3072
    %v3220 = vunpack.c.h.b16 %v3072
    %v3221 = vunpack.c.l.b16 %v3073
    %v3222 = vunpack.c.h.b16 %v3073
    %v3223 = vunpack.c.l.b16 %v3074
    %v3224 = vunpack.c.h.b16 %v3074
    %v3225 = vunpack.c.l.b16 %v3075
    %v3226 = vunpack.c.h.b16 %v3075
    %v3227 = vunpack.c.l.b16 %v3076
    %v3228 = vunpack.c.h.b16 %v3076
    %v3229 = vunpack.c.l.b16 %v3077
    %v3230 = vunpack.c.h.b16 %v3077
    %v3231 = vunpack.c.l.b16 %v3078
    %v3232 = vunpack.c.h.b16 %v3078
    %v3233 = vunpack.c.l.b16 %v3079
    %v3234 = vunpack.c.h.b16 %v3079
    %v3235 = vunpack.c.l.b16 %v3080
    %v3236 = vunpack.c.h.b16 %v3080
    %v3237 = vunpack.c.l.b16 %v3081
    %v3238 = vunpack.c.h.b16 %v3081
    %v3239 = vunpack.c.l.b16 %v3082
    %v3240 = vunpack.c.h.b16 %v3082
    %v3241 = vunpack.c.l.b16 %v3083
    %v3242 = vunpack.c.h.b16 %v3083
    %v3243 = vunpack.c.l.b16 %v3084
    %v3244 = vunpack.c.h.b16 %v3084
    %v3245 = vunpack.c.l.b16 %v3085
    %v3246 = vunpack.c.h.b16 %v3085
    %v3247 = vunpack.c.l.b16 %v3086
    %v3248 = vunpack.c.h.b16 %v3086
    %v3249 = vunpack.c.l.b16 %v3087
    %v3250 = vunpack.c.h.b16 %v3087
    %v3251 = vunpack.c.l.b16 %v3088
    %v3252 = vunpack.c.h.b16 %v3088
    %v3253 = vunpack.c.l.b16 %v3089
    %v3254 = vunpack.c.h.b16 %v3089
    %v3255 = vunpack.c.l.b16 %v3090
    %v3256 = vunpack.c.h.b16 %v3090
    %v3257 = vunpack.c.l.b16 %v3091
    %v3258 = vunpack.c.h.b16 %v3091
    %v3259 = vunpack.c.l.b16 %v3092
    %v3260 = vunpack.c.h.b16 %v3092
    %v3261 = vunpack.c.l.b16 %v3093
    %v3262 = vunpack.c.h.b16 %v3093
    %v3263 = vunpack.c.l.b16 %v3094
    %v3264 = vunpack.c.h.b16 %v3094
    %v3265 = vunpack.c.l.b16 %v3095
    %v3266 = vunpack.c.h.b16 %v3095
    %v3267 = vunpack.c.l.b16 %v3096
    %v3268 = vunpack.c.h.b16 %v3096
    %v3269 = vunpack.c.l.b16 %v3097
    %v3270 = vunpack.c.h.b16 %v3097
    %v3271 = vunpack.c.l.b16 %v3098
    %v3272 = vunpack.c.h.b16 %v3098
    %v3273 = vunpack.c.l.b16 %v3099
    %v3274 = vunpack.c.h.b16 %v3099
    %v3275 = vunpack.c.l.b16 %v3100
    %v3276 = vunpack.c.h.b16 %v3100
    %v3277 = vunpack.c.l.b16 %v3101
    %v3278 = vunpack.c.h.b16 %v3101
    %v3279 = vunpack.c.l.b16 %v3102
    %v3280 = vunpack.c.h.b16 %v3102
    %v3281 = vunpack.c.l.b16 %v3103
    %v3282 = vunpack.c.h.b16 %v3103
    %v3283 = vunpack.c.l.b16 %v3104
    %v3284 = vunpack.c.h.b16 %v3104
    %v3285 = vunpack.c.l.b16 %v3105
    %v3286 = vunpack.c.h.b16 %v3105
    %v3287 = vunpack.c.l.b16 %v3106
    %v3288 = vunpack.c.h.b16 %v3106
    %v3289 = vunpack.c.l.b16 %v3107
    %v3290 = vunpack.c.h.b16 %v3107
    %v3291 = vunpack.c.l.b16 %v3108
    %v3292 = vunpack.c.h.b16 %v3108
    %v3293 = vunpack.c.l.b16 %v3109
    %v3294 = vunpack.c.h.b16 %v3109
    %v3295 = vunpack.c.l.b16 %v3110
    %v3296 = vunpack.c.h.b16 %v3110
    %v3297 = vunpack.c.l.b16 %v3111
    %v3298 = vunpack.c.h.b16 %v3111
    %v3299 = vunpack.c.l.b16 %v3112
    %v3300 = vunpack.c.h.b16 %v3112
    %v3301 = vunpack.c.l.b16 %v3113
    %v3302 = vunpack.c.h.b16 %v3113
    %v3303 = vunpack.c.l.b16 %v3114
    %v3304 = vunpack.c.h.b16 %v3114
    %v3305 = vunpack.c.l.b16 %v3115
    %v3306 = vunpack.c.h.b16 %v3115
    %v3307 = vunpack.c.l.b16 %v3116
    %v3308 = vunpack.c.h.b16 %v3116
    %v3309 = vunpack.c.l.b16 %v3117
    %v3310 = vunpack.c.h.b16 %v3117
    %v3311 = vunpack.c.l.b16 %v3118
    %v3312 = vunpack.c.h.b16 %v3118
    %v3313 = vunpack.c.l.b16 %v3119
    %v3314 = vunpack.c.h.b16 %v3119
    %v3315 = vunpack.c.l.b16 %v3120
    %v3316 = vunpack.c.h.b16 %v3120
    %v3317 = vunpack.c.l.b16 %v3121
    %v3318 = vunpack.c.h.b16 %v3121
    %v3319 = vunpack.c.l.b16 %v3122
    %v3320 = vunpack.c.h.b16 %v3122
    %v3321 = vunpack.c.l.b16 %v3123
    %v3322 = vunpack.c.h.b16 %v3123
    %v3323 = vunpack.c.l.b16 %v3124
    %v3324 = vunpack.c.h.b16 %v3124
    %v3325 = vunpack.c.l.b16 %v3125
    %v3326 = vunpack.c.h.b16 %v3125
    %v3327 = vunpack.c.l.b16 %v3126
    %v3328 = vunpack.c.h.b16 %v3126
    %v3329 = vunpack.c.l.b16 %v3127
    %v3330 = vunpack.c.h.b16 %v3127
    %v3331 = vpack.c.b16 %v3205, %v3203
    %v3332 = vpack.c.b16 %v3206, %v3204
    %v3333 = vpack.c.b16 %v3209, %v3207
    %v3334 = vpack.c.b16 %v3210, %v3208
    %v3335 = vpack.c.b16 %v3213, %v3211
    %v3336 = vpack.c.b16 %v3214, %v3212
    %v3337 = vpack.c.b16 %v3217, %v3215
    %v3338 = vpack.c.b16 %v3218, %v3216
    %v3339 = vpack.c.b16 %v3221, %v3219
    %v3340 = vpack.c.b16 %v3222, %v3220
    %v3341 = vpack.c.b16 %v3225, %v3223
    %v3342 = vpack.c.b16 %v3226, %v3224
    %v3343 = vpack.c.b16 %v3229, %v3227
    %v3344 = vpack.c.b16 %v3230, %v3228
    %v3345 = vpack.c.b16 %v3233, %v3231
    %v3346 = vpack.c.b16 %v3234, %v3232
    %v3347 = vpack.c.b16 %v3237, %v3235
    %v3348 = vpack.c.b16 %v3238, %v3236
    %v3349 = vpack.c.b16 %v3241, %v3239
    %v3350 = vpack.c.b16 %v3242, %v3240
    %v3351 = vpack.c.b16 %v3245, %v3243
    %v3352 = vpack.c.b16 %v3246, %v3244
    %v3353 = vpack.c.b16 %v3249, %v3247
    %v3354 = vpack.c.b16 %v3250, %v3248
    %v3355 = vpack.c.b16 %v3253, %v3251
    %v3356 = vpack.c.b16 %v3254, %v3252
    %v3357 = vpack.c.b16 %v3257, %v3255
    %v3358 = vpack.c.b16 %v3258, %v3256
    %v3359 = vpack.c.b16 %v3261, %v3259
    %v3360 = vpack.c.b16 %v3262, %v3260
    %v3361 = vpack.c.b16 %v3265, %v3263
    %v3362 = vpack.c.b16 %v3266, %v3264
    %v3363 = vpack.c.b16 %v3269, %v3267
    %v3364 = vpack.c.b16 %v3270, %v3268
    %v3365 = vpack.c.b16 %v3273, %v3271
    %v3366 = vpack.c.b16 %v3274, %v3272
    %v3367 = vpack.c.b16 %v3277, %v3275
    %v3368 = vpack.c.b16 %v3278, %v3276
    %v3369 = vpack.c.b16 %v3281, %v3279
    %v3370 = vpack.c.b16 %v3282, %v3280
    %v3371 = vpack.c.b16 %v3285, %v3283
    %v3372 = vpack.c.b16 %v3286, %v3284
    %v3373 = vpack.c.b16 %v3289, %v3287
    %v3374 = vpack.c.b16 %v3290, %v3288
    %v3375 = vpack.c.b16 %v3293, %v3291
    %v3376 = vpack.c.b16 %v3294, %v3292
    %v3377 = vpack.c.b16 %v3297, %v3295
    %v3378 = vpack.c.b16 %v3298, %v3296
    %v3379 = vpack.c.b16 %v3301, %v3299
    %v3380 = vpack.c.b16 %v3302, %v3300
    %v3381 = vpack.c.b16 %v3305, %v3303
    %v3382 = vpack.c.b16 %v3306, %v3304
    %v3383 = vpack.c.b16 %v3309, %v3307
    %v3384 = vpack.c.b16 %v3310, %v3308
    %v3385 = vpack.c.b16 %v3313, %v3311
    %v3386 = vpack.c.b16 %v3314, %v3312
    %v3387 = vpack.c.b16 %v3317, %v3315
    %v3388 = vpack.c.b16 %v3318, %v3316
    %v3389 = vpack.c.b16 %v3321, %v3319
    %v3390 = vpack.c.b16 %v3322, %v3320
    %v3391 = vpack.c.b16 %v3325, %v3323
    %v3392 = vpack.c.b16 %v3326, %v3324
    %v3393 = vpack.c.b16 %v3329, %v3327
    %v3394 = vpack.c.b16 %v3330, %v3328
    %3459 = vmatprep.subr.bf16.mxu0 %v3346
    %3460 = vmatpush1.bf16.msra.mxu0 %v3345
    %3461 = vmatprep.subr.bf16.mxu0 %v3344
    %3462 = vmatpush1.bf16.msra.mxu0 %v3343
    %3463 = vmatprep.subr.bf16.mxu0 %v3342
    %3464 = vmatpush1.bf16.msra.mxu0 %v3341
    %3465 = vmatprep.subr.bf16.mxu0 %v3340
    %3466 = vmatpush1.bf16.msra.mxu0 %v3339
    %3467 = vmatprep.subr.bf16.mxu0 %v3338
    %3468 = vmatpush1.bf16.msra.mxu0 %v3337
    %3469 = vmatprep.subr.bf16.mxu0 %v3336
    %3470 = vmatpush1.bf16.msra.mxu0 %v3335
    %3471 = vmatprep.subr.bf16.mxu0 %v3334
    %3472 = vmatpush1.bf16.msra.mxu0 %v3333
    %3473 = vmatprep.subr.bf16.mxu0 %v3332
    %3474 = vmatpush1.bf16.msra.mxu0 %v3331
    %3475 = vmatprep.subr.bf16.mxu0 %v3362
    %3476 = vmatpush2.bf16.msra.mxu0 %v3361
    %3477 = vmatprep.subr.bf16.mxu0 %v3360
    %3478 = vmatpush2.bf16.msra.mxu0 %v3359
    %3479 = vmatprep.subr.bf16.mxu0 %v3358
    %3480 = vmatpush2.bf16.msra.mxu0 %v3357
    %3481 = vmatprep.subr.bf16.mxu0 %v3356
    %3482 = vmatpush2.bf16.msra.mxu0 %v3355
    %3483 = vmatprep.subr.bf16.mxu0 %v3354
    %3484 = vmatpush2.bf16.msra.mxu0 %v3353
    %3485 = vmatprep.subr.bf16.mxu0 %v3352
    %3486 = vmatpush2.bf16.msra.mxu0 %v3351
    %3487 = vmatprep.subr.bf16.mxu0 %v3350
    %3488 = vmatpush2.bf16.msra.mxu0 %v3349
    %3489 = vmatprep.subr.bf16.mxu0 %v3348
    %3490 = vmatpush2.bf16.msra.mxu0 %v3347
    %3491 = vmatprep.mubr.bf16.mxu0 %v3061
    %3492 = vmatmul.mubr.bf16.gmra.mxu0 %v3060
    %v3493 = vpop.f32.mrf.mxu0
    %v3494 = vadd.f32 %v3132, %v3493
    %v3495 = vpop.f32.mrf.mxu0
    %v3496 = vadd.f32 %v3136, %v3495
    %v3497 = vpop.f32.mrf.mxu0
    %v3498 = vpop.f32.mrf.mxu0
    %3499 = vdwg.mxu0
    %3500 = vmatprep.subr.bf16.mxu0 %v3378
    %3501 = vmatpush1.bf16.msra.mxu0 %v3377
    %3502 = vmatprep.subr.bf16.mxu0 %v3376
    %3503 = vmatpush1.bf16.msra.mxu0 %v3375
    %3504 = vmatprep.subr.bf16.mxu0 %v3374
    %3505 = vmatpush1.bf16.msra.mxu0 %v3373
    %3506 = vmatprep.subr.bf16.mxu0 %v3372
    %3507 = vmatpush1.bf16.msra.mxu0 %v3371
    %3508 = vmatprep.subr.bf16.mxu0 %v3370
    %3509 = vmatpush1.bf16.msra.mxu0 %v3369
    %3510 = vmatprep.subr.bf16.mxu0 %v3368
    %3511 = vmatpush1.bf16.msra.mxu0 %v3367
    %3512 = vmatprep.subr.bf16.mxu0 %v3366
    %3513 = vmatpush1.bf16.msra.mxu0 %v3365
    %3514 = vmatprep.subr.bf16.mxu0 %v3364
    %3515 = vmatpush1.bf16.msra.mxu0 %v3363
    %3516 = vmatprep.subr.bf16.mxu0 %v3394
    %3517 = vmatpush2.bf16.msra.mxu0 %v3393
    %3518 = vmatprep.subr.bf16.mxu0 %v3392
    %3519 = vmatpush2.bf16.msra.mxu0 %v3391
    %3520 = vmatprep.subr.bf16.mxu0 %v3390
    %3521 = vmatpush2.bf16.msra.mxu0 %v3389
    %3522 = vmatprep.subr.bf16.mxu0 %v3388
    %3523 = vmatpush2.bf16.msra.mxu0 %v3387
    %3524 = vmatprep.subr.bf16.mxu0 %v3386
    %3525 = vmatpush2.bf16.msra.mxu0 %v3385
    %3526 = vmatprep.subr.bf16.mxu0 %v3384
    %3527 = vmatpush2.bf16.msra.mxu0 %v3383
    %3528 = vmatprep.subr.bf16.mxu0 %v3382
    %3529 = vmatpush2.bf16.msra.mxu0 %v3381
    %3530 = vmatprep.subr.bf16.mxu0 %v3380
    %3531 = vmatpush2.bf16.msra.mxu0 %v3379
    %3532 = vmatprep.mubr.bf16.mxu0 %v3063
    %3533 = vmatmul.mubr.bf16.gmra.mxu0 %v3062
    %v3534 = vpop.f32.mrf.mxu0
    %v3535 = vadd.f32 %v3494, %v3534
    %v3536 = vpop.f32.mrf.mxu0
    %v3537 = vadd.f32 %v3496, %v3536
    %v3538 = vpop.f32.mrf.mxu0
    %v3539 = vpop.f32.mrf.mxu0
    %3540 = vdwg.mxu0
    %v3541 = vmax.f32 %v3535, 0.0
    %v3542 = vmax.f32 %v3537, 0.0
    %v3543 = vpack.c.bf16 %v3541, %v3541
    %v3544 = vpack.c.bf16 %v3542, %v3542
    %v3545 = vld [vmem:[#allocation9 + $0x200] sm:$0xf]
    %v3546 = vld [vmem:[#allocation9 + $0x208] sm:$0xf]
    %v3547 = vld [vmem:[#allocation9 + $0x210] sm:$0xf]
    %v3548 = vld [vmem:[#allocation9 + $0x218] sm:$0xf]
    %v3549 = vld [vmem:[#allocation9 + $0x220] sm:$0xf]
    %v3550 = vld [vmem:[#allocation9 + $0x228] sm:$0xf]
    %v3551 = vld [vmem:[#allocation9 + $0x230] sm:$0xf]
    %v3552 = vld [vmem:[#allocation9 + $0x238] sm:$0xf]
    %v3553 = vld [vmem:[#allocation9 + $0x240] sm:$0xf]
    %v3554 = vld [vmem:[#allocation9 + $0x248] sm:$0xf]
    %v3555 = vld [vmem:[#allocation9 + $0x250] sm:$0xf]
    %v3556 = vld [vmem:[#allocation9 + $0x258] sm:$0xf]
    %v3557 = vld [vmem:[#allocation9 + $0x260] sm:$0xf]
    %v3558 = vld [vmem:[#allocation9 + $0x268] sm:$0xf]
    %v3559 = vld [vmem:[#allocation9 + $0x270] sm:$0xf]
    %v3560 = vld [vmem:[#allocation9 + $0x278] sm:$0xf]
    %v3561 = vld [vmem:[#allocation9 + $0x280] sm:$0xf]
    %v3562 = vld [vmem:[#allocation9 + $0x288] sm:$0xf]
    %v3563 = vld [vmem:[#allocation9 + $0x290] sm:$0xf]
    %v3564 = vld [vmem:[#allocation9 + $0x298] sm:$0xf]
    %v3565 = vld [vmem:[#allocation9 + $0x2a0] sm:$0xf]
    %v3566 = vld [vmem:[#allocation9 + $0x2a8] sm:$0xf]
    %v3567 = vld [vmem:[#allocation9 + $0x2b0] sm:$0xf]
    %v3568 = vld [vmem:[#allocation9 + $0x2b8] sm:$0xf]
    %v3569 = vld [vmem:[#allocation9 + $0x2c0] sm:$0xf]
    %v3570 = vld [vmem:[#allocation9 + $0x2c8] sm:$0xf]
    %v3571 = vld [vmem:[#allocation9 + $0x2d0] sm:$0xf]
    %v3572 = vld [vmem:[#allocation9 + $0x2d8] sm:$0xf]
    %v3573 = vld [vmem:[#allocation9 + $0x2e0] sm:$0xf]
    %v3574 = vld [vmem:[#allocation9 + $0x2e8] sm:$0xf]
    %v3575 = vld [vmem:[#allocation9 + $0x2f0] sm:$0xf]
    %v3576 = vld [vmem:[#allocation9 + $0x2f8] sm:$0xf]
    %v3578 = vlaneseq
    %v3579 = vshrl.u32 %v3578, 7
    %v3580 = vsub.s32 0, %v3579
    %v3581 = vrot.slane %v93, %v3580
    %v3615 = vunpack.c.l.b16 %v3545
    %v3616 = vunpack.c.l.b16 %v3546
    %v3617 = vunpack.c.l.b16 %v3547
    %v3618 = vunpack.c.l.b16 %v3548
    %v3619 = vunpack.c.l.b16 %v3549
    %v3620 = vunpack.c.l.b16 %v3550
    %v3621 = vunpack.c.l.b16 %v3551
    %v3622 = vunpack.c.l.b16 %v3552
    %v3623 = vunpack.c.l.b16 %v3553
    %v3624 = vunpack.c.l.b16 %v3554
    %v3625 = vunpack.c.l.b16 %v3555
    %v3626 = vunpack.c.l.b16 %v3556
    %v3627 = vunpack.c.l.b16 %v3557
    %v3628 = vunpack.c.l.b16 %v3558
    %v3629 = vunpack.c.l.b16 %v3559
    %v3630 = vunpack.c.l.b16 %v3560
    %v3631 = vunpack.c.l.b16 %v3561
    %v3632 = vunpack.c.l.b16 %v3562
    %v3633 = vunpack.c.l.b16 %v3563
    %v3634 = vunpack.c.l.b16 %v3564
    %v3635 = vunpack.c.l.b16 %v3565
    %v3636 = vunpack.c.l.b16 %v3566
    %v3637 = vunpack.c.l.b16 %v3567
    %v3638 = vunpack.c.l.b16 %v3568
    %v3639 = vunpack.c.l.b16 %v3569
    %v3640 = vunpack.c.l.b16 %v3570
    %v3641 = vunpack.c.l.b16 %v3571
    %v3642 = vunpack.c.l.b16 %v3572
    %v3643 = vunpack.c.l.b16 %v3573
    %v3644 = vunpack.c.l.b16 %v3574
    %v3645 = vunpack.c.l.b16 %v3575
    %v3646 = vunpack.c.l.b16 %v3576
    %v3647 = vpack.c.b16 %v3616, %v3615
    %v3648 = vpack.c.b16 %v3618, %v3617
    %v3649 = vpack.c.b16 %v3620, %v3619
    %v3650 = vpack.c.b16 %v3622, %v3621
    %v3651 = vpack.c.b16 %v3624, %v3623
    %v3652 = vpack.c.b16 %v3626, %v3625
    %v3653 = vpack.c.b16 %v3628, %v3627
    %v3654 = vpack.c.b16 %v3630, %v3629
    %v3655 = vpack.c.b16 %v3632, %v3631
    %v3656 = vpack.c.b16 %v3634, %v3633
    %v3657 = vpack.c.b16 %v3636, %v3635
    %v3658 = vpack.c.b16 %v3638, %v3637
    %v3659 = vpack.c.b16 %v3640, %v3639
    %v3660 = vpack.c.b16 %v3642, %v3641
    %v3661 = vpack.c.b16 %v3644, %v3643
    %v3662 = vpack.c.b16 %v3646, %v3645
    %3679 = vmatprep.subr.bf16.mxu0 0
    %3680 = vmatpush1.bf16.msra.mxu0 %v3654
    %3681 = vmatprep.subr.bf16.mxu0 0
    %3682 = vmatpush1.bf16.msra.mxu0 %v3653
    %3683 = vmatprep.subr.bf16.mxu0 0
    %3684 = vmatpush1.bf16.msra.mxu0 %v3652
    %3685 = vmatprep.subr.bf16.mxu0 0
    %3686 = vmatpush1.bf16.msra.mxu0 %v3651
    %3687 = vmatprep.subr.bf16.mxu0 0
    %3688 = vmatpush1.bf16.msra.mxu0 %v3650
    %3689 = vmatprep.subr.bf16.mxu0 0
    %3690 = vmatpush1.bf16.msra.mxu0 %v3649
    %3691 = vmatprep.subr.bf16.mxu0 0
    %3692 = vmatpush1.bf16.msra.mxu0 %v3648
    %3693 = vmatprep.subr.bf16.mxu0 0
    %3694 = vmatpush1.bf16.msra.mxu0 %v3647
    %3695 = vmatprep.subr.bf16.mxu0 0
    %3696 = vmatpush2.bf16.msra.mxu0 %v3662
    %3697 = vmatprep.subr.bf16.mxu0 0
    %3698 = vmatpush2.bf16.msra.mxu0 %v3661
    %3699 = vmatprep.subr.bf16.mxu0 0
    %3700 = vmatpush2.bf16.msra.mxu0 %v3660
    %3701 = vmatprep.subr.bf16.mxu0 0
    %3702 = vmatpush2.bf16.msra.mxu0 %v3659
    %3703 = vmatprep.subr.bf16.mxu0 0
    %3704 = vmatpush2.bf16.msra.mxu0 %v3658
    %3705 = vmatprep.subr.bf16.mxu0 0
    %3706 = vmatpush2.bf16.msra.mxu0 %v3657
    %3707 = vmatprep.subr.bf16.mxu0 0
    %3708 = vmatpush2.bf16.msra.mxu0 %v3656
    %3709 = vmatprep.subr.bf16.mxu0 0
    %3710 = vmatpush2.bf16.msra.mxu0 %v3655
    %3711 = vmatprep.mubr.bf16.mxu0 %v3544
    %3712 = vmatmul.mubr.bf16.gmra.mxu0 %v3543
    %v3713 = vpop.f32.mrf.mxu0
    %v3714 = vadd.f32 %v3581, %v3713
    %v3715 = vpop.f32.mrf.mxu0
    %v3716 = vpop.f32.mrf.mxu0
    %v3717 = vpop.f32.mrf.mxu0
    %3718 = vdwg.mxu0
    %v3719 = vtanh.pop %v3714
    %v3720 = vlaneseq
    %v3721 = vand.u32 %v3720, 127
    %vm3722 = vcmp.lt.s32.totalorder %v3721, 10
    %v3723 = vmul.f32 %v3719, 1.442695
    %v3724 = vpow.pop %v3723
    %v3725 = vsel %vm3722, %v3724, 0.0
    %3726 = vadd.xlane.f32.xlu0 %v3725
    %v3727 = vpop.xlane.xlu0 %3726
    %v3728 = vrcp.pop %v3727
    %v3729 = vmul.f32 %v3725, %v3728
    %3730 = vst [vmem:[%s6] sm:$0xff] %v3729
    // Predicated region
    $region46: #{classifier_forward.1} parent=1 // pred_check
      _
    $region47: #{classifier_forward.1} parent=1 // pred_check_branch
      %3732 = sbr.rel (0) target = $region49
    $region48: #{classifier_forward.1} parent=1 // pred_region
      _
    $region49: #{classifier_forward.1} parent=1 // pred_fallthru
      _
    // Predicated region
    $region50: #{classifier_forward.1} parent=1 // pred_check
      _
    $region51: #{classifier_forward.1} parent=1 // pred_check_branch
      %3734 = sbr.rel (0) target = $region53
    $region52: #{classifier_forward.1} parent=1 // pred_region
      _
    $region53: #{classifier_forward.1} parent=1 // pred_fallthru
      _
    %3735 = vsyncpa [#allocation3], 1
    %3736 = vsyncpa [#allocation5], 1
    %3737 = vsyncpa [#allocation8], 1

</llo_original>
